<compile_context>
chip_gen: v7x
topology: tpu7x:2x2x1
jax: 0.10.0
libtpu: 0.0.40
codegen_flags: <defaults>
</compile_context>

<pallas_src>
import math
import numpy as np
import jax
import jax.numpy as jnp
from jax.experimental import pallas as pl
from jax.experimental.pallas import tpu as pltpu

# ---- model hyperparameters (small, consistent with the module) ----
B = 2          # batch
S = 8          # sequence length
D = 32         # model dimension ("features")
H = 4          # num heads
HD = D // H    # head dimension
PD = 64        # feed-forward projecting dimension
G = B * H      # batch*heads for the head-batched attention einsums
VW = max(PD, D)  # width of the packed vector slab (=64)
INF = 1e8
LN_EPS = 1e-7


def _layer_norm(x, gamma, beta):
    # torch: mean over last dim, std unbiased (/(D-1)), gamma*(x-mu)/(std+eps)+beta
    d = x.shape[-1]
    mean = jnp.mean(x, axis=-1, keepdims=True)
    var = jnp.sum((x - mean) ** 2, axis=-1, keepdims=True) * (1.0 / (d - 1))
    std = jnp.sqrt(var)
    inv = 1.0 / (std + LN_EPS)          # one reciprocal per row, then multiply
    return gamma * ((x - mean) * inv) + beta


def encoder_block_kernel(x_ref, mask_ref, wqkv_ref, bqkv_ref, wo_ref, ffw_ref,
                         vec_ref, out_ref):
    x = x_ref[...]            # (B, S, D)
    mask = mask_ref[...]      # (B, S, S)

    # ---- unpack the consolidated small-vector slab (all slices start at lane 0) ----
    vec = vec_ref[...]                       # (7, VW)
    bo  = vec[0:1, 0:D]
    g1  = vec[1:2, 0:D]
    be1 = vec[2:3, 0:D]
    b1  = vec[3:4, 0:PD]
    b2  = vec[4:5, 0:D]
    g2  = vec[5:6, 0:D]
    be2 = vec[6:7, 0:D]

    # ---- fused QKV projection, batched over g = b*H + h (no per-head loop) ----
    x_g = jnp.broadcast_to(x[:, None], (B, H, S, D)).reshape(G, S, D)
    w_g = jnp.broadcast_to(wqkv_ref[...][None], (B, H, D, 3 * HD)).reshape(G, D, 3 * HD)
    qkv = jnp.einsum('gsd,gde->gse', x_g, w_g,
                     preferred_element_type=jnp.float32) + bqkv_ref[...]   # (G,S,3HD)
    qh = qkv[..., 0:HD]
    kh = qkv[..., HD:2 * HD]
    vh = qkv[..., 2 * HD:3 * HD]

    # ---- scores + masked softmax (mask test evaluated exactly once) ----
    mask_g = jnp.broadcast_to(mask[:, None], (B, H, S, S)).reshape(G, S, S)
    scores = jnp.einsum('gqe,gke->gqk', qh, kh,
                        preferred_element_type=jnp.float32) * (1.0 / math.sqrt(HD))
    scores = jnp.where(mask_g == 0.0, -INF, scores)
    scores = scores - jnp.max(scores, axis=-1, keepdims=True)
    p = jnp.exp(scores)
    p = p * (1.0 / jnp.sum(p, axis=-1, keepdims=True))
    ctx = jnp.einsum('gqk,gke->gqe', p, vh,
                     preferred_element_type=jnp.float32)                  # (G,S,HD)

    # ---- per-head output projection, reduce over heads (== concat-heads @ Wo) ----
    wo_g = jnp.broadcast_to(wo_ref[...][None], (B, H, HD, D)).reshape(G, HD, D)
    attn_g = jnp.einsum('gqe,ged->gqd', ctx, wo_g,
                        preferred_element_type=jnp.float32)               # (G,S,D)
    attn4 = attn_g.reshape(B, H, S, D)
    attn = attn4[:, 0]
    for h in range(1, H):             # 3 cheap VPU adds over a major axis
        attn = attn + attn4[:, h]
    attn = attn + bo

    # residual 1:  x + LN1(attn)
    x1 = x + _layer_norm(attn, g1, be1)

    # ---- feed forward (batched over B; weights broadcast once, W2 passed as W2^T
    #       so the second matmul contracts on the last dims — no transpose) ----
    ffw = ffw_ref[...]                                     # (2, D, PD)
    w1  = jnp.broadcast_to(ffw[0][None], (B, D, PD))
    w2t = jnp.broadcast_to(ffw[1][None], (B, D, PD))
    h1 = jnp.einsum('bsd,bdp->bsp', x1, w1,
                    preferred_element_type=jnp.float32) + b1
    h1 = jnp.maximum(h1, 0.0)
    ff = jnp.einsum('bsp,bdp->bsd', h1, w2t,
                    preferred_element_type=jnp.float32) + b2

    # residual 2:  x1 + LN2(ff)
    out_ref[...] = x1 + _layer_norm(ff, g2, be2)


def pack_params(params):
    """Repack the 16 raw (pre-transposed) parameters into 5 kernel slabs."""
    (wq, bq, wk, bk, wv, bv, wo, bo, g1, be1, w1, b1, w2, b2, g2, be2) = params
    heads_cols = lambda w: w.reshape(D, H, HD).transpose(1, 0, 2)          # (H, D, HD)
    # per-head fused QKV weight: (H, D, 3*HD) with last-dim layout [Wq_h | Wk_h | Wv_h]
    wqkv_h = jnp.concatenate(
        [heads_cols(wq), heads_cols(wk), heads_cols(wv)], axis=-1)
    # per-(batch, head) fused QKV bias, g = b*H + h
    bqkv_h = jnp.concatenate(
        [bq.reshape(H, HD), bk.reshape(H, HD), bv.reshape(H, HD)], axis=-1)  # (H, 3HD)
    bqkv_g = jnp.tile(bqkv_h, (B, 1))[:, None, :]                            # (G, 1, 3HD)
    # per-head rows of the output projection
    wo_h = wo.reshape(H, HD, D)
    # FFN slab: [W1, W2^T], both (D, PD)
    ffw = jnp.stack([w1, w2.T])
    # single vector slab for the remaining 1xN parameters, padded to width VW
    def row(v):
        v = v.reshape(1, -1)
        return jnp.pad(v, ((0, 0), (0, VW - v.shape[1])))
    vec = jnp.concatenate([row(v) for v in (bo, g1, be1, b1, b2, g2, be2)], axis=0)
    return wqkv_h, bqkv_g, wo_h, ffw, vec


def encoder_block(x, mask, params):
    """x: (B, S, D) f32; mask: (B, S, S) f32 (0 => masked). Returns (B, S, D)."""
    wqkv_h, bqkv_g, wo_h, ffw, vec = pack_params(params)

    def full(shape):
        return pl.BlockSpec(shape, lambda i: (0,) * len(shape))

    in_specs = [
        full((B, S, D)),            # x
        full((B, S, S)),            # mask
        full((H, D, 3 * HD)),       # fused per-head QKV weight
        full((G, 1, 3 * HD)),       # fused per-(b,h) QKV bias
        full((H, HD, D)),           # per-head output projection
        full((2, D, PD)),           # [W1, W2^T]
        full((7, VW)),              # packed biases / gammas / betas
    ]
    return pl.pallas_call(
        encoder_block_kernel,
        out_shape=jax.ShapeDtypeStruct((B, S, D), jnp.float32),
        grid=(1,),                  # whole problem in one invocation (no per-batch grid)
        in_specs=in_specs,
        out_specs=full((B, S, D)),
        compiler_params=pltpu.CompilerParams(
            dimension_semantics=("arbitrary",)),
    )(x, mask, wqkv_h, bqkv_g, wo_h, ffw, vec)


def reference(x, mask, params):
    """Pure-JAX mirror of the PyTorch forward (eval mode) for validation."""
    (wq, bq, wk, bk, wv, bv, wo, bo, g1, be1, w1, b1, w2, b2, g2, be2) = params
    q = x @ wq + bq
    k = x @ wk + bk
    v = x @ wv + bv
    def split(t):   # (B, S, D) -> (B, H, S, HD)
        return t.reshape(B, S, H, HD).transpose(0, 2, 1, 3)
    qh, kh, vh = split(q), split(k), split(v)
    scores = jnp.einsum('bhsd,bhtd->bhst', qh, kh) / math.sqrt(HD)
    scores = jnp.where(mask[:, None, :, :] == 0, -INF, scores)
    p = jax.nn.softmax(scores, axis=-1)
    attn = jnp.einsum('bhst,bhtd->bhsd', p, vh)
    attn = attn.transpose(0, 2, 1, 3).reshape(B, S, D)
    attn = attn @ wo + bo
    x1 = x + _layer_norm(attn, g1, be1)
    ff = jnp.maximum(x1 @ w1 + b1, 0.0) @ w2 + b2
    return x1 + _layer_norm(ff, g2, be2)


def make_params(key):
    ks = jax.random.split(key, 16)
    s = 0.1
    wq = jax.random.normal(ks[0], (D, D), jnp.float32) * s
    bq = jax.random.normal(ks[1], (1, D), jnp.float32) * s
    wk = jax.random.normal(ks[2], (D, D), jnp.float32) * s
    bk = jax.random.normal(ks[3], (1, D), jnp.float32) * s
    wv = jax.random.normal(ks[4], (D, D), jnp.float32) * s
    bv = jax.random.normal(ks[5], (1, D), jnp.float32) * s
    wo = jax.random.normal(ks[6], (D, D), jnp.float32) * s
    bo = jax.random.normal(ks[7], (1, D), jnp.float32) * s
    g1 = jnp.ones((1, D), jnp.float32)
    be1 = jnp.zeros((1, D), jnp.float32)
    w1 = jax.random.normal(ks[8], (D, PD), jnp.float32) * s
    b1 = jax.random.normal(ks[9], (1, PD), jnp.float32) * s
    w2 = jax.random.normal(ks[10], (PD, D), jnp.float32) * s
    b2 = jax.random.normal(ks[11], (1, D), jnp.float32) * s
    g2 = jnp.ones((1, D), jnp.float32)
    be2 = jnp.zeros((1, D), jnp.float32)
    return (wq, bq, wk, bk, wv, bv, wo, bo, g1, be1, w1, b1, w2, b2, g2, be2)


if __name__ == "__main__":
    key = jax.random.PRNGKey(0)
    kx, km, kp = jax.random.split(key, 3)

    x = jax.random.normal(kx, (B, S, D), jnp.float32)
    # padding-style mask: (B, S, S); zero out last two key positions of batch 1
    mask = jnp.ones((B, S, S), jnp.float32)
    mask = mask.at[1, :, -2:].set(0.0)

    params = make_params(kp)

    out = encoder_block(x, mask, params)
    out = jax.block_until_ready(out)

    ref = reference(x, mask, params)
    np.testing.assert_allclose(np.asarray(out), np.asarray(ref), rtol=1e-4, atol=1e-4)

    print("KERNEL_OK")
</pallas_src>

<mosaic_0001>
module attributes {stable_mosaic.version = 11 : i64} {
  func.func @encoder_block_kernel(%arg0: i32, %arg1: memref<2x8x32xf32, #tpu.memory_space<vmem>>, %arg2: memref<2x8x8xf32, #tpu.memory_space<vmem>>, %arg3: memref<4x32x24xf32, #tpu.memory_space<vmem>>, %arg4: memref<8x1x24xf32, #tpu.memory_space<vmem>>, %arg5: memref<4x8x32xf32, #tpu.memory_space<vmem>>, %arg6: memref<2x32x64xf32, #tpu.memory_space<vmem>>, %arg7: memref<7x64xf32, #tpu.memory_space<vmem>>, %arg8: memref<2x8x32xf32, #tpu.memory_space<vmem>>) attributes {dimension_semantics = [#tpu.dimension_semantics<arbitrary>], iteration_bounds = array<i64: 1>, scalar_prefetch = 0 : i64, scratch_operands = 0 : i64, tpu.core_type = #tpu.core_type<tc>, window_params = [{pipeline_mode = #tpu.pipeline_mode<synchronous>, transform_indices = @transform_0, window_bounds = array<i64: 2, 8, 32>}, {pipeline_mode = #tpu.pipeline_mode<synchronous>, transform_indices = @transform_1, window_bounds = array<i64: 2, 8, 8>}, {pipeline_mode = #tpu.pipeline_mode<synchronous>, transform_indices = @transform_2, window_bounds = array<i64: 4, 32, 24>}, {pipeline_mode = #tpu.pipeline_mode<synchronous>, transform_indices = @transform_3, window_bounds = array<i64: 8, 1, 24>}, {pipeline_mode = #tpu.pipeline_mode<synchronous>, transform_indices = @transform_4, window_bounds = array<i64: 4, 8, 32>}, {pipeline_mode = #tpu.pipeline_mode<synchronous>, transform_indices = @transform_5, window_bounds = array<i64: 2, 32, 64>}, {pipeline_mode = #tpu.pipeline_mode<synchronous>, transform_indices = @transform_6, window_bounds = array<i64: 7, 64>}, {pipeline_mode = #tpu.pipeline_mode<synchronous>, transform_indices = @transform_7, window_bounds = array<i64: 2, 8, 32>}]} {
    %c0 = arith.constant 0 : index
    %c0_0 = arith.constant 0 : index
    %c0_1 = arith.constant 0 : index
    %0 = vector.load %arg1[%c0, %c0_0, %c0_1] : memref<2x8x32xf32, #tpu.memory_space<vmem>>, vector<2x8x32xf32>
    %c0_2 = arith.constant 0 : index
    %c0_3 = arith.constant 0 : index
    %c0_4 = arith.constant 0 : index
    %1 = vector.load %arg2[%c0_2, %c0_3, %c0_4] : memref<2x8x8xf32, #tpu.memory_space<vmem>>, vector<2x8x8xf32>
    %c0_5 = arith.constant 0 : index
    %c0_6 = arith.constant 0 : index
    %2 = vector.load %arg7[%c0_5, %c0_6] : memref<7x64xf32, #tpu.memory_space<vmem>>, vector<7x64xf32>
    %3 = vector.extract_strided_slice %2 {offsets = [0, 0], sizes = [1, 32], strides = [1, 1]} : vector<7x64xf32> to vector<1x32xf32>
    %4 = vector.extract_strided_slice %2 {offsets = [1, 0], sizes = [1, 32], strides = [1, 1]} : vector<7x64xf32> to vector<1x32xf32>
    %5 = vector.extract_strided_slice %2 {offsets = [2, 0], sizes = [1, 32], strides = [1, 1]} : vector<7x64xf32> to vector<1x32xf32>
    %6 = vector.extract_strided_slice %2 {offsets = [3, 0], sizes = [1, 64], strides = [1, 1]} : vector<7x64xf32> to vector<1x64xf32>
    %7 = vector.extract_strided_slice %2 {offsets = [4, 0], sizes = [1, 32], strides = [1, 1]} : vector<7x64xf32> to vector<1x32xf32>
    %8 = vector.extract_strided_slice %2 {offsets = [5, 0], sizes = [1, 32], strides = [1, 1]} : vector<7x64xf32> to vector<1x32xf32>
    %9 = vector.extract_strided_slice %2 {offsets = [6, 0], sizes = [1, 32], strides = [1, 1]} : vector<7x64xf32> to vector<1x32xf32>
    %10 = vector.shape_cast %0 : vector<2x8x32xf32> to vector<2x1x8x32xf32>
    %11 = vector.shape_cast %10 : vector<2x1x8x32xf32> to vector<2x1x8x32xf32>
    %12 = vector.broadcast %11 : vector<2x1x8x32xf32> to vector<2x4x8x32xf32>
    %13 = vector.shape_cast %12 : vector<2x4x8x32xf32> to vector<8x8x32xf32>
    %c0_7 = arith.constant 0 : index
    %c0_8 = arith.constant 0 : index
    %c0_9 = arith.constant 0 : index
    %14 = vector.load %arg3[%c0_7, %c0_8, %c0_9] : memref<4x32x24xf32, #tpu.memory_space<vmem>>, vector<4x32x24xf32>
    %15 = vector.shape_cast %14 : vector<4x32x24xf32> to vector<1x4x32x24xf32>
    %16 = vector.shape_cast %15 : vector<1x4x32x24xf32> to vector<1x4x32x24xf32>
    %17 = vector.broadcast %16 : vector<1x4x32x24xf32> to vector<2x4x32x24xf32>
    %18 = vector.shape_cast %17 : vector<2x4x32x24xf32> to vector<8x32x24xf32>
    "tpu.trace_start"() <{level = 10 : i32, message = "gsd,gde->gse"}> : () -> ()
    %cst = arith.constant dense<0.000000e+00> : vector<8x8x24xf32>
    %19 = tpu.matmul %13, %18, %cst {dimension_numbers = #tpu.dot_dimension_numbers<[2], [1], [1], [2], [0, 0, 0, 1, 1, 2], [0], [0]>} : vector<8x8x32xf32>, vector<8x32x24xf32>, vector<8x8x24xf32> -> vector<8x8x24xf32>
    "tpu.trace_stop"() : () -> ()
    %c0_10 = arith.constant 0 : index
    %c0_11 = arith.constant 0 : index
    %c0_12 = arith.constant 0 : index
    %20 = vector.load %arg4[%c0_10, %c0_11, %c0_12] : memref<8x1x24xf32, #tpu.memory_space<vmem>>, vector<8x1x24xf32>
    %21 = vector.broadcast %20 : vector<8x1x24xf32> to vector<8x8x24xf32>
    %22 = arith.addf %19, %21 : vector<8x8x24xf32>
    %23 = vector.extract_strided_slice %22 {offsets = [0, 0, 0], sizes = [8, 8, 8], strides = [1, 1, 1]} : vector<8x8x24xf32> to vector<8x8x8xf32>
    %24 = vector.extract_strided_slice %22 {offsets = [0, 0, 8], sizes = [8, 8, 8], strides = [1, 1, 1]} : vector<8x8x24xf32> to vector<8x8x8xf32>
    %25 = vector.extract_strided_slice %22 {offsets = [0, 0, 16], sizes = [8, 8, 8], strides = [1, 1, 1]} : vector<8x8x24xf32> to vector<8x8x8xf32>
    %26 = vector.shape_cast %1 : vector<2x8x8xf32> to vector<2x1x8x8xf32>
    %27 = vector.shape_cast %26 : vector<2x1x8x8xf32> to vector<2x1x8x8xf32>
    %28 = vector.broadcast %27 : vector<2x1x8x8xf32> to vector<2x4x8x8xf32>
    %29 = vector.shape_cast %28 : vector<2x4x8x8xf32> to vector<8x8x8xf32>
    "tpu.trace_start"() <{level = 10 : i32, message = "gqe,gke->gqk"}> : () -> ()
    %cst_13 = arith.constant dense<0.000000e+00> : vector<8x8x8xf32>
    %30 = tpu.matmul %23, %24, %cst_13 {dimension_numbers = #tpu.dot_dimension_numbers<[2], [2], [1], [1], [0, 0, 0, 1, 1, 1], [0], [0]>} : vector<8x8x8xf32>, vector<8x8x8xf32>, vector<8x8x8xf32> -> vector<8x8x8xf32>
    "tpu.trace_stop"() : () -> ()
    %cst_14 = arith.constant 0.353553385 : f32
    %31 = vector.broadcast %cst_14 : f32 to vector<8x8x8xf32>
    %32 = arith.mulf %30, %31 : vector<8x8x8xf32>
    %cst_15 = arith.constant 0.000000e+00 : f32
    %33 = vector.broadcast %cst_15 : f32 to vector<8x8x8xf32>
    %34 = arith.cmpf oeq, %29, %33 : vector<8x8x8xf32>
    %cst_16 = arith.constant -1.000000e+08 : f32
    %35 = vector.broadcast %cst_16 : f32 to vector<8x8x8xf32>
    %36 = arith.select %34, %35, %32 : vector<8x8x8xi1>, vector<8x8x8xf32>
    %cst_17 = arith.constant dense<0xFF800000> : vector<8x8xf32>
    %37 = vector.multi_reduction <maximumf>, %36, %cst_17 [2] : vector<8x8x8xf32> to vector<8x8xf32>
    %38 = vector.shape_cast %37 : vector<8x8xf32> to vector<8x8x1xf32>
    %39 = vector.broadcast %38 : vector<8x8x1xf32> to vector<8x8x8xf32>
    %40 = arith.subf %36, %39 : vector<8x8x8xf32>
    %41 = math.exp %40 : vector<8x8x8xf32>
    %cst_18 = arith.constant dense<0.000000e+00> : vector<8x8xf32>
    %42 = vector.multi_reduction <add>, %41, %cst_18 [2] : vector<8x8x8xf32> to vector<8x8xf32>
    %43 = vector.shape_cast %42 : vector<8x8xf32> to vector<8x8x1xf32>
    %cst_19 = arith.constant 1.000000e+00 : f32
    %44 = vector.broadcast %cst_19 : f32 to vector<8x8x1xf32>
    %45 = arith.divf %44, %43 : vector<8x8x1xf32>
    %46 = vector.broadcast %45 : vector<8x8x1xf32> to vector<8x8x8xf32>
    %47 = arith.mulf %41, %46 : vector<8x8x8xf32>
    "tpu.trace_start"() <{level = 10 : i32, message = "gqk,gke->gqe"}> : () -> ()
    %cst_20 = arith.constant dense<0.000000e+00> : vector<8x8x8xf32>
    %48 = tpu.matmul %47, %25, %cst_20 {dimension_numbers = #tpu.dot_dimension_numbers<[2], [1], [1], [2], [0, 0, 0, 1, 1, 2], [0], [0]>} : vector<8x8x8xf32>, vector<8x8x8xf32>, vector<8x8x8xf32> -> vector<8x8x8xf32>
    "tpu.trace_stop"() : () -> ()
    %c0_21 = arith.constant 0 : index
    %c0_22 = arith.constant 0 : index
    %c0_23 = arith.constant 0 : index
    %49 = vector.load %arg5[%c0_21, %c0_22, %c0_23] : memref<4x8x32xf32, #tpu.memory_space<vmem>>, vector<4x8x32xf32>
    %50 = vector.shape_cast %49 : vector<4x8x32xf32> to vector<1x4x8x32xf32>
    %51 = vector.shape_cast %50 : vector<1x4x8x32xf32> to vector<1x4x8x32xf32>
    %52 = vector.broadcast %51 : vector<1x4x8x32xf32> to vector<2x4x8x32xf32>
    %53 = vector.shape_cast %52 : vector<2x4x8x32xf32> to vector<8x8x32xf32>
    "tpu.trace_start"() <{level = 10 : i32, message = "gqe,ged->gqd"}> : () -> ()
    %cst_24 = arith.constant dense<0.000000e+00> : vector<8x8x32xf32>
    %54 = tpu.matmul %48, %53, %cst_24 {dimension_numbers = #tpu.dot_dimension_numbers<[2], [1], [1], [2], [0, 0, 0, 1, 1, 2], [0], [0]>} : vector<8x8x8xf32>, vector<8x8x32xf32>, vector<8x8x32xf32> -> vector<8x8x32xf32>
    "tpu.trace_stop"() : () -> ()
    %55 = vector.shape_cast %54 : vector<8x8x32xf32> to vector<2x4x8x32xf32>
    %56 = vector.extract_strided_slice %55 {offsets = [0, 0, 0, 0], sizes = [2, 1, 8, 32], strides = [1, 1, 1, 1]} : vector<2x4x8x32xf32> to vector<2x1x8x32xf32>
    %57 = vector.shape_cast %56 : vector<2x1x8x32xf32> to vector<2x8x32xf32>
    %58 = vector.extract_strided_slice %55 {offsets = [0, 1, 0, 0], sizes = [2, 1, 8, 32], strides = [1, 1, 1, 1]} : vector<2x4x8x32xf32> to vector<2x1x8x32xf32>
    %59 = vector.shape_cast %58 : vector<2x1x8x32xf32> to vector<2x8x32xf32>
    %60 = arith.addf %57, %59 : vector<2x8x32xf32>
    %61 = vector.extract_strided_slice %55 {offsets = [0, 2, 0, 0], sizes = [2, 1, 8, 32], strides = [1, 1, 1, 1]} : vector<2x4x8x32xf32> to vector<2x1x8x32xf32>
    %62 = vector.shape_cast %61 : vector<2x1x8x32xf32> to vector<2x8x32xf32>
    %63 = arith.addf %60, %62 : vector<2x8x32xf32>
    %64 = vector.extract_strided_slice %55 {offsets = [0, 3, 0, 0], sizes = [2, 1, 8, 32], strides = [1, 1, 1, 1]} : vector<2x4x8x32xf32> to vector<2x1x8x32xf32>
    %65 = vector.shape_cast %64 : vector<2x1x8x32xf32> to vector<2x8x32xf32>
    %66 = arith.addf %63, %65 : vector<2x8x32xf32>
    %67 = vector.shape_cast %3 : vector<1x32xf32> to vector<1x1x32xf32>
    %68 = vector.broadcast %67 : vector<1x1x32xf32> to vector<2x8x32xf32>
    %69 = arith.addf %66, %68 : vector<2x8x32xf32>
    %cst_25 = arith.constant dense<0.000000e+00> : vector<2x8xf32>
    %70 = vector.multi_reduction <add>, %69, %cst_25 [2] : vector<2x8x32xf32> to vector<2x8xf32>
    %71 = vector.shape_cast %70 : vector<2x8xf32> to vector<2x8x1xf32>
    %cst_26 = arith.constant 3.200000e+01 : f32
    %72 = vector.broadcast %cst_26 : f32 to vector<2x8x1xf32>
    %73 = arith.divf %71, %72 : vector<2x8x1xf32>
    %74 = vector.broadcast %73 : vector<2x8x1xf32> to vector<2x8x32xf32>
    %75 = arith.subf %69, %74 : vector<2x8x32xf32>
    %76 = arith.mulf %75, %75 : vector<2x8x32xf32>
    %cst_27 = arith.constant dense<0.000000e+00> : vector<2x8xf32>
    %77 = vector.multi_reduction <add>, %76, %cst_27 [2] : vector<2x8x32xf32> to vector<2x8xf32>
    %78 = vector.shape_cast %77 : vector<2x8xf32> to vector<2x8x1xf32>
    %cst_28 = arith.constant 0.0322580636 : f32
    %79 = vector.broadcast %cst_28 : f32 to vector<2x8x1xf32>
    %80 = arith.mulf %78, %79 : vector<2x8x1xf32>
    %81 = math.sqrt %80 : vector<2x8x1xf32>
    %cst_29 = arith.constant 1.000000e-07 : f32
    %82 = vector.broadcast %cst_29 : f32 to vector<2x8x1xf32>
    %83 = arith.addf %81, %82 : vector<2x8x1xf32>
    %cst_30 = arith.constant 1.000000e+00 : f32
    %84 = vector.broadcast %cst_30 : f32 to vector<2x8x1xf32>
    %85 = arith.divf %84, %83 : vector<2x8x1xf32>
    %86 = vector.broadcast %73 : vector<2x8x1xf32> to vector<2x8x32xf32>
    %87 = arith.subf %69, %86 : vector<2x8x32xf32>
    %88 = vector.broadcast %85 : vector<2x8x1xf32> to vector<2x8x32xf32>
    %89 = arith.mulf %87, %88 : vector<2x8x32xf32>
    %90 = vector.shape_cast %4 : vector<1x32xf32> to vector<1x1x32xf32>
    %91 = vector.broadcast %90 : vector<1x1x32xf32> to vector<2x8x32xf32>
    %92 = arith.mulf %91, %89 : vector<2x8x32xf32>
    %93 = vector.shape_cast %5 : vector<1x32xf32> to vector<1x1x32xf32>
    %94 = vector.broadcast %93 : vector<1x1x32xf32> to vector<2x8x32xf32>
    %95 = arith.addf %92, %94 : vector<2x8x32xf32>
    %96 = arith.addf %0, %95 : vector<2x8x32xf32>
    %c0_31 = arith.constant 0 : index
    %c0_32 = arith.constant 0 : index
    %c0_33 = arith.constant 0 : index
    %97 = vector.load %arg6[%c0_31, %c0_32, %c0_33] : memref<2x32x64xf32, #tpu.memory_space<vmem>>, vector<2x32x64xf32>
    %98 = vector.extract_strided_slice %97 {offsets = [0, 0, 0], sizes = [1, 32, 64], strides = [1, 1, 1]} : vector<2x32x64xf32> to vector<1x32x64xf32>
    %99 = vector.shape_cast %98 : vector<1x32x64xf32> to vector<32x64xf32>
    %100 = vector.shape_cast %99 : vector<32x64xf32> to vector<1x32x64xf32>
    %101 = vector.shape_cast %100 : vector<1x32x64xf32> to vector<1x32x64xf32>
    %102 = vector.broadcast %101 : vector<1x32x64xf32> to vector<2x32x64xf32>
    %103 = vector.extract_strided_slice %97 {offsets = [1, 0, 0], sizes = [1, 32, 64], strides = [1, 1, 1]} : vector<2x32x64xf32> to vector<1x32x64xf32>
    %104 = vector.shape_cast %103 : vector<1x32x64xf32> to vector<32x64xf32>
    %105 = vector.shape_cast %104 : vector<32x64xf32> to vector<1x32x64xf32>
    %106 = vector.shape_cast %105 : vector<1x32x64xf32> to vector<1x32x64xf32>
    %107 = vector.broadcast %106 : vector<1x32x64xf32> to vector<2x32x64xf32>
    "tpu.trace_start"() <{level = 10 : i32, message = "bsd,bdp->bsp"}> : () -> ()
    %cst_34 = arith.constant dense<0.000000e+00> : vector<2x8x64xf32>
    %108 = tpu.matmul %96, %102, %cst_34 {dimension_numbers = #tpu.dot_dimension_numbers<[2], [1], [1], [2], [0, 0, 0, 1, 1, 2], [0], [0]>} : vector<2x8x32xf32>, vector<2x32x64xf32>, vector<2x8x64xf32> -> vector<2x8x64xf32>
    "tpu.trace_stop"() : () -> ()
    %109 = vector.shape_cast %6 : vector<1x64xf32> to vector<1x1x64xf32>
    %110 = vector.broadcast %109 : vector<1x1x64xf32> to vector<2x8x64xf32>
    %111 = arith.addf %108, %110 : vector<2x8x64xf32>
    %cst_35 = arith.constant 0.000000e+00 : f32
    %112 = vector.broadcast %cst_35 : f32 to vector<2x8x64xf32>
    %113 = arith.maximumf %111, %112 : vector<2x8x64xf32>
    "tpu.trace_start"() <{level = 10 : i32, message = "bsp,bdp->bsd"}> : () -> ()
    %cst_36 = arith.constant dense<0.000000e+00> : vector<2x8x32xf32>
    %114 = tpu.matmul %113, %107, %cst_36 {dimension_numbers = #tpu.dot_dimension_numbers<[2], [2], [1], [1], [0, 0, 0, 1, 1, 1], [0], [0]>} : vector<2x8x64xf32>, vector<2x32x64xf32>, vector<2x8x32xf32> -> vector<2x8x32xf32>
    "tpu.trace_stop"() : () -> ()
    %115 = vector.shape_cast %7 : vector<1x32xf32> to vector<1x1x32xf32>
    %116 = vector.broadcast %115 : vector<1x1x32xf32> to vector<2x8x32xf32>
    %117 = arith.addf %114, %116 : vector<2x8x32xf32>
    %cst_37 = arith.constant dense<0.000000e+00> : vector<2x8xf32>
    %118 = vector.multi_reduction <add>, %117, %cst_37 [2] : vector<2x8x32xf32> to vector<2x8xf32>
    %119 = vector.shape_cast %118 : vector<2x8xf32> to vector<2x8x1xf32>
    %cst_38 = arith.constant 3.200000e+01 : f32
    %120 = vector.broadcast %cst_38 : f32 to vector<2x8x1xf32>
    %121 = arith.divf %119, %120 : vector<2x8x1xf32>
    %122 = vector.broadcast %121 : vector<2x8x1xf32> to vector<2x8x32xf32>
    %123 = arith.subf %117, %122 : vector<2x8x32xf32>
    %124 = arith.mulf %123, %123 : vector<2x8x32xf32>
    %cst_39 = arith.constant dense<0.000000e+00> : vector<2x8xf32>
    %125 = vector.multi_reduction <add>, %124, %cst_39 [2] : vector<2x8x32xf32> to vector<2x8xf32>
    %126 = vector.shape_cast %125 : vector<2x8xf32> to vector<2x8x1xf32>
    %cst_40 = arith.constant 0.0322580636 : f32
    %127 = vector.broadcast %cst_40 : f32 to vector<2x8x1xf32>
    %128 = arith.mulf %126, %127 : vector<2x8x1xf32>
    %129 = math.sqrt %128 : vector<2x8x1xf32>
    %cst_41 = arith.constant 1.000000e-07 : f32
    %130 = vector.broadcast %cst_41 : f32 to vector<2x8x1xf32>
    %131 = arith.addf %129, %130 : vector<2x8x1xf32>
    %cst_42 = arith.constant 1.000000e+00 : f32
    %132 = vector.broadcast %cst_42 : f32 to vector<2x8x1xf32>
    %133 = arith.divf %132, %131 : vector<2x8x1xf32>
    %134 = vector.broadcast %121 : vector<2x8x1xf32> to vector<2x8x32xf32>
    %135 = arith.subf %117, %134 : vector<2x8x32xf32>
    %136 = vector.broadcast %133 : vector<2x8x1xf32> to vector<2x8x32xf32>
    %137 = arith.mulf %135, %136 : vector<2x8x32xf32>
    %138 = vector.shape_cast %8 : vector<1x32xf32> to vector<1x1x32xf32>
    %139 = vector.broadcast %138 : vector<1x1x32xf32> to vector<2x8x32xf32>
    %140 = arith.mulf %139, %137 : vector<2x8x32xf32>
    %141 = vector.shape_cast %9 : vector<1x32xf32> to vector<1x1x32xf32>
    %142 = vector.broadcast %141 : vector<1x1x32xf32> to vector<2x8x32xf32>
    %143 = arith.addf %140, %142 : vector<2x8x32xf32>
    %144 = arith.addf %96, %143 : vector<2x8x32xf32>
    %c0_43 = arith.constant 0 : index
    %c0_44 = arith.constant 0 : index
    %c0_45 = arith.constant 0 : index
    %145 = vector.load %arg8[%c0_43, %c0_44, %c0_45] : memref<2x8x32xf32, #tpu.memory_space<vmem>>, vector<2x8x32xf32>
    tpu.vector_store %arg8[%c0_43, %c0_44, %c0_45], %144 {strides = array<i32>} : memref<2x8x32xf32, #tpu.memory_space<vmem>>, vector<2x8x32xf32>,
    return
  }
  func.func @transform_0(%arg0: i32) -> (i32, i32, i32) {
    %c0_i32 = arith.constant 0 : i32
    %c0_i32_0 = arith.constant 0 : i32
    %c0_i32_1 = arith.constant 0 : i32
    %c0_i32_2 = arith.constant 0 : i32
    return %c0_i32, %c0_i32_0, %c0_i32_1 : i32, i32, i32
  }
  func.func @transform_1(%arg0: i32) -> (i32, i32, i32) {
    %c0_i32 = arith.constant 0 : i32
    %c0_i32_0 = arith.constant 0 : i32
    %c0_i32_1 = arith.constant 0 : i32
    %c0_i32_2 = arith.constant 0 : i32
    return %c0_i32, %c0_i32_0, %c0_i32_1 : i32, i32, i32
  }
  func.func @transform_2(%arg0: i32) -> (i32, i32, i32) {
    %c0_i32 = arith.constant 0 : i32
    %c0_i32_0 = arith.constant 0 : i32
    %c0_i32_1 = arith.constant 0 : i32
    %c0_i32_2 = arith.constant 0 : i32
    return %c0_i32, %c0_i32_0, %c0_i32_1 : i32, i32, i32
  }
  func.func @transform_3(%arg0: i32) -> (i32, i32, i32) {
    %c0_i32 = arith.constant 0 : i32
    %c0_i32_0 = arith.constant 0 : i32
    %c0_i32_1 = arith.constant 0 : i32
    %c0_i32_2 = arith.constant 0 : i32
    return %c0_i32, %c0_i32_0, %c0_i32_1 : i32, i32, i32
  }
  func.func @transform_4(%arg0: i32) -> (i32, i32, i32) {
    %c0_i32 = arith.constant 0 : i32
    %c0_i32_0 = arith.constant 0 : i32
    %c0_i32_1 = arith.constant 0 : i32
    %c0_i32_2 = arith.constant 0 : i32
    return %c0_i32, %c0_i32_0, %c0_i32_1 : i32, i32, i32
  }
  func.func @transform_5(%arg0: i32) -> (i32, i32, i32) {
    %c0_i32 = arith.constant 0 : i32
    %c0_i32_0 = arith.constant 0 : i32
    %c0_i32_1 = arith.constant 0 : i32
    %c0_i32_2 = arith.constant 0 : i32
    return %c0_i32, %c0_i32_0, %c0_i32_1 : i32, i32, i32
  }
  func.func @transform_6(%arg0: i32) -> (i32, i32) {
    %c0_i32 = arith.constant 0 : i32
    %c0_i32_0 = arith.constant 0 : i32
    %c0_i32_1 = arith.constant 0 : i32
    return %c0_i32, %c0_i32_0 : i32, i32
  }
  func.func @transform_7(%arg0: i32) -> (i32, i32, i32) {
    %c0_i32 = arith.constant 0 : i32
    %c0_i32_0 = arith.constant 0 : i32
    %c0_i32_1 = arith.constant 0 : i32
    %c0_i32_2 = arith.constant 0 : i32
    return %c0_i32, %c0_i32_0, %c0_i32_1 : i32, i32, i32
  }
}

</mosaic_0001>

<llo_original>
// kernel: tpu_custom_call.1
$region0: #{tpu_custom_call.1}
  #allocation0 [shape = 'u32[]', space=smem, size = 0x4, offset = 0x4, fixed_abs, tag = 'smem constant byte address 0x4 - core index']
  #allocation1 [shape = 'u32[144,128]{1,0:T(1,128)}', space=vmem, size = 0x12000, scoped, tag = 'internal scratch']
  %s0 = inlined_call_operand.vmem [shape: f32[2,8,32], index: 0, kind: input, shape index: {}]
  %s1 = inlined_call_operand.vmem [shape: f32[2,8,8], index: 1, kind: input, shape index: {}]
  %s2 = inlined_call_operand.vmem [shape: f32[4,32,24], index: 2, kind: input, shape index: {}]
  %s3 = inlined_call_operand.vmem [shape: f32[8,1,24], index: 3, kind: input, shape index: {}]
  %s4 = inlined_call_operand.vmem [shape: f32[4,8,32], index: 4, kind: input, shape index: {}]
  %s5 = inlined_call_operand.vmem [shape: f32[2,32,64], index: 5, kind: input, shape index: {}]
  %s6 = inlined_call_operand.vmem [shape: f32[7,64], index: 6, kind: input, shape index: {}]
  %s7 = inlined_call_operand.hbm [shape: f32[2,8,32], index: 7, kind: output, shape index: {}]
  %s8 = sld [smem:[#allocation0]]
  $region38: #{tpu_custom_call.1} parent=0
    _
  %s10 = ssub.s32 1, %s8
  %s11 = scalar_select 0, %s10, %s8
  $region1: #{tpu_custom_call.1} parent=0
    #allocation2 [shape = 'u8[8192]{0}', space=vmem, size = 0x2000, scoped, tag = 'output window, operand 0, single buffered']
    #allocation3 [shape = 's32[1]{0}', space=sflag, size = 0x4, scoped, tag = 'scoped memory for tpu_custom_call.1']
    %12 = vsyncpa [#allocation3], 0
    // Predicated region
    $region2: #{tpu_custom_call.1} parent=1 // pred_check
      _
    $region3: #{tpu_custom_call.1} parent=1 // pred_check_branch
      %14 = sbr.rel (0) target = $region5
    $region4: #{tpu_custom_call.1} parent=1 // pred_region
      _
    $region5: #{tpu_custom_call.1} parent=1 // pred_fallthru
      _
    // Predicated region
    $region6: #{tpu_custom_call.1} parent=1 // pred_check
      _
    $region7: #{tpu_custom_call.1} parent=1 // pred_check_branch
      %16 = sbr.rel (0) target = $region9
    $region8: #{tpu_custom_call.1} parent=1 // pred_region
      _
    $region9: #{tpu_custom_call.1} parent=1 // pred_fallthru
      _
    // Predicated region
    $region10: #{tpu_custom_call.1} parent=1 // pred_check
      _
    $region11: #{tpu_custom_call.1} parent=1 // pred_check_branch
      %18 = sbr.rel (0) target = $region13
    $region12: #{tpu_custom_call.1} parent=1 // pred_region
      _
    $region13: #{tpu_custom_call.1} parent=1 // pred_fallthru
      _
    // Predicated region
    $region14: #{tpu_custom_call.1} parent=1 // pred_check
      _
    $region15: #{tpu_custom_call.1} parent=1 // pred_check_branch
      %20 = sbr.rel (0) target = $region17
    $region16: #{tpu_custom_call.1} parent=1 // pred_region
      _
    $region17: #{tpu_custom_call.1} parent=1 // pred_fallthru
      _
    // Predicated region
    $region18: #{tpu_custom_call.1} parent=1 // pred_check
      _
    $region19: #{tpu_custom_call.1} parent=1 // pred_check_branch
      %22 = sbr.rel (0) target = $region21
    $region20: #{tpu_custom_call.1} parent=1 // pred_region
      _
    $region21: #{tpu_custom_call.1} parent=1 // pred_fallthru
      _
    // Predicated region
    $region22: #{tpu_custom_call.1} parent=1 // pred_check
      _
    $region23: #{tpu_custom_call.1} parent=1 // pred_check_branch
      %24 = sbr.rel (0) target = $region25
    $region24: #{tpu_custom_call.1} parent=1 // pred_region
      _
    $region25: #{tpu_custom_call.1} parent=1 // pred_fallthru
      _
    // Predicated region
    $region26: #{tpu_custom_call.1} parent=1 // pred_check
      _
    $region27: #{tpu_custom_call.1} parent=1 // pred_check_branch
      %26 = sbr.rel (0) target = $region29
    $region28: #{tpu_custom_call.1} parent=1 // pred_region
      _
    $region29: #{tpu_custom_call.1} parent=1 // pred_fallthru
      _
    %v27 = vld [vmem:[%s0] sm:$0xff]
    %v28 = vld [vmem:[%s0 + $0x8] sm:$0xff]
    %v29 = vld [vmem:[%s1] sm:$0xff]
    %v30 = vld [vmem:[%s1 + $0x8] sm:$0xff]
    %v31 = vld [vmem:[%s6] sm:$0x7f]
    %v32 = vld [vmem:[%s2] sm:$0xff]
    %v33 = vld [vmem:[%s2 + $0x8] sm:$0xff]
    %v34 = vld [vmem:[%s2 + $0x10] sm:$0xff]
    %v35 = vld [vmem:[%s2 + $0x18] sm:$0xff]
    %v36 = vld [vmem:[%s2 + $0x20] sm:$0xff]
    %v37 = vld [vmem:[%s2 + $0x28] sm:$0xff]
    %v38 = vld [vmem:[%s2 + $0x30] sm:$0xff]
    %v39 = vld [vmem:[%s2 + $0x38] sm:$0xff]
    %v40 = vld [vmem:[%s2 + $0x40] sm:$0xff]
    %v41 = vld [vmem:[%s2 + $0x48] sm:$0xff]
    %v42 = vld [vmem:[%s2 + $0x50] sm:$0xff]
    %v43 = vld [vmem:[%s2 + $0x58] sm:$0xff]
    %v44 = vld [vmem:[%s2 + $0x60] sm:$0xff]
    %v45 = vld [vmem:[%s2 + $0x68] sm:$0xff]
    %v46 = vld [vmem:[%s2 + $0x70] sm:$0xff]
    %v47 = vld [vmem:[%s2 + $0x78] sm:$0xff]
    %v48 = vld [vmem:[%s3] sm:$0x1]
    %v49 = vld [vmem:[%s3 + $0x1] sm:$0x1]
    %v50 = vld [vmem:[%s3 + $0x2] sm:$0x1]
    %v51 = vld [vmem:[%s3 + $0x3] sm:$0x1]
    %v52 = vld [vmem:[%s3 + $0x4] sm:$0x1]
    %v53 = vld [vmem:[%s3 + $0x5] sm:$0x1]
    %v54 = vld [vmem:[%s3 + $0x6] sm:$0x1]
    %v55 = vld [vmem:[%s3 + $0x7] sm:$0x1]
    %v64 = vlaneseq
    %v65 = vshrl.u32 %v64, 7
    %v66 = vsub.s32 0, %v65
    %v67 = vrot.slane %v48, %v66
    %v68 = vlaneseq
    %v69 = vshrl.u32 %v68, 7
    %v70 = vsub.s32 0, %v69
    %v71 = vrot.slane %v49, %v70
    %v72 = vlaneseq
    %v73 = vshrl.u32 %v72, 7
    %v74 = vsub.s32 0, %v73
    %v75 = vrot.slane %v50, %v74
    %v76 = vlaneseq
    %v77 = vshrl.u32 %v76, 7
    %v78 = vsub.s32 0, %v77
    %v79 = vrot.slane %v51, %v78
    %v80 = vlaneseq
    %v81 = vshrl.u32 %v80, 7
    %v82 = vsub.s32 0, %v81
    %v83 = vrot.slane %v52, %v82
    %v84 = vlaneseq
    %v85 = vshrl.u32 %v84, 7
    %v86 = vsub.s32 0, %v85
    %v87 = vrot.slane %v53, %v86
    %v88 = vlaneseq
    %v89 = vshrl.u32 %v88, 7
    %v90 = vsub.s32 0, %v89
    %v91 = vrot.slane %v54, %v90
    %v92 = vlaneseq
    %v93 = vshrl.u32 %v92, 7
    %v94 = vsub.s32 0, %v93
    %v95 = vrot.slane %v55, %v94
    %vm104 = vcmask 261120
    %v106 = vsel %vm104, %v27, 0
    %108 = vmatprep.subr.mxu0 0.0
    %109 = vmatpush1.msra.mxu0 %v32
    %110 = vmatprep.subr.mxu0 0.0
    %111 = vmatpush1.msra.mxu0 %v33
    %112 = vmatprep.subr.mxu0 0.0
    %113 = vmatpush1.msra.mxu0 %v34
    %114 = vmatprep.subr.mxu0 0.0
    %115 = vmatpush1.msra.mxu0 %v35
    %116 = vmatprep.subr.mxu0 0.0
    %117 = vmatpush1.msra.mxu0 0.0
    %118 = vmatprep.subr.mxu0 0.0
    %119 = vmatpush1.msra.mxu0 0.0
    %120 = vmatprep.subr.mxu0 0.0
    %121 = vmatpush1.msra.mxu0 0.0
    %122 = vmatprep.subr.mxu0 0.0
    %123 = vmatpush1.msra.mxu0 0.0
    %124 = vmatprep.subr.mxu0 0.0
    %125 = vmatpush1.msra.mxu0 0.0
    %126 = vmatprep.subr.mxu0 0.0
    %127 = vmatpush1.msra.mxu0 0.0
    %128 = vmatprep.subr.mxu0 0.0
    %129 = vmatpush1.msra.mxu0 0.0
    %130 = vmatprep.subr.mxu0 0.0
    %131 = vmatpush1.msra.mxu0 0.0
    %132 = vmatprep.subr.mxu0 0.0
    %133 = vmatpush1.msra.mxu0 0.0
    %134 = vmatprep.subr.mxu0 0.0
    %135 = vmatpush1.msra.mxu0 0.0
    %136 = vmatprep.subr.mxu0 0.0
    %137 = vmatpush1.msra.mxu0 0.0
    %138 = vmatprep.subr.mxu0 0.0
    %139 = vmatpush1.msra.mxu0 0.0
    %140 = vmatprep.subr.mxu0 0.0
    %141 = vmatpush1.msra.mxu0 0.0
    %142 = vmatprep.subr.mxu0 0.0
    %143 = vmatpush1.msra.mxu0 0.0
    %144 = vmatprep.subr.mxu0 0.0
    %145 = vmatpush1.msra.mxu0 0.0
    %146 = vmatprep.subr.mxu0 0.0
    %147 = vmatpush1.msra.mxu0 0.0
    %148 = vmatprep.subr.mxu0 0.0
    %149 = vmatpush1.msra.mxu0 0.0
    %150 = vmatprep.subr.mxu0 0.0
    %151 = vmatpush1.msra.mxu0 0.0
    %152 = vmatprep.subr.mxu0 0.0
    %153 = vmatpush1.msra.mxu0 0.0
    %154 = vmatprep.subr.mxu0 0.0
    %155 = vmatpush1.msra.mxu0 0.0
    %156 = vmatprep.subr.mxu0 0.0
    %157 = vmatpush1.msra.mxu0 0.0
    %158 = vmatprep.subr.mxu0 0.0
    %159 = vmatpush1.msra.mxu0 0.0
    %160 = vmatprep.subr.mxu0 0.0
    %161 = vmatpush1.msra.mxu0 0.0
    %162 = vmatprep.subr.mxu0 0.0
    %163 = vmatpush1.msra.mxu0 0.0
    %164 = vmatprep.subr.mxu0 0.0
    %165 = vmatpush1.msra.mxu0 0.0
    %166 = vmatprep.subr.mxu0 0.0
    %167 = vmatpush1.msra.mxu0 0.0
    %168 = vmatprep.subr.mxu0 0.0
    %169 = vmatpush1.msra.mxu0 0.0
    %170 = vmatprep.subr.mxu0 0.0
    %171 = vmatpush1.msra.mxu0 0.0
    %172 = vmatprep.mubr.f32.mxu0 0.0
    %173 = vmatmul.mubr.f32.gmra.mrb[0].mxu0 %v106
    %v174 = vpop.f32.mrb[0].mxu0
    %v175 = vadd.f32 %v67, %v174
    %v176 = vpop.f32.mrb[0].mxu0
    %177 = vdwg.mxu0
    %178 = vmatprep.subr.mxu0 0.0
    %179 = vmatpush1.msra.mxu0 %v36
    %180 = vmatprep.subr.mxu0 0.0
    %181 = vmatpush1.msra.mxu0 %v37
    %182 = vmatprep.subr.mxu0 0.0
    %183 = vmatpush1.msra.mxu0 %v38
    %184 = vmatprep.subr.mxu0 0.0
    %185 = vmatpush1.msra.mxu0 %v39
    %186 = vmatprep.subr.mxu0 0.0
    %187 = vmatpush1.msra.mxu0 0.0
    %188 = vmatprep.subr.mxu0 0.0
    %189 = vmatpush1.msra.mxu0 0.0
    %190 = vmatprep.subr.mxu0 0.0
    %191 = vmatpush1.msra.mxu0 0.0
    %192 = vmatprep.subr.mxu0 0.0
    %193 = vmatpush1.msra.mxu0 0.0
    %194 = vmatprep.subr.mxu0 0.0
    %195 = vmatpush1.msra.mxu0 0.0
    %196 = vmatprep.subr.mxu0 0.0
    %197 = vmatpush1.msra.mxu0 0.0
    %198 = vmatprep.subr.mxu0 0.0
    %199 = vmatpush1.msra.mxu0 0.0
    %200 = vmatprep.subr.mxu0 0.0
    %201 = vmatpush1.msra.mxu0 0.0
    %202 = vmatprep.subr.mxu0 0.0
    %203 = vmatpush1.msra.mxu0 0.0
    %204 = vmatprep.subr.mxu0 0.0
    %205 = vmatpush1.msra.mxu0 0.0
    %206 = vmatprep.subr.mxu0 0.0
    %207 = vmatpush1.msra.mxu0 0.0
    %208 = vmatprep.subr.mxu0 0.0
    %209 = vmatpush1.msra.mxu0 0.0
    %210 = vmatprep.subr.mxu0 0.0
    %211 = vmatpush1.msra.mxu0 0.0
    %212 = vmatprep.subr.mxu0 0.0
    %213 = vmatpush1.msra.mxu0 0.0
    %214 = vmatprep.subr.mxu0 0.0
    %215 = vmatpush1.msra.mxu0 0.0
    %216 = vmatprep.subr.mxu0 0.0
    %217 = vmatpush1.msra.mxu0 0.0
    %218 = vmatprep.subr.mxu0 0.0
    %219 = vmatpush1.msra.mxu0 0.0
    %220 = vmatprep.subr.mxu0 0.0
    %221 = vmatpush1.msra.mxu0 0.0
    %222 = vmatprep.subr.mxu0 0.0
    %223 = vmatpush1.msra.mxu0 0.0
    %224 = vmatprep.subr.mxu0 0.0
    %225 = vmatpush1.msra.mxu0 0.0
    %226 = vmatprep.subr.mxu0 0.0
    %227 = vmatpush1.msra.mxu0 0.0
    %228 = vmatprep.subr.mxu0 0.0
    %229 = vmatpush1.msra.mxu0 0.0
    %230 = vmatprep.subr.mxu0 0.0
    %231 = vmatpush1.msra.mxu0 0.0
    %232 = vmatprep.subr.mxu0 0.0
    %233 = vmatpush1.msra.mxu0 0.0
    %234 = vmatprep.subr.mxu0 0.0
    %235 = vmatpush1.msra.mxu0 0.0
    %236 = vmatprep.subr.mxu0 0.0
    %237 = vmatpush1.msra.mxu0 0.0
    %238 = vmatprep.subr.mxu0 0.0
    %239 = vmatpush1.msra.mxu0 0.0
    %240 = vmatprep.subr.mxu0 0.0
    %241 = vmatpush1.msra.mxu0 0.0
    %242 = vmatprep.mubr.f32.mxu0 0.0
    %243 = vmatmul.mubr.f32.gmra.mrb[0].mxu0 %v106
    %v244 = vpop.f32.mrb[0].mxu0
    %v245 = vadd.f32 %v71, %v244
    %v246 = vpop.f32.mrb[0].mxu0
    %247 = vdwg.mxu0
    %248 = vmatprep.subr.mxu0 0.0
    %249 = vmatpush1.msra.mxu0 %v40
    %250 = vmatprep.subr.mxu0 0.0
    %251 = vmatpush1.msra.mxu0 %v41
    %252 = vmatprep.subr.mxu0 0.0
    %253 = vmatpush1.msra.mxu0 %v42
    %254 = vmatprep.subr.mxu0 0.0
    %255 = vmatpush1.msra.mxu0 %v43
    %256 = vmatprep.subr.mxu0 0.0
    %257 = vmatpush1.msra.mxu0 0.0
    %258 = vmatprep.subr.mxu0 0.0
    %259 = vmatpush1.msra.mxu0 0.0
    %260 = vmatprep.subr.mxu0 0.0
    %261 = vmatpush1.msra.mxu0 0.0
    %262 = vmatprep.subr.mxu0 0.0
    %263 = vmatpush1.msra.mxu0 0.0
    %264 = vmatprep.subr.mxu0 0.0
    %265 = vmatpush1.msra.mxu0 0.0
    %266 = vmatprep.subr.mxu0 0.0
    %267 = vmatpush1.msra.mxu0 0.0
    %268 = vmatprep.subr.mxu0 0.0
    %269 = vmatpush1.msra.mxu0 0.0
    %270 = vmatprep.subr.mxu0 0.0
    %271 = vmatpush1.msra.mxu0 0.0
    %272 = vmatprep.subr.mxu0 0.0
    %273 = vmatpush1.msra.mxu0 0.0
    %274 = vmatprep.subr.mxu0 0.0
    %275 = vmatpush1.msra.mxu0 0.0
    %276 = vmatprep.subr.mxu0 0.0
    %277 = vmatpush1.msra.mxu0 0.0
    %278 = vmatprep.subr.mxu0 0.0
    %279 = vmatpush1.msra.mxu0 0.0
    %280 = vmatprep.subr.mxu0 0.0
    %281 = vmatpush1.msra.mxu0 0.0
    %282 = vmatprep.subr.mxu0 0.0
    %283 = vmatpush1.msra.mxu0 0.0
    %284 = vmatprep.subr.mxu0 0.0
    %285 = vmatpush1.msra.mxu0 0.0
    %286 = vmatprep.subr.mxu0 0.0
    %287 = vmatpush1.msra.mxu0 0.0
    %288 = vmatprep.subr.mxu0 0.0
    %289 = vmatpush1.msra.mxu0 0.0
    %290 = vmatprep.subr.mxu0 0.0
    %291 = vmatpush1.msra.mxu0 0.0
    %292 = vmatprep.subr.mxu0 0.0
    %293 = vmatpush1.msra.mxu0 0.0
    %294 = vmatprep.subr.mxu0 0.0
    %295 = vmatpush1.msra.mxu0 0.0
    %296 = vmatprep.subr.mxu0 0.0
    %297 = vmatpush1.msra.mxu0 0.0
    %298 = vmatprep.subr.mxu0 0.0
    %299 = vmatpush1.msra.mxu0 0.0
    %300 = vmatprep.subr.mxu0 0.0
    %301 = vmatpush1.msra.mxu0 0.0
    %302 = vmatprep.subr.mxu0 0.0
    %303 = vmatpush1.msra.mxu0 0.0
    %304 = vmatprep.subr.mxu0 0.0
    %305 = vmatpush1.msra.mxu0 0.0
    %306 = vmatprep.subr.mxu0 0.0
    %307 = vmatpush1.msra.mxu0 0.0
    %308 = vmatprep.subr.mxu0 0.0
    %309 = vmatpush1.msra.mxu0 0.0
    %310 = vmatprep.subr.mxu0 0.0
    %311 = vmatpush1.msra.mxu0 0.0
    %312 = vmatprep.mubr.f32.mxu0 0.0
    %313 = vmatmul.mubr.f32.gmra.mrb[0].mxu0 %v106
    %v314 = vpop.f32.mrb[0].mxu0
    %v315 = vadd.f32 %v75, %v314
    %v316 = vpop.f32.mrb[0].mxu0
    %317 = vdwg.mxu0
    %318 = vmatprep.subr.mxu0 0.0
    %319 = vmatpush1.msra.mxu0 %v44
    %320 = vmatprep.subr.mxu0 0.0
    %321 = vmatpush1.msra.mxu0 %v45
    %322 = vmatprep.subr.mxu0 0.0
    %323 = vmatpush1.msra.mxu0 %v46
    %324 = vmatprep.subr.mxu0 0.0
    %325 = vmatpush1.msra.mxu0 %v47
    %326 = vmatprep.subr.mxu0 0.0
    %327 = vmatpush1.msra.mxu0 0.0
    %328 = vmatprep.subr.mxu0 0.0
    %329 = vmatpush1.msra.mxu0 0.0
    %330 = vmatprep.subr.mxu0 0.0
    %331 = vmatpush1.msra.mxu0 0.0
    %332 = vmatprep.subr.mxu0 0.0
    %333 = vmatpush1.msra.mxu0 0.0
    %334 = vmatprep.subr.mxu0 0.0
    %335 = vmatpush1.msra.mxu0 0.0
    %336 = vmatprep.subr.mxu0 0.0
    %337 = vmatpush1.msra.mxu0 0.0
    %338 = vmatprep.subr.mxu0 0.0
    %339 = vmatpush1.msra.mxu0 0.0
    %340 = vmatprep.subr.mxu0 0.0
    %341 = vmatpush1.msra.mxu0 0.0
    %342 = vmatprep.subr.mxu0 0.0
    %343 = vmatpush1.msra.mxu0 0.0
    %344 = vmatprep.subr.mxu0 0.0
    %345 = vmatpush1.msra.mxu0 0.0
    %346 = vmatprep.subr.mxu0 0.0
    %347 = vmatpush1.msra.mxu0 0.0
    %348 = vmatprep.subr.mxu0 0.0
    %349 = vmatpush1.msra.mxu0 0.0
    %350 = vmatprep.subr.mxu0 0.0
    %351 = vmatpush1.msra.mxu0 0.0
    %352 = vmatprep.subr.mxu0 0.0
    %353 = vmatpush1.msra.mxu0 0.0
    %354 = vmatprep.subr.mxu0 0.0
    %355 = vmatpush1.msra.mxu0 0.0
    %356 = vmatprep.subr.mxu0 0.0
    %357 = vmatpush1.msra.mxu0 0.0
    %358 = vmatprep.subr.mxu0 0.0
    %359 = vmatpush1.msra.mxu0 0.0
    %360 = vmatprep.subr.mxu0 0.0
    %361 = vmatpush1.msra.mxu0 0.0
    %362 = vmatprep.subr.mxu0 0.0
    %363 = vmatpush1.msra.mxu0 0.0
    %364 = vmatprep.subr.mxu0 0.0
    %365 = vmatpush1.msra.mxu0 0.0
    %366 = vmatprep.subr.mxu0 0.0
    %367 = vmatpush1.msra.mxu0 0.0
    %368 = vmatprep.subr.mxu0 0.0
    %369 = vmatpush1.msra.mxu0 0.0
    %370 = vmatprep.subr.mxu0 0.0
    %371 = vmatpush1.msra.mxu0 0.0
    %372 = vmatprep.subr.mxu0 0.0
    %373 = vmatpush1.msra.mxu0 0.0
    %374 = vmatprep.subr.mxu0 0.0
    %375 = vmatpush1.msra.mxu0 0.0
    %376 = vmatprep.subr.mxu0 0.0
    %377 = vmatpush1.msra.mxu0 0.0
    %378 = vmatprep.subr.mxu0 0.0
    %379 = vmatpush1.msra.mxu0 0.0
    %380 = vmatprep.subr.mxu0 0.0
    %381 = vmatpush1.msra.mxu0 0.0
    %382 = vmatprep.mubr.f32.mxu0 0.0
    %383 = vmatmul.mubr.f32.gmra.mrb[0].mxu0 %v106
    %v384 = vpop.f32.mrb[0].mxu0
    %v385 = vadd.f32 %v79, %v384
    %v386 = vpop.f32.mrb[0].mxu0
    %387 = vdwg.mxu0
    %v389 = vsel %vm104, %v28, 0
    %391 = vmatprep.subr.mxu0 0.0
    %392 = vmatpush1.msra.mxu0 %v32
    %393 = vmatprep.subr.mxu0 0.0
    %394 = vmatpush1.msra.mxu0 %v33
    %395 = vmatprep.subr.mxu0 0.0
    %396 = vmatpush1.msra.mxu0 %v34
    %397 = vmatprep.subr.mxu0 0.0
    %398 = vmatpush1.msra.mxu0 %v35
    %399 = vmatprep.subr.mxu0 0.0
    %400 = vmatpush1.msra.mxu0 0.0
    %401 = vmatprep.subr.mxu0 0.0
    %402 = vmatpush1.msra.mxu0 0.0
    %403 = vmatprep.subr.mxu0 0.0
    %404 = vmatpush1.msra.mxu0 0.0
    %405 = vmatprep.subr.mxu0 0.0
    %406 = vmatpush1.msra.mxu0 0.0
    %407 = vmatprep.subr.mxu0 0.0
    %408 = vmatpush1.msra.mxu0 0.0
    %409 = vmatprep.subr.mxu0 0.0
    %410 = vmatpush1.msra.mxu0 0.0
    %411 = vmatprep.subr.mxu0 0.0
    %412 = vmatpush1.msra.mxu0 0.0
    %413 = vmatprep.subr.mxu0 0.0
    %414 = vmatpush1.msra.mxu0 0.0
    %415 = vmatprep.subr.mxu0 0.0
    %416 = vmatpush1.msra.mxu0 0.0
    %417 = vmatprep.subr.mxu0 0.0
    %418 = vmatpush1.msra.mxu0 0.0
    %419 = vmatprep.subr.mxu0 0.0
    %420 = vmatpush1.msra.mxu0 0.0
    %421 = vmatprep.subr.mxu0 0.0
    %422 = vmatpush1.msra.mxu0 0.0
    %423 = vmatprep.subr.mxu0 0.0
    %424 = vmatpush1.msra.mxu0 0.0
    %425 = vmatprep.subr.mxu0 0.0
    %426 = vmatpush1.msra.mxu0 0.0
    %427 = vmatprep.subr.mxu0 0.0
    %428 = vmatpush1.msra.mxu0 0.0
    %429 = vmatprep.subr.mxu0 0.0
    %430 = vmatpush1.msra.mxu0 0.0
    %431 = vmatprep.subr.mxu0 0.0
    %432 = vmatpush1.msra.mxu0 0.0
    %433 = vmatprep.subr.mxu0 0.0
    %434 = vmatpush1.msra.mxu0 0.0
    %435 = vmatprep.subr.mxu0 0.0
    %436 = vmatpush1.msra.mxu0 0.0
    %437 = vmatprep.subr.mxu0 0.0
    %438 = vmatpush1.msra.mxu0 0.0
    %439 = vmatprep.subr.mxu0 0.0
    %440 = vmatpush1.msra.mxu0 0.0
    %441 = vmatprep.subr.mxu0 0.0
    %442 = vmatpush1.msra.mxu0 0.0
    %443 = vmatprep.subr.mxu0 0.0
    %444 = vmatpush1.msra.mxu0 0.0
    %445 = vmatprep.subr.mxu0 0.0
    %446 = vmatpush1.msra.mxu0 0.0
    %447 = vmatprep.subr.mxu0 0.0
    %448 = vmatpush1.msra.mxu0 0.0
    %449 = vmatprep.subr.mxu0 0.0
    %450 = vmatpush1.msra.mxu0 0.0
    %451 = vmatprep.subr.mxu0 0.0
    %452 = vmatpush1.msra.mxu0 0.0
    %453 = vmatprep.subr.mxu0 0.0
    %454 = vmatpush1.msra.mxu0 0.0
    %455 = vmatprep.mubr.f32.mxu0 0.0
    %456 = vmatmul.mubr.f32.gmra.mrb[0].mxu0 %v389
    %v457 = vpop.f32.mrb[0].mxu0
    %v458 = vadd.f32 %v83, %v457
    %v459 = vpop.f32.mrb[0].mxu0
    %460 = vdwg.mxu0
    %461 = vmatprep.subr.mxu0 0.0
    %462 = vmatpush1.msra.mxu0 %v36
    %463 = vmatprep.subr.mxu0 0.0
    %464 = vmatpush1.msra.mxu0 %v37
    %465 = vmatprep.subr.mxu0 0.0
    %466 = vmatpush1.msra.mxu0 %v38
    %467 = vmatprep.subr.mxu0 0.0
    %468 = vmatpush1.msra.mxu0 %v39
    %469 = vmatprep.subr.mxu0 0.0
    %470 = vmatpush1.msra.mxu0 0.0
    %471 = vmatprep.subr.mxu0 0.0
    %472 = vmatpush1.msra.mxu0 0.0
    %473 = vmatprep.subr.mxu0 0.0
    %474 = vmatpush1.msra.mxu0 0.0
    %475 = vmatprep.subr.mxu0 0.0
    %476 = vmatpush1.msra.mxu0 0.0
    %477 = vmatprep.subr.mxu0 0.0
    %478 = vmatpush1.msra.mxu0 0.0
    %479 = vmatprep.subr.mxu0 0.0
    %480 = vmatpush1.msra.mxu0 0.0
    %481 = vmatprep.subr.mxu0 0.0
    %482 = vmatpush1.msra.mxu0 0.0
    %483 = vmatprep.subr.mxu0 0.0
    %484 = vmatpush1.msra.mxu0 0.0
    %485 = vmatprep.subr.mxu0 0.0
    %486 = vmatpush1.msra.mxu0 0.0
    %487 = vmatprep.subr.mxu0 0.0
    %488 = vmatpush1.msra.mxu0 0.0
    %489 = vmatprep.subr.mxu0 0.0
    %490 = vmatpush1.msra.mxu0 0.0
    %491 = vmatprep.subr.mxu0 0.0
    %492 = vmatpush1.msra.mxu0 0.0
    %493 = vmatprep.subr.mxu0 0.0
    %494 = vmatpush1.msra.mxu0 0.0
    %495 = vmatprep.subr.mxu0 0.0
    %496 = vmatpush1.msra.mxu0 0.0
    %497 = vmatprep.subr.mxu0 0.0
    %498 = vmatpush1.msra.mxu0 0.0
    %499 = vmatprep.subr.mxu0 0.0
    %500 = vmatpush1.msra.mxu0 0.0
    %501 = vmatprep.subr.mxu0 0.0
    %502 = vmatpush1.msra.mxu0 0.0
    %503 = vmatprep.subr.mxu0 0.0
    %504 = vmatpush1.msra.mxu0 0.0
    %505 = vmatprep.subr.mxu0 0.0
    %506 = vmatpush1.msra.mxu0 0.0
    %507 = vmatprep.subr.mxu0 0.0
    %508 = vmatpush1.msra.mxu0 0.0
    %509 = vmatprep.subr.mxu0 0.0
    %510 = vmatpush1.msra.mxu0 0.0
    %511 = vmatprep.subr.mxu0 0.0
    %512 = vmatpush1.msra.mxu0 0.0
    %513 = vmatprep.subr.mxu0 0.0
    %514 = vmatpush1.msra.mxu0 0.0
    %515 = vmatprep.subr.mxu0 0.0
    %516 = vmatpush1.msra.mxu0 0.0
    %517 = vmatprep.subr.mxu0 0.0
    %518 = vmatpush1.msra.mxu0 0.0
    %519 = vmatprep.subr.mxu0 0.0
    %520 = vmatpush1.msra.mxu0 0.0
    %521 = vmatprep.subr.mxu0 0.0
    %522 = vmatpush1.msra.mxu0 0.0
    %523 = vmatprep.subr.mxu0 0.0
    %524 = vmatpush1.msra.mxu0 0.0
    %525 = vmatprep.mubr.f32.mxu0 0.0
    %526 = vmatmul.mubr.f32.gmra.mrb[0].mxu0 %v389
    %v527 = vpop.f32.mrb[0].mxu0
    %v528 = vadd.f32 %v87, %v527
    %v529 = vpop.f32.mrb[0].mxu0
    %530 = vdwg.mxu0
    %531 = vmatprep.subr.mxu0 0.0
    %532 = vmatpush1.msra.mxu0 %v40
    %533 = vmatprep.subr.mxu0 0.0
    %534 = vmatpush1.msra.mxu0 %v41
    %535 = vmatprep.subr.mxu0 0.0
    %536 = vmatpush1.msra.mxu0 %v42
    %537 = vmatprep.subr.mxu0 0.0
    %538 = vmatpush1.msra.mxu0 %v43
    %539 = vmatprep.subr.mxu0 0.0
    %540 = vmatpush1.msra.mxu0 0.0
    %541 = vmatprep.subr.mxu0 0.0
    %542 = vmatpush1.msra.mxu0 0.0
    %543 = vmatprep.subr.mxu0 0.0
    %544 = vmatpush1.msra.mxu0 0.0
    %545 = vmatprep.subr.mxu0 0.0
    %546 = vmatpush1.msra.mxu0 0.0
    %547 = vmatprep.subr.mxu0 0.0
    %548 = vmatpush1.msra.mxu0 0.0
    %549 = vmatprep.subr.mxu0 0.0
    %550 = vmatpush1.msra.mxu0 0.0
    %551 = vmatprep.subr.mxu0 0.0
    %552 = vmatpush1.msra.mxu0 0.0
    %553 = vmatprep.subr.mxu0 0.0
    %554 = vmatpush1.msra.mxu0 0.0
    %555 = vmatprep.subr.mxu0 0.0
    %556 = vmatpush1.msra.mxu0 0.0
    %557 = vmatprep.subr.mxu0 0.0
    %558 = vmatpush1.msra.mxu0 0.0
    %559 = vmatprep.subr.mxu0 0.0
    %560 = vmatpush1.msra.mxu0 0.0
    %561 = vmatprep.subr.mxu0 0.0
    %562 = vmatpush1.msra.mxu0 0.0
    %563 = vmatprep.subr.mxu0 0.0
    %564 = vmatpush1.msra.mxu0 0.0
    %565 = vmatprep.subr.mxu0 0.0
    %566 = vmatpush1.msra.mxu0 0.0
    %567 = vmatprep.subr.mxu0 0.0
    %568 = vmatpush1.msra.mxu0 0.0
    %569 = vmatprep.subr.mxu0 0.0
    %570 = vmatpush1.msra.mxu0 0.0
    %571 = vmatprep.subr.mxu0 0.0
    %572 = vmatpush1.msra.mxu0 0.0
    %573 = vmatprep.subr.mxu0 0.0
    %574 = vmatpush1.msra.mxu0 0.0
    %575 = vmatprep.subr.mxu0 0.0
    %576 = vmatpush1.msra.mxu0 0.0
    %577 = vmatprep.subr.mxu0 0.0
    %578 = vmatpush1.msra.mxu0 0.0
    %579 = vmatprep.subr.mxu0 0.0
    %580 = vmatpush1.msra.mxu0 0.0
    %581 = vmatprep.subr.mxu0 0.0
    %582 = vmatpush1.msra.mxu0 0.0
    %583 = vmatprep.subr.mxu0 0.0
    %584 = vmatpush1.msra.mxu0 0.0
    %585 = vmatprep.subr.mxu0 0.0
    %586 = vmatpush1.msra.mxu0 0.0
    %587 = vmatprep.subr.mxu0 0.0
    %588 = vmatpush1.msra.mxu0 0.0
    %589 = vmatprep.subr.mxu0 0.0
    %590 = vmatpush1.msra.mxu0 0.0
    %591 = vmatprep.subr.mxu0 0.0
    %592 = vmatpush1.msra.mxu0 0.0
    %593 = vmatprep.subr.mxu0 0.0
    %594 = vmatpush1.msra.mxu0 0.0
    %595 = vmatprep.mubr.f32.mxu0 0.0
    %596 = vmatmul.mubr.f32.gmra.mrb[0].mxu0 %v389
    %v597 = vpop.f32.mrb[0].mxu0
    %v598 = vadd.f32 %v91, %v597
    %v599 = vpop.f32.mrb[0].mxu0
    %600 = vdwg.mxu0
    %601 = vmatprep.subr.mxu0 0.0
    %602 = vmatpush1.msra.mxu0 %v44
    %603 = vmatprep.subr.mxu0 0.0
    %604 = vmatpush1.msra.mxu0 %v45
    %605 = vmatprep.subr.mxu0 0.0
    %606 = vmatpush1.msra.mxu0 %v46
    %607 = vmatprep.subr.mxu0 0.0
    %608 = vmatpush1.msra.mxu0 %v47
    %609 = vmatprep.subr.mxu0 0.0
    %610 = vmatpush1.msra.mxu0 0.0
    %611 = vmatprep.subr.mxu0 0.0
    %612 = vmatpush1.msra.mxu0 0.0
    %613 = vmatprep.subr.mxu0 0.0
    %614 = vmatpush1.msra.mxu0 0.0
    %615 = vmatprep.subr.mxu0 0.0
    %616 = vmatpush1.msra.mxu0 0.0
    %617 = vmatprep.subr.mxu0 0.0
    %618 = vmatpush1.msra.mxu0 0.0
    %619 = vmatprep.subr.mxu0 0.0
    %620 = vmatpush1.msra.mxu0 0.0
    %621 = vmatprep.subr.mxu0 0.0
    %622 = vmatpush1.msra.mxu0 0.0
    %623 = vmatprep.subr.mxu0 0.0
    %624 = vmatpush1.msra.mxu0 0.0
    %625 = vmatprep.subr.mxu0 0.0
    %626 = vmatpush1.msra.mxu0 0.0
    %627 = vmatprep.subr.mxu0 0.0
    %628 = vmatpush1.msra.mxu0 0.0
    %629 = vmatprep.subr.mxu0 0.0
    %630 = vmatpush1.msra.mxu0 0.0
    %631 = vmatprep.subr.mxu0 0.0
    %632 = vmatpush1.msra.mxu0 0.0
    %633 = vmatprep.subr.mxu0 0.0
    %634 = vmatpush1.msra.mxu0 0.0
    %635 = vmatprep.subr.mxu0 0.0
    %636 = vmatpush1.msra.mxu0 0.0
    %637 = vmatprep.subr.mxu0 0.0
    %638 = vmatpush1.msra.mxu0 0.0
    %639 = vmatprep.subr.mxu0 0.0
    %640 = vmatpush1.msra.mxu0 0.0
    %641 = vmatprep.subr.mxu0 0.0
    %642 = vmatpush1.msra.mxu0 0.0
    %643 = vmatprep.subr.mxu0 0.0
    %644 = vmatpush1.msra.mxu0 0.0
    %645 = vmatprep.subr.mxu0 0.0
    %646 = vmatpush1.msra.mxu0 0.0
    %647 = vmatprep.subr.mxu0 0.0
    %648 = vmatpush1.msra.mxu0 0.0
    %649 = vmatprep.subr.mxu0 0.0
    %650 = vmatpush1.msra.mxu0 0.0
    %651 = vmatprep.subr.mxu0 0.0
    %652 = vmatpush1.msra.mxu0 0.0
    %653 = vmatprep.subr.mxu0 0.0
    %654 = vmatpush1.msra.mxu0 0.0
    %655 = vmatprep.subr.mxu0 0.0
    %656 = vmatpush1.msra.mxu0 0.0
    %657 = vmatprep.subr.mxu0 0.0
    %658 = vmatpush1.msra.mxu0 0.0
    %659 = vmatprep.subr.mxu0 0.0
    %660 = vmatpush1.msra.mxu0 0.0
    %661 = vmatprep.subr.mxu0 0.0
    %662 = vmatpush1.msra.mxu0 0.0
    %663 = vmatprep.subr.mxu0 0.0
    %664 = vmatpush1.msra.mxu0 0.0
    %665 = vmatprep.mubr.f32.mxu0 0.0
    %666 = vmatmul.mubr.f32.gmra.mrb[0].mxu0 %v389
    %v667 = vpop.f32.mrb[0].mxu0
    %v668 = vadd.f32 %v95, %v667
    %v669 = vpop.f32.mrb[0].mxu0
    %670 = vdwg.mxu0
    %672 = vrot.lane.b32.xlu0 %v175, 120
    %v673 = vpop.permute.xlu0 %672
    %vm674 = vcmask 64512
    %v675 = vsel %vm674, %v175, 0
    %v677 = vsel %vm674, %v673, 0
    %679 = vmatprep.subr.mxu0 0.0
    %680 = vmatpush1.xpose.msra.mxu0 %v677
    %681 = vmatprep.subr.mxu0 0.0
    %682 = vmatpush1.xpose.msra.mxu0 0.0
    %683 = vmatprep.subr.mxu0 0.0
    %684 = vmatpush1.xpose.msra.mxu0 0.0
    %685 = vmatprep.subr.mxu0 0.0
    %686 = vmatpush1.xpose.msra.mxu0 0.0
    %687 = vmatprep.subr.mxu0 0.0
    %688 = vmatpush1.xpose.msra.mxu0 0.0
    %689 = vmatprep.subr.mxu0 0.0
    %690 = vmatpush1.xpose.msra.mxu0 0.0
    %691 = vmatprep.subr.mxu0 0.0
    %692 = vmatpush1.xpose.msra.mxu0 0.0
    %693 = vmatprep.subr.mxu0 0.0
    %694 = vmatpush1.xpose.msra.mxu0 0.0
    %695 = vmatprep.subr.mxu0 0.0
    %696 = vmatpush1.xpose.msra.mxu0 0.0
    %697 = vmatprep.subr.mxu0 0.0
    %698 = vmatpush1.xpose.msra.mxu0 0.0
    %699 = vmatprep.subr.mxu0 0.0
    %700 = vmatpush1.xpose.msra.mxu0 0.0
    %701 = vmatprep.subr.mxu0 0.0
    %702 = vmatpush1.xpose.msra.mxu0 0.0
    %703 = vmatprep.subr.mxu0 0.0
    %704 = vmatpush1.xpose.msra.mxu0 0.0
    %705 = vmatprep.subr.mxu0 0.0
    %706 = vmatpush1.xpose.msra.mxu0 0.0
    %707 = vmatprep.subr.mxu0 0.0
    %708 = vmatpush1.xpose.msra.mxu0 0.0
    %709 = vmatprep.subr.mxu0 0.0
    %710 = vmatpush1.xpose.msra.mxu0 0.0
    %711 = vmatprep.subr.mxu0 0.0
    %712 = vmatpush1.xpose.msra.mxu0 0.0
    %713 = vmatprep.subr.mxu0 0.0
    %714 = vmatpush1.xpose.msra.mxu0 0.0
    %715 = vmatprep.subr.mxu0 0.0
    %716 = vmatpush1.xpose.msra.mxu0 0.0
    %717 = vmatprep.subr.mxu0 0.0
    %718 = vmatpush1.xpose.msra.mxu0 0.0
    %719 = vmatprep.subr.mxu0 0.0
    %720 = vmatpush1.xpose.msra.mxu0 0.0
    %721 = vmatprep.subr.mxu0 0.0
    %722 = vmatpush1.xpose.msra.mxu0 0.0
    %723 = vmatprep.subr.mxu0 0.0
    %724 = vmatpush1.xpose.msra.mxu0 0.0
    %725 = vmatprep.subr.mxu0 0.0
    %726 = vmatpush1.xpose.msra.mxu0 0.0
    %727 = vmatprep.subr.mxu0 0.0
    %728 = vmatpush1.xpose.msra.mxu0 0.0
    %729 = vmatprep.subr.mxu0 0.0
    %730 = vmatpush1.xpose.msra.mxu0 0.0
    %731 = vmatprep.subr.mxu0 0.0
    %732 = vmatpush1.xpose.msra.mxu0 0.0
    %733 = vmatprep.subr.mxu0 0.0
    %734 = vmatpush1.xpose.msra.mxu0 0.0
    %735 = vmatprep.subr.mxu0 0.0
    %736 = vmatpush1.xpose.msra.mxu0 0.0
    %737 = vmatprep.subr.mxu0 0.0
    %738 = vmatpush1.xpose.msra.mxu0 0.0
    %739 = vmatprep.subr.mxu0 0.0
    %740 = vmatpush1.xpose.msra.mxu0 0.0
    %741 = vmatprep.subr.mxu0 0.0
    %742 = vmatpush1.xpose.msra.mxu0 0.0
    %743 = vmatprep.mubr.f32.mxu0 0.0
    %744 = vmatmul.mubr.f32.gmra.mrb[0].mxu0 %v675
    %v745 = vpop.f32.mrb[0].mxu0
    %v746 = vadd.f32 0.0, %v745
    %v747 = vpop.f32.mrb[0].mxu0
    %748 = vdwg.mxu0
    %750 = vrot.lane.b32.xlu0 %v245, 120
    %v751 = vpop.permute.xlu0 %750
    %v752 = vsel %vm674, %v245, 0
    %v754 = vsel %vm674, %v751, 0
    %756 = vmatprep.subr.mxu0 0.0
    %757 = vmatpush1.xpose.msra.mxu0 %v754
    %758 = vmatprep.subr.mxu0 0.0
    %759 = vmatpush1.xpose.msra.mxu0 0.0
    %760 = vmatprep.subr.mxu0 0.0
    %761 = vmatpush1.xpose.msra.mxu0 0.0
    %762 = vmatprep.subr.mxu0 0.0
    %763 = vmatpush1.xpose.msra.mxu0 0.0
    %764 = vmatprep.subr.mxu0 0.0
    %765 = vmatpush1.xpose.msra.mxu0 0.0
    %766 = vmatprep.subr.mxu0 0.0
    %767 = vmatpush1.xpose.msra.mxu0 0.0
    %768 = vmatprep.subr.mxu0 0.0
    %769 = vmatpush1.xpose.msra.mxu0 0.0
    %770 = vmatprep.subr.mxu0 0.0
    %771 = vmatpush1.xpose.msra.mxu0 0.0
    %772 = vmatprep.subr.mxu0 0.0
    %773 = vmatpush1.xpose.msra.mxu0 0.0
    %774 = vmatprep.subr.mxu0 0.0
    %775 = vmatpush1.xpose.msra.mxu0 0.0
    %776 = vmatprep.subr.mxu0 0.0
    %777 = vmatpush1.xpose.msra.mxu0 0.0
    %778 = vmatprep.subr.mxu0 0.0
    %779 = vmatpush1.xpose.msra.mxu0 0.0
    %780 = vmatprep.subr.mxu0 0.0
    %781 = vmatpush1.xpose.msra.mxu0 0.0
    %782 = vmatprep.subr.mxu0 0.0
    %783 = vmatpush1.xpose.msra.mxu0 0.0
    %784 = vmatprep.subr.mxu0 0.0
    %785 = vmatpush1.xpose.msra.mxu0 0.0
    %786 = vmatprep.subr.mxu0 0.0
    %787 = vmatpush1.xpose.msra.mxu0 0.0
    %788 = vmatprep.subr.mxu0 0.0
    %789 = vmatpush1.xpose.msra.mxu0 0.0
    %790 = vmatprep.subr.mxu0 0.0
    %791 = vmatpush1.xpose.msra.mxu0 0.0
    %792 = vmatprep.subr.mxu0 0.0
    %793 = vmatpush1.xpose.msra.mxu0 0.0
    %794 = vmatprep.subr.mxu0 0.0
    %795 = vmatpush1.xpose.msra.mxu0 0.0
    %796 = vmatprep.subr.mxu0 0.0
    %797 = vmatpush1.xpose.msra.mxu0 0.0
    %798 = vmatprep.subr.mxu0 0.0
    %799 = vmatpush1.xpose.msra.mxu0 0.0
    %800 = vmatprep.subr.mxu0 0.0
    %801 = vmatpush1.xpose.msra.mxu0 0.0
    %802 = vmatprep.subr.mxu0 0.0
    %803 = vmatpush1.xpose.msra.mxu0 0.0
    %804 = vmatprep.subr.mxu0 0.0
    %805 = vmatpush1.xpose.msra.mxu0 0.0
    %806 = vmatprep.subr.mxu0 0.0
    %807 = vmatpush1.xpose.msra.mxu0 0.0
    %808 = vmatprep.subr.mxu0 0.0
    %809 = vmatpush1.xpose.msra.mxu0 0.0
    %810 = vmatprep.subr.mxu0 0.0
    %811 = vmatpush1.xpose.msra.mxu0 0.0
    %812 = vmatprep.subr.mxu0 0.0
    %813 = vmatpush1.xpose.msra.mxu0 0.0
    %814 = vmatprep.subr.mxu0 0.0
    %815 = vmatpush1.xpose.msra.mxu0 0.0
    %816 = vmatprep.subr.mxu0 0.0
    %817 = vmatpush1.xpose.msra.mxu0 0.0
    %818 = vmatprep.subr.mxu0 0.0
    %819 = vmatpush1.xpose.msra.mxu0 0.0
    %820 = vmatprep.mubr.f32.mxu0 0.0
    %821 = vmatmul.mubr.f32.gmra.mrb[0].mxu0 %v752
    %v822 = vpop.f32.mrb[0].mxu0
    %v823 = vadd.f32 0.0, %v822
    %v824 = vpop.f32.mrb[0].mxu0
    %825 = vdwg.mxu0
    %827 = vrot.lane.b32.xlu0 %v315, 120
    %v828 = vpop.permute.xlu0 %827
    %v829 = vsel %vm674, %v315, 0
    %v831 = vsel %vm674, %v828, 0
    %833 = vmatprep.subr.mxu0 0.0
    %834 = vmatpush1.xpose.msra.mxu0 %v831
    %835 = vmatprep.subr.mxu0 0.0
    %836 = vmatpush1.xpose.msra.mxu0 0.0
    %837 = vmatprep.subr.mxu0 0.0
    %838 = vmatpush1.xpose.msra.mxu0 0.0
    %839 = vmatprep.subr.mxu0 0.0
    %840 = vmatpush1.xpose.msra.mxu0 0.0
    %841 = vmatprep.subr.mxu0 0.0
    %842 = vmatpush1.xpose.msra.mxu0 0.0
    %843 = vmatprep.subr.mxu0 0.0
    %844 = vmatpush1.xpose.msra.mxu0 0.0
    %845 = vmatprep.subr.mxu0 0.0
    %846 = vmatpush1.xpose.msra.mxu0 0.0
    %847 = vmatprep.subr.mxu0 0.0
    %848 = vmatpush1.xpose.msra.mxu0 0.0
    %849 = vmatprep.subr.mxu0 0.0
    %850 = vmatpush1.xpose.msra.mxu0 0.0
    %851 = vmatprep.subr.mxu0 0.0
    %852 = vmatpush1.xpose.msra.mxu0 0.0
    %853 = vmatprep.subr.mxu0 0.0
    %854 = vmatpush1.xpose.msra.mxu0 0.0
    %855 = vmatprep.subr.mxu0 0.0
    %856 = vmatpush1.xpose.msra.mxu0 0.0
    %857 = vmatprep.subr.mxu0 0.0
    %858 = vmatpush1.xpose.msra.mxu0 0.0
    %859 = vmatprep.subr.mxu0 0.0
    %860 = vmatpush1.xpose.msra.mxu0 0.0
    %861 = vmatprep.subr.mxu0 0.0
    %862 = vmatpush1.xpose.msra.mxu0 0.0
    %863 = vmatprep.subr.mxu0 0.0
    %864 = vmatpush1.xpose.msra.mxu0 0.0
    %865 = vmatprep.subr.mxu0 0.0
    %866 = vmatpush1.xpose.msra.mxu0 0.0
    %867 = vmatprep.subr.mxu0 0.0
    %868 = vmatpush1.xpose.msra.mxu0 0.0
    %869 = vmatprep.subr.mxu0 0.0
    %870 = vmatpush1.xpose.msra.mxu0 0.0
    %871 = vmatprep.subr.mxu0 0.0
    %872 = vmatpush1.xpose.msra.mxu0 0.0
    %873 = vmatprep.subr.mxu0 0.0
    %874 = vmatpush1.xpose.msra.mxu0 0.0
    %875 = vmatprep.subr.mxu0 0.0
    %876 = vmatpush1.xpose.msra.mxu0 0.0
    %877 = vmatprep.subr.mxu0 0.0
    %878 = vmatpush1.xpose.msra.mxu0 0.0
    %879 = vmatprep.subr.mxu0 0.0
    %880 = vmatpush1.xpose.msra.mxu0 0.0
    %881 = vmatprep.subr.mxu0 0.0
    %882 = vmatpush1.xpose.msra.mxu0 0.0
    %883 = vmatprep.subr.mxu0 0.0
    %884 = vmatpush1.xpose.msra.mxu0 0.0
    %885 = vmatprep.subr.mxu0 0.0
    %886 = vmatpush1.xpose.msra.mxu0 0.0
    %887 = vmatprep.subr.mxu0 0.0
    %888 = vmatpush1.xpose.msra.mxu0 0.0
    %889 = vmatprep.subr.mxu0 0.0
    %890 = vmatpush1.xpose.msra.mxu0 0.0
    %891 = vmatprep.subr.mxu0 0.0
    %892 = vmatpush1.xpose.msra.mxu0 0.0
    %893 = vmatprep.subr.mxu0 0.0
    %894 = vmatpush1.xpose.msra.mxu0 0.0
    %895 = vmatprep.subr.mxu0 0.0
    %896 = vmatpush1.xpose.msra.mxu0 0.0
    %897 = vmatprep.mubr.f32.mxu0 0.0
    %898 = vmatmul.mubr.f32.gmra.mrb[0].mxu0 %v829
    %v899 = vpop.f32.mrb[0].mxu0
    %v900 = vadd.f32 0.0, %v899
    %v901 = vpop.f32.mrb[0].mxu0
    %902 = vdwg.mxu0
    %904 = vrot.lane.b32.xlu0 %v385, 120
    %v905 = vpop.permute.xlu0 %904
    %v906 = vsel %vm674, %v385, 0
    %v908 = vsel %vm674, %v905, 0
    %910 = vmatprep.subr.mxu0 0.0
    %911 = vmatpush1.xpose.msra.mxu0 %v908
    %912 = vmatprep.subr.mxu0 0.0
    %913 = vmatpush1.xpose.msra.mxu0 0.0
    %914 = vmatprep.subr.mxu0 0.0
    %915 = vmatpush1.xpose.msra.mxu0 0.0
    %916 = vmatprep.subr.mxu0 0.0
    %917 = vmatpush1.xpose.msra.mxu0 0.0
    %918 = vmatprep.subr.mxu0 0.0
    %919 = vmatpush1.xpose.msra.mxu0 0.0
    %920 = vmatprep.subr.mxu0 0.0
    %921 = vmatpush1.xpose.msra.mxu0 0.0
    %922 = vmatprep.subr.mxu0 0.0
    %923 = vmatpush1.xpose.msra.mxu0 0.0
    %924 = vmatprep.subr.mxu0 0.0
    %925 = vmatpush1.xpose.msra.mxu0 0.0
    %926 = vmatprep.subr.mxu0 0.0
    %927 = vmatpush1.xpose.msra.mxu0 0.0
    %928 = vmatprep.subr.mxu0 0.0
    %929 = vmatpush1.xpose.msra.mxu0 0.0
    %930 = vmatprep.subr.mxu0 0.0
    %931 = vmatpush1.xpose.msra.mxu0 0.0
    %932 = vmatprep.subr.mxu0 0.0
    %933 = vmatpush1.xpose.msra.mxu0 0.0
    %934 = vmatprep.subr.mxu0 0.0
    %935 = vmatpush1.xpose.msra.mxu0 0.0
    %936 = vmatprep.subr.mxu0 0.0
    %937 = vmatpush1.xpose.msra.mxu0 0.0
    %938 = vmatprep.subr.mxu0 0.0
    %939 = vmatpush1.xpose.msra.mxu0 0.0
    %940 = vmatprep.subr.mxu0 0.0
    %941 = vmatpush1.xpose.msra.mxu0 0.0
    %942 = vmatprep.subr.mxu0 0.0
    %943 = vmatpush1.xpose.msra.mxu0 0.0
    %944 = vmatprep.subr.mxu0 0.0
    %945 = vmatpush1.xpose.msra.mxu0 0.0
    %946 = vmatprep.subr.mxu0 0.0
    %947 = vmatpush1.xpose.msra.mxu0 0.0
    %948 = vmatprep.subr.mxu0 0.0
    %949 = vmatpush1.xpose.msra.mxu0 0.0
    %950 = vmatprep.subr.mxu0 0.0
    %951 = vmatpush1.xpose.msra.mxu0 0.0
    %952 = vmatprep.subr.mxu0 0.0
    %953 = vmatpush1.xpose.msra.mxu0 0.0
    %954 = vmatprep.subr.mxu0 0.0
    %955 = vmatpush1.xpose.msra.mxu0 0.0
    %956 = vmatprep.subr.mxu0 0.0
    %957 = vmatpush1.xpose.msra.mxu0 0.0
    %958 = vmatprep.subr.mxu0 0.0
    %959 = vmatpush1.xpose.msra.mxu0 0.0
    %960 = vmatprep.subr.mxu0 0.0
    %961 = vmatpush1.xpose.msra.mxu0 0.0
    %962 = vmatprep.subr.mxu0 0.0
    %963 = vmatpush1.xpose.msra.mxu0 0.0
    %964 = vmatprep.subr.mxu0 0.0
    %965 = vmatpush1.xpose.msra.mxu0 0.0
    %966 = vmatprep.subr.mxu0 0.0
    %967 = vmatpush1.xpose.msra.mxu0 0.0
    %968 = vmatprep.subr.mxu0 0.0
    %969 = vmatpush1.xpose.msra.mxu0 0.0
    %970 = vmatprep.subr.mxu0 0.0
    %971 = vmatpush1.xpose.msra.mxu0 0.0
    %972 = vmatprep.subr.mxu0 0.0
    %973 = vmatpush1.xpose.msra.mxu0 0.0
    %974 = vmatprep.mubr.f32.mxu0 0.0
    %975 = vmatmul.mubr.f32.gmra.mrb[0].mxu0 %v906
    %v976 = vpop.f32.mrb[0].mxu0
    %v977 = vadd.f32 0.0, %v976
    %v978 = vpop.f32.mrb[0].mxu0
    %979 = vdwg.mxu0
    %981 = vrot.lane.b32.xlu0 %v458, 120
    %v982 = vpop.permute.xlu0 %981
    %v983 = vsel %vm674, %v458, 0
    %v985 = vsel %vm674, %v982, 0
    %987 = vmatprep.subr.mxu0 0.0
    %988 = vmatpush1.xpose.msra.mxu0 %v985
    %989 = vmatprep.subr.mxu0 0.0
    %990 = vmatpush1.xpose.msra.mxu0 0.0
    %991 = vmatprep.subr.mxu0 0.0
    %992 = vmatpush1.xpose.msra.mxu0 0.0
    %993 = vmatprep.subr.mxu0 0.0
    %994 = vmatpush1.xpose.msra.mxu0 0.0
    %995 = vmatprep.subr.mxu0 0.0
    %996 = vmatpush1.xpose.msra.mxu0 0.0
    %997 = vmatprep.subr.mxu0 0.0
    %998 = vmatpush1.xpose.msra.mxu0 0.0
    %999 = vmatprep.subr.mxu0 0.0
    %1000 = vmatpush1.xpose.msra.mxu0 0.0
    %1001 = vmatprep.subr.mxu0 0.0
    %1002 = vmatpush1.xpose.msra.mxu0 0.0
    %1003 = vmatprep.subr.mxu0 0.0
    %1004 = vmatpush1.xpose.msra.mxu0 0.0
    %1005 = vmatprep.subr.mxu0 0.0
    %1006 = vmatpush1.xpose.msra.mxu0 0.0
    %1007 = vmatprep.subr.mxu0 0.0
    %1008 = vmatpush1.xpose.msra.mxu0 0.0
    %1009 = vmatprep.subr.mxu0 0.0
    %1010 = vmatpush1.xpose.msra.mxu0 0.0
    %1011 = vmatprep.subr.mxu0 0.0
    %1012 = vmatpush1.xpose.msra.mxu0 0.0
    %1013 = vmatprep.subr.mxu0 0.0
    %1014 = vmatpush1.xpose.msra.mxu0 0.0
    %1015 = vmatprep.subr.mxu0 0.0
    %1016 = vmatpush1.xpose.msra.mxu0 0.0
    %1017 = vmatprep.subr.mxu0 0.0
    %1018 = vmatpush1.xpose.msra.mxu0 0.0
    %1019 = vmatprep.subr.mxu0 0.0
    %1020 = vmatpush1.xpose.msra.mxu0 0.0
    %1021 = vmatprep.subr.mxu0 0.0
    %1022 = vmatpush1.xpose.msra.mxu0 0.0
    %1023 = vmatprep.subr.mxu0 0.0
    %1024 = vmatpush1.xpose.msra.mxu0 0.0
    %1025 = vmatprep.subr.mxu0 0.0
    %1026 = vmatpush1.xpose.msra.mxu0 0.0
    %1027 = vmatprep.subr.mxu0 0.0
    %1028 = vmatpush1.xpose.msra.mxu0 0.0
    %1029 = vmatprep.subr.mxu0 0.0
    %1030 = vmatpush1.xpose.msra.mxu0 0.0
    %1031 = vmatprep.subr.mxu0 0.0
    %1032 = vmatpush1.xpose.msra.mxu0 0.0
    %1033 = vmatprep.subr.mxu0 0.0
    %1034 = vmatpush1.xpose.msra.mxu0 0.0
    %1035 = vmatprep.subr.mxu0 0.0
    %1036 = vmatpush1.xpose.msra.mxu0 0.0
    %1037 = vmatprep.subr.mxu0 0.0
    %1038 = vmatpush1.xpose.msra.mxu0 0.0
    %1039 = vmatprep.subr.mxu0 0.0
    %1040 = vmatpush1.xpose.msra.mxu0 0.0
    %1041 = vmatprep.subr.mxu0 0.0
    %1042 = vmatpush1.xpose.msra.mxu0 0.0
    %1043 = vmatprep.subr.mxu0 0.0
    %1044 = vmatpush1.xpose.msra.mxu0 0.0
    %1045 = vmatprep.subr.mxu0 0.0
    %1046 = vmatpush1.xpose.msra.mxu0 0.0
    %1047 = vmatprep.subr.mxu0 0.0
    %1048 = vmatpush1.xpose.msra.mxu0 0.0
    %1049 = vmatprep.subr.mxu0 0.0
    %1050 = vmatpush1.xpose.msra.mxu0 0.0
    %1051 = vmatprep.mubr.f32.mxu0 0.0
    %1052 = vmatmul.mubr.f32.gmra.mrb[0].mxu0 %v983
    %v1053 = vpop.f32.mrb[0].mxu0
    %v1054 = vadd.f32 0.0, %v1053
    %v1055 = vpop.f32.mrb[0].mxu0
    %1056 = vdwg.mxu0
    %1058 = vrot.lane.b32.xlu0 %v528, 120
    %v1059 = vpop.permute.xlu0 %1058
    %v1060 = vsel %vm674, %v528, 0
    %v1062 = vsel %vm674, %v1059, 0
    %1064 = vmatprep.subr.mxu0 0.0
    %1065 = vmatpush1.xpose.msra.mxu0 %v1062
    %1066 = vmatprep.subr.mxu0 0.0
    %1067 = vmatpush1.xpose.msra.mxu0 0.0
    %1068 = vmatprep.subr.mxu0 0.0
    %1069 = vmatpush1.xpose.msra.mxu0 0.0
    %1070 = vmatprep.subr.mxu0 0.0
    %1071 = vmatpush1.xpose.msra.mxu0 0.0
    %1072 = vmatprep.subr.mxu0 0.0
    %1073 = vmatpush1.xpose.msra.mxu0 0.0
    %1074 = vmatprep.subr.mxu0 0.0
    %1075 = vmatpush1.xpose.msra.mxu0 0.0
    %1076 = vmatprep.subr.mxu0 0.0
    %1077 = vmatpush1.xpose.msra.mxu0 0.0
    %1078 = vmatprep.subr.mxu0 0.0
    %1079 = vmatpush1.xpose.msra.mxu0 0.0
    %1080 = vmatprep.subr.mxu0 0.0
    %1081 = vmatpush1.xpose.msra.mxu0 0.0
    %1082 = vmatprep.subr.mxu0 0.0
    %1083 = vmatpush1.xpose.msra.mxu0 0.0
    %1084 = vmatprep.subr.mxu0 0.0
    %1085 = vmatpush1.xpose.msra.mxu0 0.0
    %1086 = vmatprep.subr.mxu0 0.0
    %1087 = vmatpush1.xpose.msra.mxu0 0.0
    %1088 = vmatprep.subr.mxu0 0.0
    %1089 = vmatpush1.xpose.msra.mxu0 0.0
    %1090 = vmatprep.subr.mxu0 0.0
    %1091 = vmatpush1.xpose.msra.mxu0 0.0
    %1092 = vmatprep.subr.mxu0 0.0
    %1093 = vmatpush1.xpose.msra.mxu0 0.0
    %1094 = vmatprep.subr.mxu0 0.0
    %1095 = vmatpush1.xpose.msra.mxu0 0.0
    %1096 = vmatprep.subr.mxu0 0.0
    %1097 = vmatpush1.xpose.msra.mxu0 0.0
    %1098 = vmatprep.subr.mxu0 0.0
    %1099 = vmatpush1.xpose.msra.mxu0 0.0
    %1100 = vmatprep.subr.mxu0 0.0
    %1101 = vmatpush1.xpose.msra.mxu0 0.0
    %1102 = vmatprep.subr.mxu0 0.0
    %1103 = vmatpush1.xpose.msra.mxu0 0.0
    %1104 = vmatprep.subr.mxu0 0.0
    %1105 = vmatpush1.xpose.msra.mxu0 0.0
    %1106 = vmatprep.subr.mxu0 0.0
    %1107 = vmatpush1.xpose.msra.mxu0 0.0
    %1108 = vmatprep.subr.mxu0 0.0
    %1109 = vmatpush1.xpose.msra.mxu0 0.0
    %1110 = vmatprep.subr.mxu0 0.0
    %1111 = vmatpush1.xpose.msra.mxu0 0.0
    %1112 = vmatprep.subr.mxu0 0.0
    %1113 = vmatpush1.xpose.msra.mxu0 0.0
    %1114 = vmatprep.subr.mxu0 0.0
    %1115 = vmatpush1.xpose.msra.mxu0 0.0
    %1116 = vmatprep.subr.mxu0 0.0
    %1117 = vmatpush1.xpose.msra.mxu0 0.0
    %1118 = vmatprep.subr.mxu0 0.0
    %1119 = vmatpush1.xpose.msra.mxu0 0.0
    %1120 = vmatprep.subr.mxu0 0.0
    %1121 = vmatpush1.xpose.msra.mxu0 0.0
    %1122 = vmatprep.subr.mxu0 0.0
    %1123 = vmatpush1.xpose.msra.mxu0 0.0
    %1124 = vmatprep.subr.mxu0 0.0
    %1125 = vmatpush1.xpose.msra.mxu0 0.0
    %1126 = vmatprep.subr.mxu0 0.0
    %1127 = vmatpush1.xpose.msra.mxu0 0.0
    %1128 = vmatprep.mubr.f32.mxu0 0.0
    %1129 = vmatmul.mubr.f32.gmra.mrb[0].mxu0 %v1060
    %v1130 = vpop.f32.mrb[0].mxu0
    %v1131 = vadd.f32 0.0, %v1130
    %v1132 = vpop.f32.mrb[0].mxu0
    %1133 = vdwg.mxu0
    %1135 = vrot.lane.b32.xlu0 %v598, 120
    %v1136 = vpop.permute.xlu0 %1135
    %v1137 = vsel %vm674, %v598, 0
    %v1139 = vsel %vm674, %v1136, 0
    %1141 = vmatprep.subr.mxu0 0.0
    %1142 = vmatpush1.xpose.msra.mxu0 %v1139
    %1143 = vmatprep.subr.mxu0 0.0
    %1144 = vmatpush1.xpose.msra.mxu0 0.0
    %1145 = vmatprep.subr.mxu0 0.0
    %1146 = vmatpush1.xpose.msra.mxu0 0.0
    %1147 = vmatprep.subr.mxu0 0.0
    %1148 = vmatpush1.xpose.msra.mxu0 0.0
    %1149 = vmatprep.subr.mxu0 0.0
    %1150 = vmatpush1.xpose.msra.mxu0 0.0
    %1151 = vmatprep.subr.mxu0 0.0
    %1152 = vmatpush1.xpose.msra.mxu0 0.0
    %1153 = vmatprep.subr.mxu0 0.0
    %1154 = vmatpush1.xpose.msra.mxu0 0.0
    %1155 = vmatprep.subr.mxu0 0.0
    %1156 = vmatpush1.xpose.msra.mxu0 0.0
    %1157 = vmatprep.subr.mxu0 0.0
    %1158 = vmatpush1.xpose.msra.mxu0 0.0
    %1159 = vmatprep.subr.mxu0 0.0
    %1160 = vmatpush1.xpose.msra.mxu0 0.0
    %1161 = vmatprep.subr.mxu0 0.0
    %1162 = vmatpush1.xpose.msra.mxu0 0.0
    %1163 = vmatprep.subr.mxu0 0.0
    %1164 = vmatpush1.xpose.msra.mxu0 0.0
    %1165 = vmatprep.subr.mxu0 0.0
    %1166 = vmatpush1.xpose.msra.mxu0 0.0
    %1167 = vmatprep.subr.mxu0 0.0
    %1168 = vmatpush1.xpose.msra.mxu0 0.0
    %1169 = vmatprep.subr.mxu0 0.0
    %1170 = vmatpush1.xpose.msra.mxu0 0.0
    %1171 = vmatprep.subr.mxu0 0.0
    %1172 = vmatpush1.xpose.msra.mxu0 0.0
    %1173 = vmatprep.subr.mxu0 0.0
    %1174 = vmatpush1.xpose.msra.mxu0 0.0
    %1175 = vmatprep.subr.mxu0 0.0
    %1176 = vmatpush1.xpose.msra.mxu0 0.0
    %1177 = vmatprep.subr.mxu0 0.0
    %1178 = vmatpush1.xpose.msra.mxu0 0.0
    %1179 = vmatprep.subr.mxu0 0.0
    %1180 = vmatpush1.xpose.msra.mxu0 0.0
    %1181 = vmatprep.subr.mxu0 0.0
    %1182 = vmatpush1.xpose.msra.mxu0 0.0
    %1183 = vmatprep.subr.mxu0 0.0
    %1184 = vmatpush1.xpose.msra.mxu0 0.0
    %1185 = vmatprep.subr.mxu0 0.0
    %1186 = vmatpush1.xpose.msra.mxu0 0.0
    %1187 = vmatprep.subr.mxu0 0.0
    %1188 = vmatpush1.xpose.msra.mxu0 0.0
    %1189 = vmatprep.subr.mxu0 0.0
    %1190 = vmatpush1.xpose.msra.mxu0 0.0
    %1191 = vmatprep.subr.mxu0 0.0
    %1192 = vmatpush1.xpose.msra.mxu0 0.0
    %1193 = vmatprep.subr.mxu0 0.0
    %1194 = vmatpush1.xpose.msra.mxu0 0.0
    %1195 = vmatprep.subr.mxu0 0.0
    %1196 = vmatpush1.xpose.msra.mxu0 0.0
    %1197 = vmatprep.subr.mxu0 0.0
    %1198 = vmatpush1.xpose.msra.mxu0 0.0
    %1199 = vmatprep.subr.mxu0 0.0
    %1200 = vmatpush1.xpose.msra.mxu0 0.0
    %1201 = vmatprep.subr.mxu0 0.0
    %1202 = vmatpush1.xpose.msra.mxu0 0.0
    %1203 = vmatprep.subr.mxu0 0.0
    %1204 = vmatpush1.xpose.msra.mxu0 0.0
    %1205 = vmatprep.mubr.f32.mxu0 0.0
    %1206 = vmatmul.mubr.f32.gmra.mrb[0].mxu0 %v1137
    %v1207 = vpop.f32.mrb[0].mxu0
    %v1208 = vadd.f32 0.0, %v1207
    %v1209 = vpop.f32.mrb[0].mxu0
    %1210 = vdwg.mxu0
    %1212 = vrot.lane.b32.xlu0 %v668, 120
    %v1213 = vpop.permute.xlu0 %1212
    %v1214 = vsel %vm674, %v668, 0
    %v1216 = vsel %vm674, %v1213, 0
    %1218 = vmatprep.subr.mxu0 0.0
    %1219 = vmatpush1.xpose.msra.mxu0 %v1216
    %1220 = vmatprep.subr.mxu0 0.0
    %1221 = vmatpush1.xpose.msra.mxu0 0.0
    %1222 = vmatprep.subr.mxu0 0.0
    %1223 = vmatpush1.xpose.msra.mxu0 0.0
    %1224 = vmatprep.subr.mxu0 0.0
    %1225 = vmatpush1.xpose.msra.mxu0 0.0
    %1226 = vmatprep.subr.mxu0 0.0
    %1227 = vmatpush1.xpose.msra.mxu0 0.0
    %1228 = vmatprep.subr.mxu0 0.0
    %1229 = vmatpush1.xpose.msra.mxu0 0.0
    %1230 = vmatprep.subr.mxu0 0.0
    %1231 = vmatpush1.xpose.msra.mxu0 0.0
    %1232 = vmatprep.subr.mxu0 0.0
    %1233 = vmatpush1.xpose.msra.mxu0 0.0
    %1234 = vmatprep.subr.mxu0 0.0
    %1235 = vmatpush1.xpose.msra.mxu0 0.0
    %1236 = vmatprep.subr.mxu0 0.0
    %1237 = vmatpush1.xpose.msra.mxu0 0.0
    %1238 = vmatprep.subr.mxu0 0.0
    %1239 = vmatpush1.xpose.msra.mxu0 0.0
    %1240 = vmatprep.subr.mxu0 0.0
    %1241 = vmatpush1.xpose.msra.mxu0 0.0
    %1242 = vmatprep.subr.mxu0 0.0
    %1243 = vmatpush1.xpose.msra.mxu0 0.0
    %1244 = vmatprep.subr.mxu0 0.0
    %1245 = vmatpush1.xpose.msra.mxu0 0.0
    %1246 = vmatprep.subr.mxu0 0.0
    %1247 = vmatpush1.xpose.msra.mxu0 0.0
    %1248 = vmatprep.subr.mxu0 0.0
    %1249 = vmatpush1.xpose.msra.mxu0 0.0
    %1250 = vmatprep.subr.mxu0 0.0
    %1251 = vmatpush1.xpose.msra.mxu0 0.0
    %1252 = vmatprep.subr.mxu0 0.0
    %1253 = vmatpush1.xpose.msra.mxu0 0.0
    %1254 = vmatprep.subr.mxu0 0.0
    %1255 = vmatpush1.xpose.msra.mxu0 0.0
    %1256 = vmatprep.subr.mxu0 0.0
    %1257 = vmatpush1.xpose.msra.mxu0 0.0
    %1258 = vmatprep.subr.mxu0 0.0
    %1259 = vmatpush1.xpose.msra.mxu0 0.0
    %1260 = vmatprep.subr.mxu0 0.0
    %1261 = vmatpush1.xpose.msra.mxu0 0.0
    %1262 = vmatprep.subr.mxu0 0.0
    %1263 = vmatpush1.xpose.msra.mxu0 0.0
    %1264 = vmatprep.subr.mxu0 0.0
    %1265 = vmatpush1.xpose.msra.mxu0 0.0
    %1266 = vmatprep.subr.mxu0 0.0
    %1267 = vmatpush1.xpose.msra.mxu0 0.0
    %1268 = vmatprep.subr.mxu0 0.0
    %1269 = vmatpush1.xpose.msra.mxu0 0.0
    %1270 = vmatprep.subr.mxu0 0.0
    %1271 = vmatpush1.xpose.msra.mxu0 0.0
    %1272 = vmatprep.subr.mxu0 0.0
    %1273 = vmatpush1.xpose.msra.mxu0 0.0
    %1274 = vmatprep.subr.mxu0 0.0
    %1275 = vmatpush1.xpose.msra.mxu0 0.0
    %1276 = vmatprep.subr.mxu0 0.0
    %1277 = vmatpush1.xpose.msra.mxu0 0.0
    %1278 = vmatprep.subr.mxu0 0.0
    %1279 = vmatpush1.xpose.msra.mxu0 0.0
    %1280 = vmatprep.subr.mxu0 0.0
    %1281 = vmatpush1.xpose.msra.mxu0 0.0
    %1282 = vmatprep.mubr.f32.mxu0 0.0
    %1283 = vmatmul.mubr.f32.gmra.mrb[0].mxu0 %v1214
    %v1284 = vpop.f32.mrb[0].mxu0
    %v1285 = vadd.f32 0.0, %v1284
    %v1286 = vpop.f32.mrb[0].mxu0
    %1287 = vdwg.mxu0
    %v1288 = vmul.f32 %v746, 0.35355338
    %v1289 = vmul.f32 %v823, 0.35355338
    %v1290 = vmul.f32 %v900, 0.35355338
    %v1291 = vmul.f32 %v977, 0.35355338
    %v1292 = vmul.f32 %v1054, 0.35355338
    %v1293 = vmul.f32 %v1131, 0.35355338
    %v1294 = vmul.f32 %v1208, 0.35355338
    %v1295 = vmul.f32 %v1285, 0.35355338
    %vm1296 = vcmp.eq.f32.partialorder %v29, 0.0
    %vm1297 = vcmp.eq.f32.partialorder %v30, 0.0
    %v1298 = vsel %vm1296, -1e+08, %v1288
    %v1299 = vsel %vm1296, -1e+08, %v1289
    %v1300 = vsel %vm1296, -1e+08, %v1290
    %v1301 = vsel %vm1296, -1e+08, %v1291
    %v1302 = vsel %vm1297, -1e+08, %v1292
    %v1303 = vsel %vm1297, -1e+08, %v1293
    %v1304 = vsel %vm1297, -1e+08, %v1294
    %v1305 = vsel %vm1297, -1e+08, %v1295
    %v1306 = vsel %vm674, %v1298, -inf
    %1307 = vmax.xlane.f32.xlu0 %v1306
    %v1308 = vpop.xlane.xlu0 %1307
    %v1309 = vsel %vm674, %v1299, -inf
    %1310 = vmax.xlane.f32.xlu0 %v1309
    %v1311 = vpop.xlane.xlu0 %1310
    %v1312 = vsel %vm674, %v1300, -inf
    %1313 = vmax.xlane.f32.xlu0 %v1312
    %v1314 = vpop.xlane.xlu0 %1313
    %v1315 = vsel %vm674, %v1301, -inf
    %1316 = vmax.xlane.f32.xlu0 %v1315
    %v1317 = vpop.xlane.xlu0 %1316
    %v1318 = vsel %vm674, %v1302, -inf
    %1319 = vmax.xlane.f32.xlu0 %v1318
    %v1320 = vpop.xlane.xlu0 %1319
    %v1321 = vsel %vm674, %v1303, -inf
    %1322 = vmax.xlane.f32.xlu0 %v1321
    %v1323 = vpop.xlane.xlu0 %1322
    %v1324 = vsel %vm674, %v1304, -inf
    %1325 = vmax.xlane.f32.xlu0 %v1324
    %v1326 = vpop.xlane.xlu0 %1325
    %v1327 = vsel %vm674, %v1305, -inf
    %1328 = vmax.xlane.f32.xlu0 %v1327
    %v1329 = vpop.xlane.xlu0 %1328
    %v1330 = vsub.f32 %v1298, %v1308
    %v1331 = vsub.f32 %v1299, %v1311
    %v1332 = vsub.f32 %v1300, %v1314
    %v1333 = vsub.f32 %v1301, %v1317
    %v1334 = vsub.f32 %v1302, %v1320
    %v1335 = vsub.f32 %v1303, %v1323
    %v1336 = vsub.f32 %v1304, %v1326
    %v1337 = vsub.f32 %v1305, %v1329
    %v1338 = vmul.f32 %v1330, 1.442695
    %v1339 = vpow.pop %v1338
    %v1340 = vmul.f32 %v1331, 1.442695
    %v1341 = vpow.pop %v1340
    %v1342 = vmul.f32 %v1332, 1.442695
    %v1343 = vpow.pop %v1342
    %v1344 = vmul.f32 %v1333, 1.442695
    %v1345 = vpow.pop %v1344
    %v1346 = vmul.f32 %v1334, 1.442695
    %v1347 = vpow.pop %v1346
    %v1348 = vmul.f32 %v1335, 1.442695
    %v1349 = vpow.pop %v1348
    %v1350 = vmul.f32 %v1336, 1.442695
    %v1351 = vpow.pop %v1350
    %v1352 = vmul.f32 %v1337, 1.442695
    %v1353 = vpow.pop %v1352
    %v1354 = vsel %vm674, %v1339, 0.0
    %1355 = vadd.xlane.f32.xlu0 %v1354
    %v1356 = vpop.xlane.xlu0 %1355
    %v1357 = vsel %vm674, %v1341, 0.0
    %1358 = vadd.xlane.f32.xlu0 %v1357
    %v1359 = vpop.xlane.xlu0 %1358
    %v1360 = vsel %vm674, %v1343, 0.0
    %1361 = vadd.xlane.f32.xlu0 %v1360
    %v1362 = vpop.xlane.xlu0 %1361
    %v1363 = vsel %vm674, %v1345, 0.0
    %1364 = vadd.xlane.f32.xlu0 %v1363
    %v1365 = vpop.xlane.xlu0 %1364
    %v1366 = vsel %vm674, %v1347, 0.0
    %1367 = vadd.xlane.f32.xlu0 %v1366
    %v1368 = vpop.xlane.xlu0 %1367
    %v1369 = vsel %vm674, %v1349, 0.0
    %1370 = vadd.xlane.f32.xlu0 %v1369
    %v1371 = vpop.xlane.xlu0 %1370
    %v1372 = vsel %vm674, %v1351, 0.0
    %1373 = vadd.xlane.f32.xlu0 %v1372
    %v1374 = vpop.xlane.xlu0 %1373
    %v1375 = vsel %vm674, %v1353, 0.0
    %1376 = vadd.xlane.f32.xlu0 %v1375
    %v1377 = vpop.xlane.xlu0 %1376
    %v1378 = vrcp.pop %v1356
    %v1379 = vmul.f32 1.0, %v1378
    %v1380 = vrcp.pop %v1359
    %v1381 = vmul.f32 1.0, %v1380
    %v1382 = vrcp.pop %v1362
    %v1383 = vmul.f32 1.0, %v1382
    %v1384 = vrcp.pop %v1365
    %v1385 = vmul.f32 1.0, %v1384
    %v1386 = vrcp.pop %v1368
    %v1387 = vmul.f32 1.0, %v1386
    %v1388 = vrcp.pop %v1371
    %v1389 = vmul.f32 1.0, %v1388
    %v1390 = vrcp.pop %v1374
    %v1391 = vmul.f32 1.0, %v1390
    %v1392 = vrcp.pop %v1377
    %v1393 = vmul.f32 1.0, %v1392
    %v1394 = vmul.f32 %v1339, %v1379
    %v1395 = vmul.f32 %v1341, %v1381
    %v1396 = vmul.f32 %v1343, %v1383
    %v1397 = vmul.f32 %v1345, %v1385
    %v1398 = vmul.f32 %v1347, %v1387
    %v1399 = vmul.f32 %v1349, %v1389
    %v1400 = vmul.f32 %v1351, %v1391
    %v1401 = vmul.f32 %v1353, %v1393
    %1402 = vrot.lane.b32.xlu0 %v175, 112
    %v1403 = vpop.permute.xlu0 %1402
    %v1406 = vsel %vm674, %v1394, 0
    %1408 = vmatprep.subr.mxu0 0.0
    %1409 = vmatpush1.msra.mxu0 %v1403
    %1410 = vmatprep.subr.mxu0 0.0
    %1411 = vmatpush1.msra.mxu0 0.0
    %1412 = vmatprep.subr.mxu0 0.0
    %1413 = vmatpush1.msra.mxu0 0.0
    %1414 = vmatprep.subr.mxu0 0.0
    %1415 = vmatpush1.msra.mxu0 0.0
    %1416 = vmatprep.subr.mxu0 0.0
    %1417 = vmatpush1.msra.mxu0 0.0
    %1418 = vmatprep.subr.mxu0 0.0
    %1419 = vmatpush1.msra.mxu0 0.0
    %1420 = vmatprep.subr.mxu0 0.0
    %1421 = vmatpush1.msra.mxu0 0.0
    %1422 = vmatprep.subr.mxu0 0.0
    %1423 = vmatpush1.msra.mxu0 0.0
    %1424 = vmatprep.subr.mxu0 0.0
    %1425 = vmatpush1.msra.mxu0 0.0
    %1426 = vmatprep.subr.mxu0 0.0
    %1427 = vmatpush1.msra.mxu0 0.0
    %1428 = vmatprep.subr.mxu0 0.0
    %1429 = vmatpush1.msra.mxu0 0.0
    %1430 = vmatprep.subr.mxu0 0.0
    %1431 = vmatpush1.msra.mxu0 0.0
    %1432 = vmatprep.subr.mxu0 0.0
    %1433 = vmatpush1.msra.mxu0 0.0
    %1434 = vmatprep.subr.mxu0 0.0
    %1435 = vmatpush1.msra.mxu0 0.0
    %1436 = vmatprep.subr.mxu0 0.0
    %1437 = vmatpush1.msra.mxu0 0.0
    %1438 = vmatprep.subr.mxu0 0.0
    %1439 = vmatpush1.msra.mxu0 0.0
    %1440 = vmatprep.subr.mxu0 0.0
    %1441 = vmatpush1.msra.mxu0 0.0
    %1442 = vmatprep.subr.mxu0 0.0
    %1443 = vmatpush1.msra.mxu0 0.0
    %1444 = vmatprep.subr.mxu0 0.0
    %1445 = vmatpush1.msra.mxu0 0.0
    %1446 = vmatprep.subr.mxu0 0.0
    %1447 = vmatpush1.msra.mxu0 0.0
    %1448 = vmatprep.subr.mxu0 0.0
    %1449 = vmatpush1.msra.mxu0 0.0
    %1450 = vmatprep.subr.mxu0 0.0
    %1451 = vmatpush1.msra.mxu0 0.0
    %1452 = vmatprep.subr.mxu0 0.0
    %1453 = vmatpush1.msra.mxu0 0.0
    %1454 = vmatprep.subr.mxu0 0.0
    %1455 = vmatpush1.msra.mxu0 0.0
    %1456 = vmatprep.subr.mxu0 0.0
    %1457 = vmatpush1.msra.mxu0 0.0
    %1458 = vmatprep.subr.mxu0 0.0
    %1459 = vmatpush1.msra.mxu0 0.0
    %1460 = vmatprep.subr.mxu0 0.0
    %1461 = vmatpush1.msra.mxu0 0.0
    %1462 = vmatprep.subr.mxu0 0.0
    %1463 = vmatpush1.msra.mxu0 0.0
    %1464 = vmatprep.subr.mxu0 0.0
    %1465 = vmatpush1.msra.mxu0 0.0
    %1466 = vmatprep.subr.mxu0 0.0
    %1467 = vmatpush1.msra.mxu0 0.0
    %1468 = vmatprep.subr.mxu0 0.0
    %1469 = vmatpush1.msra.mxu0 0.0
    %1470 = vmatprep.subr.mxu0 0.0
    %1471 = vmatpush1.msra.mxu0 0.0
    %1472 = vmatprep.mubr.f32.mxu0 0.0
    %1473 = vmatmul.mubr.f32.gmra.mrb[0].mxu0 %v1406
    %v1474 = vpop.f32.mrb[0].mxu0
    %v1475 = vadd.f32 0.0, %v1474
    %v1476 = vpop.f32.mrb[0].mxu0
    %1477 = vdwg.mxu0
    %1478 = vrot.lane.b32.xlu0 %v245, 112
    %v1479 = vpop.permute.xlu0 %1478
    %v1482 = vsel %vm674, %v1395, 0
    %1484 = vmatprep.subr.mxu0 0.0
    %1485 = vmatpush1.msra.mxu0 %v1479
    %1486 = vmatprep.subr.mxu0 0.0
    %1487 = vmatpush1.msra.mxu0 0.0
    %1488 = vmatprep.subr.mxu0 0.0
    %1489 = vmatpush1.msra.mxu0 0.0
    %1490 = vmatprep.subr.mxu0 0.0
    %1491 = vmatpush1.msra.mxu0 0.0
    %1492 = vmatprep.subr.mxu0 0.0
    %1493 = vmatpush1.msra.mxu0 0.0
    %1494 = vmatprep.subr.mxu0 0.0
    %1495 = vmatpush1.msra.mxu0 0.0
    %1496 = vmatprep.subr.mxu0 0.0
    %1497 = vmatpush1.msra.mxu0 0.0
    %1498 = vmatprep.subr.mxu0 0.0
    %1499 = vmatpush1.msra.mxu0 0.0
    %1500 = vmatprep.subr.mxu0 0.0
    %1501 = vmatpush1.msra.mxu0 0.0
    %1502 = vmatprep.subr.mxu0 0.0
    %1503 = vmatpush1.msra.mxu0 0.0
    %1504 = vmatprep.subr.mxu0 0.0
    %1505 = vmatpush1.msra.mxu0 0.0
    %1506 = vmatprep.subr.mxu0 0.0
    %1507 = vmatpush1.msra.mxu0 0.0
    %1508 = vmatprep.subr.mxu0 0.0
    %1509 = vmatpush1.msra.mxu0 0.0
    %1510 = vmatprep.subr.mxu0 0.0
    %1511 = vmatpush1.msra.mxu0 0.0
    %1512 = vmatprep.subr.mxu0 0.0
    %1513 = vmatpush1.msra.mxu0 0.0
    %1514 = vmatprep.subr.mxu0 0.0
    %1515 = vmatpush1.msra.mxu0 0.0
    %1516 = vmatprep.subr.mxu0 0.0
    %1517 = vmatpush1.msra.mxu0 0.0
    %1518 = vmatprep.subr.mxu0 0.0
    %1519 = vmatpush1.msra.mxu0 0.0
    %1520 = vmatprep.subr.mxu0 0.0
    %1521 = vmatpush1.msra.mxu0 0.0
    %1522 = vmatprep.subr.mxu0 0.0
    %1523 = vmatpush1.msra.mxu0 0.0
    %1524 = vmatprep.subr.mxu0 0.0
    %1525 = vmatpush1.msra.mxu0 0.0
    %1526 = vmatprep.subr.mxu0 0.0
    %1527 = vmatpush1.msra.mxu0 0.0
    %1528 = vmatprep.subr.mxu0 0.0
    %1529 = vmatpush1.msra.mxu0 0.0
    %1530 = vmatprep.subr.mxu0 0.0
    %1531 = vmatpush1.msra.mxu0 0.0
    %1532 = vmatprep.subr.mxu0 0.0
    %1533 = vmatpush1.msra.mxu0 0.0
    %1534 = vmatprep.subr.mxu0 0.0
    %1535 = vmatpush1.msra.mxu0 0.0
    %1536 = vmatprep.subr.mxu0 0.0
    %1537 = vmatpush1.msra.mxu0 0.0
    %1538 = vmatprep.subr.mxu0 0.0
    %1539 = vmatpush1.msra.mxu0 0.0
    %1540 = vmatprep.subr.mxu0 0.0
    %1541 = vmatpush1.msra.mxu0 0.0
    %1542 = vmatprep.subr.mxu0 0.0
    %1543 = vmatpush1.msra.mxu0 0.0
    %1544 = vmatprep.subr.mxu0 0.0
    %1545 = vmatpush1.msra.mxu0 0.0
    %1546 = vmatprep.subr.mxu0 0.0
    %1547 = vmatpush1.msra.mxu0 0.0
    %1548 = vmatprep.mubr.f32.mxu0 0.0
    %1549 = vmatmul.mubr.f32.gmra.mrb[0].mxu0 %v1482
    %v1550 = vpop.f32.mrb[0].mxu0
    %v1551 = vadd.f32 0.0, %v1550
    %v1552 = vpop.f32.mrb[0].mxu0
    %1553 = vdwg.mxu0
    %1554 = vrot.lane.b32.xlu0 %v315, 112
    %v1555 = vpop.permute.xlu0 %1554
    %v1558 = vsel %vm674, %v1396, 0
    %1560 = vmatprep.subr.mxu0 0.0
    %1561 = vmatpush1.msra.mxu0 %v1555
    %1562 = vmatprep.subr.mxu0 0.0
    %1563 = vmatpush1.msra.mxu0 0.0
    %1564 = vmatprep.subr.mxu0 0.0
    %1565 = vmatpush1.msra.mxu0 0.0
    %1566 = vmatprep.subr.mxu0 0.0
    %1567 = vmatpush1.msra.mxu0 0.0
    %1568 = vmatprep.subr.mxu0 0.0
    %1569 = vmatpush1.msra.mxu0 0.0
    %1570 = vmatprep.subr.mxu0 0.0
    %1571 = vmatpush1.msra.mxu0 0.0
    %1572 = vmatprep.subr.mxu0 0.0
    %1573 = vmatpush1.msra.mxu0 0.0
    %1574 = vmatprep.subr.mxu0 0.0
    %1575 = vmatpush1.msra.mxu0 0.0
    %1576 = vmatprep.subr.mxu0 0.0
    %1577 = vmatpush1.msra.mxu0 0.0
    %1578 = vmatprep.subr.mxu0 0.0
    %1579 = vmatpush1.msra.mxu0 0.0
    %1580 = vmatprep.subr.mxu0 0.0
    %1581 = vmatpush1.msra.mxu0 0.0
    %1582 = vmatprep.subr.mxu0 0.0
    %1583 = vmatpush1.msra.mxu0 0.0
    %1584 = vmatprep.subr.mxu0 0.0
    %1585 = vmatpush1.msra.mxu0 0.0
    %1586 = vmatprep.subr.mxu0 0.0
    %1587 = vmatpush1.msra.mxu0 0.0
    %1588 = vmatprep.subr.mxu0 0.0
    %1589 = vmatpush1.msra.mxu0 0.0
    %1590 = vmatprep.subr.mxu0 0.0
    %1591 = vmatpush1.msra.mxu0 0.0
    %1592 = vmatprep.subr.mxu0 0.0
    %1593 = vmatpush1.msra.mxu0 0.0
    %1594 = vmatprep.subr.mxu0 0.0
    %1595 = vmatpush1.msra.mxu0 0.0
    %1596 = vmatprep.subr.mxu0 0.0
    %1597 = vmatpush1.msra.mxu0 0.0
    %1598 = vmatprep.subr.mxu0 0.0
    %1599 = vmatpush1.msra.mxu0 0.0
    %1600 = vmatprep.subr.mxu0 0.0
    %1601 = vmatpush1.msra.mxu0 0.0
    %1602 = vmatprep.subr.mxu0 0.0
    %1603 = vmatpush1.msra.mxu0 0.0
    %1604 = vmatprep.subr.mxu0 0.0
    %1605 = vmatpush1.msra.mxu0 0.0
    %1606 = vmatprep.subr.mxu0 0.0
    %1607 = vmatpush1.msra.mxu0 0.0
    %1608 = vmatprep.subr.mxu0 0.0
    %1609 = vmatpush1.msra.mxu0 0.0
    %1610 = vmatprep.subr.mxu0 0.0
    %1611 = vmatpush1.msra.mxu0 0.0
    %1612 = vmatprep.subr.mxu0 0.0
    %1613 = vmatpush1.msra.mxu0 0.0
    %1614 = vmatprep.subr.mxu0 0.0
    %1615 = vmatpush1.msra.mxu0 0.0
    %1616 = vmatprep.subr.mxu0 0.0
    %1617 = vmatpush1.msra.mxu0 0.0
    %1618 = vmatprep.subr.mxu0 0.0
    %1619 = vmatpush1.msra.mxu0 0.0
    %1620 = vmatprep.subr.mxu0 0.0
    %1621 = vmatpush1.msra.mxu0 0.0
    %1622 = vmatprep.subr.mxu0 0.0
    %1623 = vmatpush1.msra.mxu0 0.0
    %1624 = vmatprep.mubr.f32.mxu0 0.0
    %1625 = vmatmul.mubr.f32.gmra.mrb[0].mxu0 %v1558
    %v1626 = vpop.f32.mrb[0].mxu0
    %v1627 = vadd.f32 0.0, %v1626
    %v1628 = vpop.f32.mrb[0].mxu0
    %1629 = vdwg.mxu0
    %1630 = vrot.lane.b32.xlu0 %v385, 112
    %v1631 = vpop.permute.xlu0 %1630
    %v1634 = vsel %vm674, %v1397, 0
    %1636 = vmatprep.subr.mxu0 0.0
    %1637 = vmatpush1.msra.mxu0 %v1631
    %1638 = vmatprep.subr.mxu0 0.0
    %1639 = vmatpush1.msra.mxu0 0.0
    %1640 = vmatprep.subr.mxu0 0.0
    %1641 = vmatpush1.msra.mxu0 0.0
    %1642 = vmatprep.subr.mxu0 0.0
    %1643 = vmatpush1.msra.mxu0 0.0
    %1644 = vmatprep.subr.mxu0 0.0
    %1645 = vmatpush1.msra.mxu0 0.0
    %1646 = vmatprep.subr.mxu0 0.0
    %1647 = vmatpush1.msra.mxu0 0.0
    %1648 = vmatprep.subr.mxu0 0.0
    %1649 = vmatpush1.msra.mxu0 0.0
    %1650 = vmatprep.subr.mxu0 0.0
    %1651 = vmatpush1.msra.mxu0 0.0
    %1652 = vmatprep.subr.mxu0 0.0
    %1653 = vmatpush1.msra.mxu0 0.0
    %1654 = vmatprep.subr.mxu0 0.0
    %1655 = vmatpush1.msra.mxu0 0.0
    %1656 = vmatprep.subr.mxu0 0.0
    %1657 = vmatpush1.msra.mxu0 0.0
    %1658 = vmatprep.subr.mxu0 0.0
    %1659 = vmatpush1.msra.mxu0 0.0
    %1660 = vmatprep.subr.mxu0 0.0
    %1661 = vmatpush1.msra.mxu0 0.0
    %1662 = vmatprep.subr.mxu0 0.0
    %1663 = vmatpush1.msra.mxu0 0.0
    %1664 = vmatprep.subr.mxu0 0.0
    %1665 = vmatpush1.msra.mxu0 0.0
    %1666 = vmatprep.subr.mxu0 0.0
    %1667 = vmatpush1.msra.mxu0 0.0
    %1668 = vmatprep.subr.mxu0 0.0
    %1669 = vmatpush1.msra.mxu0 0.0
    %1670 = vmatprep.subr.mxu0 0.0
    %1671 = vmatpush1.msra.mxu0 0.0
    %1672 = vmatprep.subr.mxu0 0.0
    %1673 = vmatpush1.msra.mxu0 0.0
    %1674 = vmatprep.subr.mxu0 0.0
    %1675 = vmatpush1.msra.mxu0 0.0
    %1676 = vmatprep.subr.mxu0 0.0
    %1677 = vmatpush1.msra.mxu0 0.0
    %1678 = vmatprep.subr.mxu0 0.0
    %1679 = vmatpush1.msra.mxu0 0.0
    %1680 = vmatprep.subr.mxu0 0.0
    %1681 = vmatpush1.msra.mxu0 0.0
    %1682 = vmatprep.subr.mxu0 0.0
    %1683 = vmatpush1.msra.mxu0 0.0
    %1684 = vmatprep.subr.mxu0 0.0
    %1685 = vmatpush1.msra.mxu0 0.0
    %1686 = vmatprep.subr.mxu0 0.0
    %1687 = vmatpush1.msra.mxu0 0.0
    %1688 = vmatprep.subr.mxu0 0.0
    %1689 = vmatpush1.msra.mxu0 0.0
    %1690 = vmatprep.subr.mxu0 0.0
    %1691 = vmatpush1.msra.mxu0 0.0
    %1692 = vmatprep.subr.mxu0 0.0
    %1693 = vmatpush1.msra.mxu0 0.0
    %1694 = vmatprep.subr.mxu0 0.0
    %1695 = vmatpush1.msra.mxu0 0.0
    %1696 = vmatprep.subr.mxu0 0.0
    %1697 = vmatpush1.msra.mxu0 0.0
    %1698 = vmatprep.subr.mxu0 0.0
    %1699 = vmatpush1.msra.mxu0 0.0
    %1700 = vmatprep.mubr.f32.mxu0 0.0
    %1701 = vmatmul.mubr.f32.gmra.mrb[0].mxu0 %v1634
    %v1702 = vpop.f32.mrb[0].mxu0
    %v1703 = vadd.f32 0.0, %v1702
    %v1704 = vpop.f32.mrb[0].mxu0
    %1705 = vdwg.mxu0
    %1706 = vrot.lane.b32.xlu0 %v458, 112
    %v1707 = vpop.permute.xlu0 %1706
    %v1710 = vsel %vm674, %v1398, 0
    %1712 = vmatprep.subr.mxu0 0.0
    %1713 = vmatpush1.msra.mxu0 %v1707
    %1714 = vmatprep.subr.mxu0 0.0
    %1715 = vmatpush1.msra.mxu0 0.0
    %1716 = vmatprep.subr.mxu0 0.0
    %1717 = vmatpush1.msra.mxu0 0.0
    %1718 = vmatprep.subr.mxu0 0.0
    %1719 = vmatpush1.msra.mxu0 0.0
    %1720 = vmatprep.subr.mxu0 0.0
    %1721 = vmatpush1.msra.mxu0 0.0
    %1722 = vmatprep.subr.mxu0 0.0
    %1723 = vmatpush1.msra.mxu0 0.0
    %1724 = vmatprep.subr.mxu0 0.0
    %1725 = vmatpush1.msra.mxu0 0.0
    %1726 = vmatprep.subr.mxu0 0.0
    %1727 = vmatpush1.msra.mxu0 0.0
    %1728 = vmatprep.subr.mxu0 0.0
    %1729 = vmatpush1.msra.mxu0 0.0
    %1730 = vmatprep.subr.mxu0 0.0
    %1731 = vmatpush1.msra.mxu0 0.0
    %1732 = vmatprep.subr.mxu0 0.0
    %1733 = vmatpush1.msra.mxu0 0.0
    %1734 = vmatprep.subr.mxu0 0.0
    %1735 = vmatpush1.msra.mxu0 0.0
    %1736 = vmatprep.subr.mxu0 0.0
    %1737 = vmatpush1.msra.mxu0 0.0
    %1738 = vmatprep.subr.mxu0 0.0
    %1739 = vmatpush1.msra.mxu0 0.0
    %1740 = vmatprep.subr.mxu0 0.0
    %1741 = vmatpush1.msra.mxu0 0.0
    %1742 = vmatprep.subr.mxu0 0.0
    %1743 = vmatpush1.msra.mxu0 0.0
    %1744 = vmatprep.subr.mxu0 0.0
    %1745 = vmatpush1.msra.mxu0 0.0
    %1746 = vmatprep.subr.mxu0 0.0
    %1747 = vmatpush1.msra.mxu0 0.0
    %1748 = vmatprep.subr.mxu0 0.0
    %1749 = vmatpush1.msra.mxu0 0.0
    %1750 = vmatprep.subr.mxu0 0.0
    %1751 = vmatpush1.msra.mxu0 0.0
    %1752 = vmatprep.subr.mxu0 0.0
    %1753 = vmatpush1.msra.mxu0 0.0
    %1754 = vmatprep.subr.mxu0 0.0
    %1755 = vmatpush1.msra.mxu0 0.0
    %1756 = vmatprep.subr.mxu0 0.0
    %1757 = vmatpush1.msra.mxu0 0.0
    %1758 = vmatprep.subr.mxu0 0.0
    %1759 = vmatpush1.msra.mxu0 0.0
    %1760 = vmatprep.subr.mxu0 0.0
    %1761 = vmatpush1.msra.mxu0 0.0
    %1762 = vmatprep.subr.mxu0 0.0
    %1763 = vmatpush1.msra.mxu0 0.0
    %1764 = vmatprep.subr.mxu0 0.0
    %1765 = vmatpush1.msra.mxu0 0.0
    %1766 = vmatprep.subr.mxu0 0.0
    %1767 = vmatpush1.msra.mxu0 0.0
    %1768 = vmatprep.subr.mxu0 0.0
    %1769 = vmatpush1.msra.mxu0 0.0
    %1770 = vmatprep.subr.mxu0 0.0
    %1771 = vmatpush1.msra.mxu0 0.0
    %1772 = vmatprep.subr.mxu0 0.0
    %1773 = vmatpush1.msra.mxu0 0.0
    %1774 = vmatprep.subr.mxu0 0.0
    %1775 = vmatpush1.msra.mxu0 0.0
    %1776 = vmatprep.mubr.f32.mxu0 0.0
    %1777 = vmatmul.mubr.f32.gmra.mrb[0].mxu0 %v1710
    %v1778 = vpop.f32.mrb[0].mxu0
    %v1779 = vadd.f32 0.0, %v1778
    %v1780 = vpop.f32.mrb[0].mxu0
    %1781 = vdwg.mxu0
    %1782 = vrot.lane.b32.xlu0 %v528, 112
    %v1783 = vpop.permute.xlu0 %1782
    %v1786 = vsel %vm674, %v1399, 0
    %1788 = vmatprep.subr.mxu0 0.0
    %1789 = vmatpush1.msra.mxu0 %v1783
    %1790 = vmatprep.subr.mxu0 0.0
    %1791 = vmatpush1.msra.mxu0 0.0
    %1792 = vmatprep.subr.mxu0 0.0
    %1793 = vmatpush1.msra.mxu0 0.0
    %1794 = vmatprep.subr.mxu0 0.0
    %1795 = vmatpush1.msra.mxu0 0.0
    %1796 = vmatprep.subr.mxu0 0.0
    %1797 = vmatpush1.msra.mxu0 0.0
    %1798 = vmatprep.subr.mxu0 0.0
    %1799 = vmatpush1.msra.mxu0 0.0
    %1800 = vmatprep.subr.mxu0 0.0
    %1801 = vmatpush1.msra.mxu0 0.0
    %1802 = vmatprep.subr.mxu0 0.0
    %1803 = vmatpush1.msra.mxu0 0.0
    %1804 = vmatprep.subr.mxu0 0.0
    %1805 = vmatpush1.msra.mxu0 0.0
    %1806 = vmatprep.subr.mxu0 0.0
    %1807 = vmatpush1.msra.mxu0 0.0
    %1808 = vmatprep.subr.mxu0 0.0
    %1809 = vmatpush1.msra.mxu0 0.0
    %1810 = vmatprep.subr.mxu0 0.0
    %1811 = vmatpush1.msra.mxu0 0.0
    %1812 = vmatprep.subr.mxu0 0.0
    %1813 = vmatpush1.msra.mxu0 0.0
    %1814 = vmatprep.subr.mxu0 0.0
    %1815 = vmatpush1.msra.mxu0 0.0
    %1816 = vmatprep.subr.mxu0 0.0
    %1817 = vmatpush1.msra.mxu0 0.0
    %1818 = vmatprep.subr.mxu0 0.0
    %1819 = vmatpush1.msra.mxu0 0.0
    %1820 = vmatprep.subr.mxu0 0.0
    %1821 = vmatpush1.msra.mxu0 0.0
    %1822 = vmatprep.subr.mxu0 0.0
    %1823 = vmatpush1.msra.mxu0 0.0
    %1824 = vmatprep.subr.mxu0 0.0
    %1825 = vmatpush1.msra.mxu0 0.0
    %1826 = vmatprep.subr.mxu0 0.0
    %1827 = vmatpush1.msra.mxu0 0.0
    %1828 = vmatprep.subr.mxu0 0.0
    %1829 = vmatpush1.msra.mxu0 0.0
    %1830 = vmatprep.subr.mxu0 0.0
    %1831 = vmatpush1.msra.mxu0 0.0
    %1832 = vmatprep.subr.mxu0 0.0
    %1833 = vmatpush1.msra.mxu0 0.0
    %1834 = vmatprep.subr.mxu0 0.0
    %1835 = vmatpush1.msra.mxu0 0.0
    %1836 = vmatprep.subr.mxu0 0.0
    %1837 = vmatpush1.msra.mxu0 0.0
    %1838 = vmatprep.subr.mxu0 0.0
    %1839 = vmatpush1.msra.mxu0 0.0
    %1840 = vmatprep.subr.mxu0 0.0
    %1841 = vmatpush1.msra.mxu0 0.0
    %1842 = vmatprep.subr.mxu0 0.0
    %1843 = vmatpush1.msra.mxu0 0.0
    %1844 = vmatprep.subr.mxu0 0.0
    %1845 = vmatpush1.msra.mxu0 0.0
    %1846 = vmatprep.subr.mxu0 0.0
    %1847 = vmatpush1.msra.mxu0 0.0
    %1848 = vmatprep.subr.mxu0 0.0
    %1849 = vmatpush1.msra.mxu0 0.0
    %1850 = vmatprep.subr.mxu0 0.0
    %1851 = vmatpush1.msra.mxu0 0.0
    %1852 = vmatprep.mubr.f32.mxu0 0.0
    %1853 = vmatmul.mubr.f32.gmra.mrb[0].mxu0 %v1786
    %v1854 = vpop.f32.mrb[0].mxu0
    %v1855 = vadd.f32 0.0, %v1854
    %v1856 = vpop.f32.mrb[0].mxu0
    %1857 = vdwg.mxu0
    %1858 = vrot.lane.b32.xlu0 %v598, 112
    %v1859 = vpop.permute.xlu0 %1858
    %v1862 = vsel %vm674, %v1400, 0
    %1864 = vmatprep.subr.mxu0 0.0
    %1865 = vmatpush1.msra.mxu0 %v1859
    %1866 = vmatprep.subr.mxu0 0.0
    %1867 = vmatpush1.msra.mxu0 0.0
    %1868 = vmatprep.subr.mxu0 0.0
    %1869 = vmatpush1.msra.mxu0 0.0
    %1870 = vmatprep.subr.mxu0 0.0
    %1871 = vmatpush1.msra.mxu0 0.0
    %1872 = vmatprep.subr.mxu0 0.0
    %1873 = vmatpush1.msra.mxu0 0.0
    %1874 = vmatprep.subr.mxu0 0.0
    %1875 = vmatpush1.msra.mxu0 0.0
    %1876 = vmatprep.subr.mxu0 0.0
    %1877 = vmatpush1.msra.mxu0 0.0
    %1878 = vmatprep.subr.mxu0 0.0
    %1879 = vmatpush1.msra.mxu0 0.0
    %1880 = vmatprep.subr.mxu0 0.0
    %1881 = vmatpush1.msra.mxu0 0.0
    %1882 = vmatprep.subr.mxu0 0.0
    %1883 = vmatpush1.msra.mxu0 0.0
    %1884 = vmatprep.subr.mxu0 0.0
    %1885 = vmatpush1.msra.mxu0 0.0
    %1886 = vmatprep.subr.mxu0 0.0
    %1887 = vmatpush1.msra.mxu0 0.0
    %1888 = vmatprep.subr.mxu0 0.0
    %1889 = vmatpush1.msra.mxu0 0.0
    %1890 = vmatprep.subr.mxu0 0.0
    %1891 = vmatpush1.msra.mxu0 0.0
    %1892 = vmatprep.subr.mxu0 0.0
    %1893 = vmatpush1.msra.mxu0 0.0
    %1894 = vmatprep.subr.mxu0 0.0
    %1895 = vmatpush1.msra.mxu0 0.0
    %1896 = vmatprep.subr.mxu0 0.0
    %1897 = vmatpush1.msra.mxu0 0.0
    %1898 = vmatprep.subr.mxu0 0.0
    %1899 = vmatpush1.msra.mxu0 0.0
    %1900 = vmatprep.subr.mxu0 0.0
    %1901 = vmatpush1.msra.mxu0 0.0
    %1902 = vmatprep.subr.mxu0 0.0
    %1903 = vmatpush1.msra.mxu0 0.0
    %1904 = vmatprep.subr.mxu0 0.0
    %1905 = vmatpush1.msra.mxu0 0.0
    %1906 = vmatprep.subr.mxu0 0.0
    %1907 = vmatpush1.msra.mxu0 0.0
    %1908 = vmatprep.subr.mxu0 0.0
    %1909 = vmatpush1.msra.mxu0 0.0
    %1910 = vmatprep.subr.mxu0 0.0
    %1911 = vmatpush1.msra.mxu0 0.0
    %1912 = vmatprep.subr.mxu0 0.0
    %1913 = vmatpush1.msra.mxu0 0.0
    %1914 = vmatprep.subr.mxu0 0.0
    %1915 = vmatpush1.msra.mxu0 0.0
    %1916 = vmatprep.subr.mxu0 0.0
    %1917 = vmatpush1.msra.mxu0 0.0
    %1918 = vmatprep.subr.mxu0 0.0
    %1919 = vmatpush1.msra.mxu0 0.0
    %1920 = vmatprep.subr.mxu0 0.0
    %1921 = vmatpush1.msra.mxu0 0.0
    %1922 = vmatprep.subr.mxu0 0.0
    %1923 = vmatpush1.msra.mxu0 0.0
    %1924 = vmatprep.subr.mxu0 0.0
    %1925 = vmatpush1.msra.mxu0 0.0
    %1926 = vmatprep.subr.mxu0 0.0
    %1927 = vmatpush1.msra.mxu0 0.0
    %1928 = vmatprep.mubr.f32.mxu0 0.0
    %1929 = vmatmul.mubr.f32.gmra.mrb[0].mxu0 %v1862
    %v1930 = vpop.f32.mrb[0].mxu0
    %v1931 = vadd.f32 0.0, %v1930
    %v1932 = vpop.f32.mrb[0].mxu0
    %1933 = vdwg.mxu0
    %1934 = vrot.lane.b32.xlu0 %v668, 112
    %v1935 = vpop.permute.xlu0 %1934
    %v1938 = vsel %vm674, %v1401, 0
    %1940 = vmatprep.subr.mxu0 0.0
    %1941 = vmatpush1.msra.mxu0 %v1935
    %1942 = vmatprep.subr.mxu0 0.0
    %1943 = vmatpush1.msra.mxu0 0.0
    %1944 = vmatprep.subr.mxu0 0.0
    %1945 = vmatpush1.msra.mxu0 0.0
    %1946 = vmatprep.subr.mxu0 0.0
    %1947 = vmatpush1.msra.mxu0 0.0
    %1948 = vmatprep.subr.mxu0 0.0
    %1949 = vmatpush1.msra.mxu0 0.0
    %1950 = vmatprep.subr.mxu0 0.0
    %1951 = vmatpush1.msra.mxu0 0.0
    %1952 = vmatprep.subr.mxu0 0.0
    %1953 = vmatpush1.msra.mxu0 0.0
    %1954 = vmatprep.subr.mxu0 0.0
    %1955 = vmatpush1.msra.mxu0 0.0
    %1956 = vmatprep.subr.mxu0 0.0
    %1957 = vmatpush1.msra.mxu0 0.0
    %1958 = vmatprep.subr.mxu0 0.0
    %1959 = vmatpush1.msra.mxu0 0.0
    %1960 = vmatprep.subr.mxu0 0.0
    %1961 = vmatpush1.msra.mxu0 0.0
    %1962 = vmatprep.subr.mxu0 0.0
    %1963 = vmatpush1.msra.mxu0 0.0
    %1964 = vmatprep.subr.mxu0 0.0
    %1965 = vmatpush1.msra.mxu0 0.0
    %1966 = vmatprep.subr.mxu0 0.0
    %1967 = vmatpush1.msra.mxu0 0.0
    %1968 = vmatprep.subr.mxu0 0.0
    %1969 = vmatpush1.msra.mxu0 0.0
    %1970 = vmatprep.subr.mxu0 0.0
    %1971 = vmatpush1.msra.mxu0 0.0
    %1972 = vmatprep.subr.mxu0 0.0
    %1973 = vmatpush1.msra.mxu0 0.0
    %1974 = vmatprep.subr.mxu0 0.0
    %1975 = vmatpush1.msra.mxu0 0.0
    %1976 = vmatprep.subr.mxu0 0.0
    %1977 = vmatpush1.msra.mxu0 0.0
    %1978 = vmatprep.subr.mxu0 0.0
    %1979 = vmatpush1.msra.mxu0 0.0
    %1980 = vmatprep.subr.mxu0 0.0
    %1981 = vmatpush1.msra.mxu0 0.0
    %1982 = vmatprep.subr.mxu0 0.0
    %1983 = vmatpush1.msra.mxu0 0.0
    %1984 = vmatprep.subr.mxu0 0.0
    %1985 = vmatpush1.msra.mxu0 0.0
    %1986 = vmatprep.subr.mxu0 0.0
    %1987 = vmatpush1.msra.mxu0 0.0
    %1988 = vmatprep.subr.mxu0 0.0
    %1989 = vmatpush1.msra.mxu0 0.0
    %1990 = vmatprep.subr.mxu0 0.0
    %1991 = vmatpush1.msra.mxu0 0.0
    %1992 = vmatprep.subr.mxu0 0.0
    %1993 = vmatpush1.msra.mxu0 0.0
    %1994 = vmatprep.subr.mxu0 0.0
    %1995 = vmatpush1.msra.mxu0 0.0
    %1996 = vmatprep.subr.mxu0 0.0
    %1997 = vmatpush1.msra.mxu0 0.0
    %1998 = vmatprep.subr.mxu0 0.0
    %1999 = vmatpush1.msra.mxu0 0.0
    %2000 = vmatprep.subr.mxu0 0.0
    %2001 = vmatpush1.msra.mxu0 0.0
    %2002 = vmatprep.subr.mxu0 0.0
    %2003 = vmatpush1.msra.mxu0 0.0
    %2004 = vmatprep.mubr.f32.mxu0 0.0
    %2005 = vmatmul.mubr.f32.gmra.mrb[0].mxu0 %v1938
    %v2006 = vpop.f32.mrb[0].mxu0
    %v2007 = vadd.f32 0.0, %v2006
    %v2008 = vpop.f32.mrb[0].mxu0
    %2009 = vdwg.mxu0
    %v2010 = vld [vmem:[%s4] sm:$0xff]
    %v2011 = vld [vmem:[%s4 + $0x8] sm:$0xff]
    %v2012 = vld [vmem:[%s4 + $0x10] sm:$0xff]
    %v2013 = vld [vmem:[%s4 + $0x18] sm:$0xff]
    %v2015 = vsel %vm674, %v1475, 0
    %2017 = vmatprep.subr.mxu0 0.0
    %2018 = vmatpush1.msra.mxu0 %v2010
    %2019 = vmatprep.subr.mxu0 0.0
    %2020 = vmatpush1.msra.mxu0 0.0
    %2021 = vmatprep.subr.mxu0 0.0
    %2022 = vmatpush1.msra.mxu0 0.0
    %2023 = vmatprep.subr.mxu0 0.0
    %2024 = vmatpush1.msra.mxu0 0.0
    %2025 = vmatprep.subr.mxu0 0.0
    %2026 = vmatpush1.msra.mxu0 0.0
    %2027 = vmatprep.subr.mxu0 0.0
    %2028 = vmatpush1.msra.mxu0 0.0
    %2029 = vmatprep.subr.mxu0 0.0
    %2030 = vmatpush1.msra.mxu0 0.0
    %2031 = vmatprep.subr.mxu0 0.0
    %2032 = vmatpush1.msra.mxu0 0.0
    %2033 = vmatprep.subr.mxu0 0.0
    %2034 = vmatpush1.msra.mxu0 0.0
    %2035 = vmatprep.subr.mxu0 0.0
    %2036 = vmatpush1.msra.mxu0 0.0
    %2037 = vmatprep.subr.mxu0 0.0
    %2038 = vmatpush1.msra.mxu0 0.0
    %2039 = vmatprep.subr.mxu0 0.0
    %2040 = vmatpush1.msra.mxu0 0.0
    %2041 = vmatprep.subr.mxu0 0.0
    %2042 = vmatpush1.msra.mxu0 0.0
    %2043 = vmatprep.subr.mxu0 0.0
    %2044 = vmatpush1.msra.mxu0 0.0
    %2045 = vmatprep.subr.mxu0 0.0
    %2046 = vmatpush1.msra.mxu0 0.0
    %2047 = vmatprep.subr.mxu0 0.0
    %2048 = vmatpush1.msra.mxu0 0.0
    %2049 = vmatprep.subr.mxu0 0.0
    %2050 = vmatpush1.msra.mxu0 0.0
    %2051 = vmatprep.subr.mxu0 0.0
    %2052 = vmatpush1.msra.mxu0 0.0
    %2053 = vmatprep.subr.mxu0 0.0
    %2054 = vmatpush1.msra.mxu0 0.0
    %2055 = vmatprep.subr.mxu0 0.0
    %2056 = vmatpush1.msra.mxu0 0.0
    %2057 = vmatprep.subr.mxu0 0.0
    %2058 = vmatpush1.msra.mxu0 0.0
    %2059 = vmatprep.subr.mxu0 0.0
    %2060 = vmatpush1.msra.mxu0 0.0
    %2061 = vmatprep.subr.mxu0 0.0
    %2062 = vmatpush1.msra.mxu0 0.0
    %2063 = vmatprep.subr.mxu0 0.0
    %2064 = vmatpush1.msra.mxu0 0.0
    %2065 = vmatprep.subr.mxu0 0.0
    %2066 = vmatpush1.msra.mxu0 0.0
    %2067 = vmatprep.subr.mxu0 0.0
    %2068 = vmatpush1.msra.mxu0 0.0
    %2069 = vmatprep.subr.mxu0 0.0
    %2070 = vmatpush1.msra.mxu0 0.0
    %2071 = vmatprep.subr.mxu0 0.0
    %2072 = vmatpush1.msra.mxu0 0.0
    %2073 = vmatprep.subr.mxu0 0.0
    %2074 = vmatpush1.msra.mxu0 0.0
    %2075 = vmatprep.subr.mxu0 0.0
    %2076 = vmatpush1.msra.mxu0 0.0
    %2077 = vmatprep.subr.mxu0 0.0
    %2078 = vmatpush1.msra.mxu0 0.0
    %2079 = vmatprep.subr.mxu0 0.0
    %2080 = vmatpush1.msra.mxu0 0.0
    %2081 = vmatprep.mubr.f32.mxu0 0.0
    %2082 = vmatmul.mubr.f32.gmra.mrb[0].mxu0 %v2015
    %v2083 = vpop.f32.mrb[0].mxu0
    %v2084 = vadd.f32 0.0, %v2083
    %v2085 = vpop.f32.mrb[0].mxu0
    %2086 = vdwg.mxu0
    %v2088 = vsel %vm674, %v1551, 0
    %2090 = vmatprep.subr.mxu0 0.0
    %2091 = vmatpush1.msra.mxu0 %v2011
    %2092 = vmatprep.subr.mxu0 0.0
    %2093 = vmatpush1.msra.mxu0 0.0
    %2094 = vmatprep.subr.mxu0 0.0
    %2095 = vmatpush1.msra.mxu0 0.0
    %2096 = vmatprep.subr.mxu0 0.0
    %2097 = vmatpush1.msra.mxu0 0.0
    %2098 = vmatprep.subr.mxu0 0.0
    %2099 = vmatpush1.msra.mxu0 0.0
    %2100 = vmatprep.subr.mxu0 0.0
    %2101 = vmatpush1.msra.mxu0 0.0
    %2102 = vmatprep.subr.mxu0 0.0
    %2103 = vmatpush1.msra.mxu0 0.0
    %2104 = vmatprep.subr.mxu0 0.0
    %2105 = vmatpush1.msra.mxu0 0.0
    %2106 = vmatprep.subr.mxu0 0.0
    %2107 = vmatpush1.msra.mxu0 0.0
    %2108 = vmatprep.subr.mxu0 0.0
    %2109 = vmatpush1.msra.mxu0 0.0
    %2110 = vmatprep.subr.mxu0 0.0
    %2111 = vmatpush1.msra.mxu0 0.0
    %2112 = vmatprep.subr.mxu0 0.0
    %2113 = vmatpush1.msra.mxu0 0.0
    %2114 = vmatprep.subr.mxu0 0.0
    %2115 = vmatpush1.msra.mxu0 0.0
    %2116 = vmatprep.subr.mxu0 0.0
    %2117 = vmatpush1.msra.mxu0 0.0
    %2118 = vmatprep.subr.mxu0 0.0
    %2119 = vmatpush1.msra.mxu0 0.0
    %2120 = vmatprep.subr.mxu0 0.0
    %2121 = vmatpush1.msra.mxu0 0.0
    %2122 = vmatprep.subr.mxu0 0.0
    %2123 = vmatpush1.msra.mxu0 0.0
    %2124 = vmatprep.subr.mxu0 0.0
    %2125 = vmatpush1.msra.mxu0 0.0
    %2126 = vmatprep.subr.mxu0 0.0
    %2127 = vmatpush1.msra.mxu0 0.0
    %2128 = vmatprep.subr.mxu0 0.0
    %2129 = vmatpush1.msra.mxu0 0.0
    %2130 = vmatprep.subr.mxu0 0.0
    %2131 = vmatpush1.msra.mxu0 0.0
    %2132 = vmatprep.subr.mxu0 0.0
    %2133 = vmatpush1.msra.mxu0 0.0
    %2134 = vmatprep.subr.mxu0 0.0
    %2135 = vmatpush1.msra.mxu0 0.0
    %2136 = vmatprep.subr.mxu0 0.0
    %2137 = vmatpush1.msra.mxu0 0.0
    %2138 = vmatprep.subr.mxu0 0.0
    %2139 = vmatpush1.msra.mxu0 0.0
    %2140 = vmatprep.subr.mxu0 0.0
    %2141 = vmatpush1.msra.mxu0 0.0
    %2142 = vmatprep.subr.mxu0 0.0
    %2143 = vmatpush1.msra.mxu0 0.0
    %2144 = vmatprep.subr.mxu0 0.0
    %2145 = vmatpush1.msra.mxu0 0.0
    %2146 = vmatprep.subr.mxu0 0.0
    %2147 = vmatpush1.msra.mxu0 0.0
    %2148 = vmatprep.subr.mxu0 0.0
    %2149 = vmatpush1.msra.mxu0 0.0
    %2150 = vmatprep.subr.mxu0 0.0
    %2151 = vmatpush1.msra.mxu0 0.0
    %2152 = vmatprep.subr.mxu0 0.0
    %2153 = vmatpush1.msra.mxu0 0.0
    %2154 = vmatprep.mubr.f32.mxu0 0.0
    %2155 = vmatmul.mubr.f32.gmra.mrb[0].mxu0 %v2088
    %v2156 = vpop.f32.mrb[0].mxu0
    %v2157 = vadd.f32 0.0, %v2156
    %v2158 = vpop.f32.mrb[0].mxu0
    %2159 = vdwg.mxu0
    %v2161 = vsel %vm674, %v1627, 0
    %2163 = vmatprep.subr.mxu0 0.0
    %2164 = vmatpush1.msra.mxu0 %v2012
    %2165 = vmatprep.subr.mxu0 0.0
    %2166 = vmatpush1.msra.mxu0 0.0
    %2167 = vmatprep.subr.mxu0 0.0
    %2168 = vmatpush1.msra.mxu0 0.0
    %2169 = vmatprep.subr.mxu0 0.0
    %2170 = vmatpush1.msra.mxu0 0.0
    %2171 = vmatprep.subr.mxu0 0.0
    %2172 = vmatpush1.msra.mxu0 0.0
    %2173 = vmatprep.subr.mxu0 0.0
    %2174 = vmatpush1.msra.mxu0 0.0
    %2175 = vmatprep.subr.mxu0 0.0
    %2176 = vmatpush1.msra.mxu0 0.0
    %2177 = vmatprep.subr.mxu0 0.0
    %2178 = vmatpush1.msra.mxu0 0.0
    %2179 = vmatprep.subr.mxu0 0.0
    %2180 = vmatpush1.msra.mxu0 0.0
    %2181 = vmatprep.subr.mxu0 0.0
    %2182 = vmatpush1.msra.mxu0 0.0
    %2183 = vmatprep.subr.mxu0 0.0
    %2184 = vmatpush1.msra.mxu0 0.0
    %2185 = vmatprep.subr.mxu0 0.0
    %2186 = vmatpush1.msra.mxu0 0.0
    %2187 = vmatprep.subr.mxu0 0.0
    %2188 = vmatpush1.msra.mxu0 0.0
    %2189 = vmatprep.subr.mxu0 0.0
    %2190 = vmatpush1.msra.mxu0 0.0
    %2191 = vmatprep.subr.mxu0 0.0
    %2192 = vmatpush1.msra.mxu0 0.0
    %2193 = vmatprep.subr.mxu0 0.0
    %2194 = vmatpush1.msra.mxu0 0.0
    %2195 = vmatprep.subr.mxu0 0.0
    %2196 = vmatpush1.msra.mxu0 0.0
    %2197 = vmatprep.subr.mxu0 0.0
    %2198 = vmatpush1.msra.mxu0 0.0
    %2199 = vmatprep.subr.mxu0 0.0
    %2200 = vmatpush1.msra.mxu0 0.0
    %2201 = vmatprep.subr.mxu0 0.0
    %2202 = vmatpush1.msra.mxu0 0.0
    %2203 = vmatprep.subr.mxu0 0.0
    %2204 = vmatpush1.msra.mxu0 0.0
    %2205 = vmatprep.subr.mxu0 0.0
    %2206 = vmatpush1.msra.mxu0 0.0
    %2207 = vmatprep.subr.mxu0 0.0
    %2208 = vmatpush1.msra.mxu0 0.0
    %2209 = vmatprep.subr.mxu0 0.0
    %2210 = vmatpush1.msra.mxu0 0.0
    %2211 = vmatprep.subr.mxu0 0.0
    %2212 = vmatpush1.msra.mxu0 0.0
    %2213 = vmatprep.subr.mxu0 0.0
    %2214 = vmatpush1.msra.mxu0 0.0
    %2215 = vmatprep.subr.mxu0 0.0
    %2216 = vmatpush1.msra.mxu0 0.0
    %2217 = vmatprep.subr.mxu0 0.0
    %2218 = vmatpush1.msra.mxu0 0.0
    %2219 = vmatprep.subr.mxu0 0.0
    %2220 = vmatpush1.msra.mxu0 0.0
    %2221 = vmatprep.subr.mxu0 0.0
    %2222 = vmatpush1.msra.mxu0 0.0
    %2223 = vmatprep.subr.mxu0 0.0
    %2224 = vmatpush1.msra.mxu0 0.0
    %2225 = vmatprep.subr.mxu0 0.0
    %2226 = vmatpush1.msra.mxu0 0.0
    %2227 = vmatprep.mubr.f32.mxu0 0.0
    %2228 = vmatmul.mubr.f32.gmra.mrb[0].mxu0 %v2161
    %v2229 = vpop.f32.mrb[0].mxu0
    %v2230 = vadd.f32 0.0, %v2229
    %v2231 = vpop.f32.mrb[0].mxu0
    %2232 = vdwg.mxu0
    %v2234 = vsel %vm674, %v1703, 0
    %2236 = vmatprep.subr.mxu0 0.0
    %2237 = vmatpush1.msra.mxu0 %v2013
    %2238 = vmatprep.subr.mxu0 0.0
    %2239 = vmatpush1.msra.mxu0 0.0
    %2240 = vmatprep.subr.mxu0 0.0
    %2241 = vmatpush1.msra.mxu0 0.0
    %2242 = vmatprep.subr.mxu0 0.0
    %2243 = vmatpush1.msra.mxu0 0.0
    %2244 = vmatprep.subr.mxu0 0.0
    %2245 = vmatpush1.msra.mxu0 0.0
    %2246 = vmatprep.subr.mxu0 0.0
    %2247 = vmatpush1.msra.mxu0 0.0
    %2248 = vmatprep.subr.mxu0 0.0
    %2249 = vmatpush1.msra.mxu0 0.0
    %2250 = vmatprep.subr.mxu0 0.0
    %2251 = vmatpush1.msra.mxu0 0.0
    %2252 = vmatprep.subr.mxu0 0.0
    %2253 = vmatpush1.msra.mxu0 0.0
    %2254 = vmatprep.subr.mxu0 0.0
    %2255 = vmatpush1.msra.mxu0 0.0
    %2256 = vmatprep.subr.mxu0 0.0
    %2257 = vmatpush1.msra.mxu0 0.0
    %2258 = vmatprep.subr.mxu0 0.0
    %2259 = vmatpush1.msra.mxu0 0.0
    %2260 = vmatprep.subr.mxu0 0.0
    %2261 = vmatpush1.msra.mxu0 0.0
    %2262 = vmatprep.subr.mxu0 0.0
    %2263 = vmatpush1.msra.mxu0 0.0
    %2264 = vmatprep.subr.mxu0 0.0
    %2265 = vmatpush1.msra.mxu0 0.0
    %2266 = vmatprep.subr.mxu0 0.0
    %2267 = vmatpush1.msra.mxu0 0.0
    %2268 = vmatprep.subr.mxu0 0.0
    %2269 = vmatpush1.msra.mxu0 0.0
    %2270 = vmatprep.subr.mxu0 0.0
    %2271 = vmatpush1.msra.mxu0 0.0
    %2272 = vmatprep.subr.mxu0 0.0
    %2273 = vmatpush1.msra.mxu0 0.0
    %2274 = vmatprep.subr.mxu0 0.0
    %2275 = vmatpush1.msra.mxu0 0.0
    %2276 = vmatprep.subr.mxu0 0.0
    %2277 = vmatpush1.msra.mxu0 0.0
    %2278 = vmatprep.subr.mxu0 0.0
    %2279 = vmatpush1.msra.mxu0 0.0
    %2280 = vmatprep.subr.mxu0 0.0
    %2281 = vmatpush1.msra.mxu0 0.0
    %2282 = vmatprep.subr.mxu0 0.0
    %2283 = vmatpush1.msra.mxu0 0.0
    %2284 = vmatprep.subr.mxu0 0.0
    %2285 = vmatpush1.msra.mxu0 0.0
    %2286 = vmatprep.subr.mxu0 0.0
    %2287 = vmatpush1.msra.mxu0 0.0
    %2288 = vmatprep.subr.mxu0 0.0
    %2289 = vmatpush1.msra.mxu0 0.0
    %2290 = vmatprep.subr.mxu0 0.0
    %2291 = vmatpush1.msra.mxu0 0.0
    %2292 = vmatprep.subr.mxu0 0.0
    %2293 = vmatpush1.msra.mxu0 0.0
    %2294 = vmatprep.subr.mxu0 0.0
    %2295 = vmatpush1.msra.mxu0 0.0
    %2296 = vmatprep.subr.mxu0 0.0
    %2297 = vmatpush1.msra.mxu0 0.0
    %2298 = vmatprep.subr.mxu0 0.0
    %2299 = vmatpush1.msra.mxu0 0.0
    %2300 = vmatprep.mubr.f32.mxu0 0.0
    %2301 = vmatmul.mubr.f32.gmra.mrb[0].mxu0 %v2234
    %v2302 = vpop.f32.mrb[0].mxu0
    %v2303 = vadd.f32 0.0, %v2302
    %v2304 = vpop.f32.mrb[0].mxu0
    %2305 = vdwg.mxu0
    %v2307 = vsel %vm674, %v1779, 0
    %2309 = vmatprep.subr.mxu0 0.0
    %2310 = vmatpush1.msra.mxu0 %v2010
    %2311 = vmatprep.subr.mxu0 0.0
    %2312 = vmatpush1.msra.mxu0 0.0
    %2313 = vmatprep.subr.mxu0 0.0
    %2314 = vmatpush1.msra.mxu0 0.0
    %2315 = vmatprep.subr.mxu0 0.0
    %2316 = vmatpush1.msra.mxu0 0.0
    %2317 = vmatprep.subr.mxu0 0.0
    %2318 = vmatpush1.msra.mxu0 0.0
    %2319 = vmatprep.subr.mxu0 0.0
    %2320 = vmatpush1.msra.mxu0 0.0
    %2321 = vmatprep.subr.mxu0 0.0
    %2322 = vmatpush1.msra.mxu0 0.0
    %2323 = vmatprep.subr.mxu0 0.0
    %2324 = vmatpush1.msra.mxu0 0.0
    %2325 = vmatprep.subr.mxu0 0.0
    %2326 = vmatpush1.msra.mxu0 0.0
    %2327 = vmatprep.subr.mxu0 0.0
    %2328 = vmatpush1.msra.mxu0 0.0
    %2329 = vmatprep.subr.mxu0 0.0
    %2330 = vmatpush1.msra.mxu0 0.0
    %2331 = vmatprep.subr.mxu0 0.0
    %2332 = vmatpush1.msra.mxu0 0.0
    %2333 = vmatprep.subr.mxu0 0.0
    %2334 = vmatpush1.msra.mxu0 0.0
    %2335 = vmatprep.subr.mxu0 0.0
    %2336 = vmatpush1.msra.mxu0 0.0
    %2337 = vmatprep.subr.mxu0 0.0
    %2338 = vmatpush1.msra.mxu0 0.0
    %2339 = vmatprep.subr.mxu0 0.0
    %2340 = vmatpush1.msra.mxu0 0.0
    %2341 = vmatprep.subr.mxu0 0.0
    %2342 = vmatpush1.msra.mxu0 0.0
    %2343 = vmatprep.subr.mxu0 0.0
    %2344 = vmatpush1.msra.mxu0 0.0
    %2345 = vmatprep.subr.mxu0 0.0
    %2346 = vmatpush1.msra.mxu0 0.0
    %2347 = vmatprep.subr.mxu0 0.0
    %2348 = vmatpush1.msra.mxu0 0.0
    %2349 = vmatprep.subr.mxu0 0.0
    %2350 = vmatpush1.msra.mxu0 0.0
    %2351 = vmatprep.subr.mxu0 0.0
    %2352 = vmatpush1.msra.mxu0 0.0
    %2353 = vmatprep.subr.mxu0 0.0
    %2354 = vmatpush1.msra.mxu0 0.0
    %2355 = vmatprep.subr.mxu0 0.0
    %2356 = vmatpush1.msra.mxu0 0.0
    %2357 = vmatprep.subr.mxu0 0.0
    %2358 = vmatpush1.msra.mxu0 0.0
    %2359 = vmatprep.subr.mxu0 0.0
    %2360 = vmatpush1.msra.mxu0 0.0
    %2361 = vmatprep.subr.mxu0 0.0
    %2362 = vmatpush1.msra.mxu0 0.0
    %2363 = vmatprep.subr.mxu0 0.0
    %2364 = vmatpush1.msra.mxu0 0.0
    %2365 = vmatprep.subr.mxu0 0.0
    %2366 = vmatpush1.msra.mxu0 0.0
    %2367 = vmatprep.subr.mxu0 0.0
    %2368 = vmatpush1.msra.mxu0 0.0
    %2369 = vmatprep.subr.mxu0 0.0
    %2370 = vmatpush1.msra.mxu0 0.0
    %2371 = vmatprep.subr.mxu0 0.0
    %2372 = vmatpush1.msra.mxu0 0.0
    %2373 = vmatprep.mubr.f32.mxu0 0.0
    %2374 = vmatmul.mubr.f32.gmra.mrb[0].mxu0 %v2307
    %v2375 = vpop.f32.mrb[0].mxu0
    %v2376 = vadd.f32 0.0, %v2375
    %v2377 = vpop.f32.mrb[0].mxu0
    %2378 = vdwg.mxu0
    %v2380 = vsel %vm674, %v1855, 0
    %2382 = vmatprep.subr.mxu0 0.0
    %2383 = vmatpush1.msra.mxu0 %v2011
    %2384 = vmatprep.subr.mxu0 0.0
    %2385 = vmatpush1.msra.mxu0 0.0
    %2386 = vmatprep.subr.mxu0 0.0
    %2387 = vmatpush1.msra.mxu0 0.0
    %2388 = vmatprep.subr.mxu0 0.0
    %2389 = vmatpush1.msra.mxu0 0.0
    %2390 = vmatprep.subr.mxu0 0.0
    %2391 = vmatpush1.msra.mxu0 0.0
    %2392 = vmatprep.subr.mxu0 0.0
    %2393 = vmatpush1.msra.mxu0 0.0
    %2394 = vmatprep.subr.mxu0 0.0
    %2395 = vmatpush1.msra.mxu0 0.0
    %2396 = vmatprep.subr.mxu0 0.0
    %2397 = vmatpush1.msra.mxu0 0.0
    %2398 = vmatprep.subr.mxu0 0.0
    %2399 = vmatpush1.msra.mxu0 0.0
    %2400 = vmatprep.subr.mxu0 0.0
    %2401 = vmatpush1.msra.mxu0 0.0
    %2402 = vmatprep.subr.mxu0 0.0
    %2403 = vmatpush1.msra.mxu0 0.0
    %2404 = vmatprep.subr.mxu0 0.0
    %2405 = vmatpush1.msra.mxu0 0.0
    %2406 = vmatprep.subr.mxu0 0.0
    %2407 = vmatpush1.msra.mxu0 0.0
    %2408 = vmatprep.subr.mxu0 0.0
    %2409 = vmatpush1.msra.mxu0 0.0
    %2410 = vmatprep.subr.mxu0 0.0
    %2411 = vmatpush1.msra.mxu0 0.0
    %2412 = vmatprep.subr.mxu0 0.0
    %2413 = vmatpush1.msra.mxu0 0.0
    %2414 = vmatprep.subr.mxu0 0.0
    %2415 = vmatpush1.msra.mxu0 0.0
    %2416 = vmatprep.subr.mxu0 0.0
    %2417 = vmatpush1.msra.mxu0 0.0
    %2418 = vmatprep.subr.mxu0 0.0
    %2419 = vmatpush1.msra.mxu0 0.0
    %2420 = vmatprep.subr.mxu0 0.0
    %2421 = vmatpush1.msra.mxu0 0.0
    %2422 = vmatprep.subr.mxu0 0.0
    %2423 = vmatpush1.msra.mxu0 0.0
    %2424 = vmatprep.subr.mxu0 0.0
    %2425 = vmatpush1.msra.mxu0 0.0
    %2426 = vmatprep.subr.mxu0 0.0
    %2427 = vmatpush1.msra.mxu0 0.0
    %2428 = vmatprep.subr.mxu0 0.0
    %2429 = vmatpush1.msra.mxu0 0.0
    %2430 = vmatprep.subr.mxu0 0.0
    %2431 = vmatpush1.msra.mxu0 0.0
    %2432 = vmatprep.subr.mxu0 0.0
    %2433 = vmatpush1.msra.mxu0 0.0
    %2434 = vmatprep.subr.mxu0 0.0
    %2435 = vmatpush1.msra.mxu0 0.0
    %2436 = vmatprep.subr.mxu0 0.0
    %2437 = vmatpush1.msra.mxu0 0.0
    %2438 = vmatprep.subr.mxu0 0.0
    %2439 = vmatpush1.msra.mxu0 0.0
    %2440 = vmatprep.subr.mxu0 0.0
    %2441 = vmatpush1.msra.mxu0 0.0
    %2442 = vmatprep.subr.mxu0 0.0
    %2443 = vmatpush1.msra.mxu0 0.0
    %2444 = vmatprep.subr.mxu0 0.0
    %2445 = vmatpush1.msra.mxu0 0.0
    %2446 = vmatprep.mubr.f32.mxu0 0.0
    %2447 = vmatmul.mubr.f32.gmra.mrb[0].mxu0 %v2380
    %v2448 = vpop.f32.mrb[0].mxu0
    %v2449 = vadd.f32 0.0, %v2448
    %v2450 = vpop.f32.mrb[0].mxu0
    %2451 = vdwg.mxu0
    %v2453 = vsel %vm674, %v1931, 0
    %2455 = vmatprep.subr.mxu0 0.0
    %2456 = vmatpush1.msra.mxu0 %v2012
    %2457 = vmatprep.subr.mxu0 0.0
    %2458 = vmatpush1.msra.mxu0 0.0
    %2459 = vmatprep.subr.mxu0 0.0
    %2460 = vmatpush1.msra.mxu0 0.0
    %2461 = vmatprep.subr.mxu0 0.0
    %2462 = vmatpush1.msra.mxu0 0.0
    %2463 = vmatprep.subr.mxu0 0.0
    %2464 = vmatpush1.msra.mxu0 0.0
    %2465 = vmatprep.subr.mxu0 0.0
    %2466 = vmatpush1.msra.mxu0 0.0
    %2467 = vmatprep.subr.mxu0 0.0
    %2468 = vmatpush1.msra.mxu0 0.0
    %2469 = vmatprep.subr.mxu0 0.0
    %2470 = vmatpush1.msra.mxu0 0.0
    %2471 = vmatprep.subr.mxu0 0.0
    %2472 = vmatpush1.msra.mxu0 0.0
    %2473 = vmatprep.subr.mxu0 0.0
    %2474 = vmatpush1.msra.mxu0 0.0
    %2475 = vmatprep.subr.mxu0 0.0
    %2476 = vmatpush1.msra.mxu0 0.0
    %2477 = vmatprep.subr.mxu0 0.0
    %2478 = vmatpush1.msra.mxu0 0.0
    %2479 = vmatprep.subr.mxu0 0.0
    %2480 = vmatpush1.msra.mxu0 0.0
    %2481 = vmatprep.subr.mxu0 0.0
    %2482 = vmatpush1.msra.mxu0 0.0
    %2483 = vmatprep.subr.mxu0 0.0
    %2484 = vmatpush1.msra.mxu0 0.0
    %2485 = vmatprep.subr.mxu0 0.0
    %2486 = vmatpush1.msra.mxu0 0.0
    %2487 = vmatprep.subr.mxu0 0.0
    %2488 = vmatpush1.msra.mxu0 0.0
    %2489 = vmatprep.subr.mxu0 0.0
    %2490 = vmatpush1.msra.mxu0 0.0
    %2491 = vmatprep.subr.mxu0 0.0
    %2492 = vmatpush1.msra.mxu0 0.0
    %2493 = vmatprep.subr.mxu0 0.0
    %2494 = vmatpush1.msra.mxu0 0.0
    %2495 = vmatprep.subr.mxu0 0.0
    %2496 = vmatpush1.msra.mxu0 0.0
    %2497 = vmatprep.subr.mxu0 0.0
    %2498 = vmatpush1.msra.mxu0 0.0
    %2499 = vmatprep.subr.mxu0 0.0
    %2500 = vmatpush1.msra.mxu0 0.0
    %2501 = vmatprep.subr.mxu0 0.0
    %2502 = vmatpush1.msra.mxu0 0.0
    %2503 = vmatprep.subr.mxu0 0.0
    %2504 = vmatpush1.msra.mxu0 0.0
    %2505 = vmatprep.subr.mxu0 0.0
    %2506 = vmatpush1.msra.mxu0 0.0
    %2507 = vmatprep.subr.mxu0 0.0
    %2508 = vmatpush1.msra.mxu0 0.0
    %2509 = vmatprep.subr.mxu0 0.0
    %2510 = vmatpush1.msra.mxu0 0.0
    %2511 = vmatprep.subr.mxu0 0.0
    %2512 = vmatpush1.msra.mxu0 0.0
    %2513 = vmatprep.subr.mxu0 0.0
    %2514 = vmatpush1.msra.mxu0 0.0
    %2515 = vmatprep.subr.mxu0 0.0
    %2516 = vmatpush1.msra.mxu0 0.0
    %2517 = vmatprep.subr.mxu0 0.0
    %2518 = vmatpush1.msra.mxu0 0.0
    %2519 = vmatprep.mubr.f32.mxu0 0.0
    %2520 = vmatmul.mubr.f32.gmra.mrb[0].mxu0 %v2453
    %v2521 = vpop.f32.mrb[0].mxu0
    %v2522 = vadd.f32 0.0, %v2521
    %v2523 = vpop.f32.mrb[0].mxu0
    %2524 = vdwg.mxu0
    %v2526 = vsel %vm674, %v2007, 0
    %2528 = vmatprep.subr.mxu0 0.0
    %2529 = vmatpush1.msra.mxu0 %v2013
    %2530 = vmatprep.subr.mxu0 0.0
    %2531 = vmatpush1.msra.mxu0 0.0
    %2532 = vmatprep.subr.mxu0 0.0
    %2533 = vmatpush1.msra.mxu0 0.0
    %2534 = vmatprep.subr.mxu0 0.0
    %2535 = vmatpush1.msra.mxu0 0.0
    %2536 = vmatprep.subr.mxu0 0.0
    %2537 = vmatpush1.msra.mxu0 0.0
    %2538 = vmatprep.subr.mxu0 0.0
    %2539 = vmatpush1.msra.mxu0 0.0
    %2540 = vmatprep.subr.mxu0 0.0
    %2541 = vmatpush1.msra.mxu0 0.0
    %2542 = vmatprep.subr.mxu0 0.0
    %2543 = vmatpush1.msra.mxu0 0.0
    %2544 = vmatprep.subr.mxu0 0.0
    %2545 = vmatpush1.msra.mxu0 0.0
    %2546 = vmatprep.subr.mxu0 0.0
    %2547 = vmatpush1.msra.mxu0 0.0
    %2548 = vmatprep.subr.mxu0 0.0
    %2549 = vmatpush1.msra.mxu0 0.0
    %2550 = vmatprep.subr.mxu0 0.0
    %2551 = vmatpush1.msra.mxu0 0.0
    %2552 = vmatprep.subr.mxu0 0.0
    %2553 = vmatpush1.msra.mxu0 0.0
    %2554 = vmatprep.subr.mxu0 0.0
    %2555 = vmatpush1.msra.mxu0 0.0
    %2556 = vmatprep.subr.mxu0 0.0
    %2557 = vmatpush1.msra.mxu0 0.0
    %2558 = vmatprep.subr.mxu0 0.0
    %2559 = vmatpush1.msra.mxu0 0.0
    %2560 = vmatprep.subr.mxu0 0.0
    %2561 = vmatpush1.msra.mxu0 0.0
    %2562 = vmatprep.subr.mxu0 0.0
    %2563 = vmatpush1.msra.mxu0 0.0
    %2564 = vmatprep.subr.mxu0 0.0
    %2565 = vmatpush1.msra.mxu0 0.0
    %2566 = vmatprep.subr.mxu0 0.0
    %2567 = vmatpush1.msra.mxu0 0.0
    %2568 = vmatprep.subr.mxu0 0.0
    %2569 = vmatpush1.msra.mxu0 0.0
    %2570 = vmatprep.subr.mxu0 0.0
    %2571 = vmatpush1.msra.mxu0 0.0
    %2572 = vmatprep.subr.mxu0 0.0
    %2573 = vmatpush1.msra.mxu0 0.0
    %2574 = vmatprep.subr.mxu0 0.0
    %2575 = vmatpush1.msra.mxu0 0.0
    %2576 = vmatprep.subr.mxu0 0.0
    %2577 = vmatpush1.msra.mxu0 0.0
    %2578 = vmatprep.subr.mxu0 0.0
    %2579 = vmatpush1.msra.mxu0 0.0
    %2580 = vmatprep.subr.mxu0 0.0
    %2581 = vmatpush1.msra.mxu0 0.0
    %2582 = vmatprep.subr.mxu0 0.0
    %2583 = vmatpush1.msra.mxu0 0.0
    %2584 = vmatprep.subr.mxu0 0.0
    %2585 = vmatpush1.msra.mxu0 0.0
    %2586 = vmatprep.subr.mxu0 0.0
    %2587 = vmatpush1.msra.mxu0 0.0
    %2588 = vmatprep.subr.mxu0 0.0
    %2589 = vmatpush1.msra.mxu0 0.0
    %2590 = vmatprep.subr.mxu0 0.0
    %2591 = vmatpush1.msra.mxu0 0.0
    %2592 = vmatprep.mubr.f32.mxu0 0.0
    %2593 = vmatmul.mubr.f32.gmra.mrb[0].mxu0 %v2526
    %v2594 = vpop.f32.mrb[0].mxu0
    %v2595 = vadd.f32 0.0, %v2594
    %v2596 = vpop.f32.mrb[0].mxu0
    %2597 = vdwg.mxu0
    %v2598 = vadd.f32 %v2084, %v2157
    %v2599 = vadd.f32 %v2376, %v2449
    %v2600 = vadd.f32 %v2598, %v2230
    %v2601 = vadd.f32 %v2599, %v2522
    %v2602 = vadd.f32 %v2600, %v2303
    %v2603 = vadd.f32 %v2601, %v2595
    %v2604 = vlaneseq
    %v2605 = vshrl.u32 %v2604, 7
    %v2606 = vsub.s32 0, %v2605
    %v2607 = vrot.slane %v31, %v2606
    %v2608 = vadd.f32 %v2602, %v2607
    %v2609 = vadd.f32 %v2603, %v2607
    %v2610 = vsel %vm104, %v2608, 0.0
    %2611 = vadd.xlane.f32.xlu0 %v2610
    %v2612 = vpop.xlane.xlu0 %2611
    %v2613 = vsel %vm104, %v2609, 0.0
    %2614 = vadd.xlane.f32.xlu0 %v2613
    %v2615 = vpop.xlane.xlu0 %2614
    %v2616 = vrcp.pop 32.0
    %v2617 = vmul.f32 %v2612, %v2616
    %v2618 = vmul.f32 %v2615, %v2616
    %v2619 = vsub.f32 %v2608, %v2617
    %v2620 = vsub.f32 %v2609, %v2618
    %v2621 = vmul.f32 %v2619, %v2619
    %v2622 = vmul.f32 %v2620, %v2620
    %v2623 = vsel %vm104, %v2621, 0.0
    %2624 = vadd.xlane.f32.xlu0 %v2623
    %v2625 = vpop.xlane.xlu0 %2624
    %v2626 = vsel %vm104, %v2622, 0.0
    %2627 = vadd.xlane.f32.xlu0 %v2626
    %v2628 = vpop.xlane.xlu0 %2627
    %v2629 = vmul.f32 %v2625, 0.032258064
    %v2630 = vmul.f32 %v2628, 0.032258064
    %v2631 = vrsqrt.pop %v2629
    %v2632 = vmul.f32 %v2629, %v2631
    %vm2633 = vcmp.eq.f32.partialorder %v2629, inf
    %v2634 = vsel %vm2633, %v2629, %v2632
    %vm2635 = vcmp.eq.f32.partialorder %v2629, 0.0
    %v2636 = vand.u32 %v2629, 2147483648
    %v2637 = vsel %vm2635, %v2636, %v2634
    %v2638 = vrsqrt.pop %v2630
    %v2639 = vmul.f32 %v2630, %v2638
    %vm2640 = vcmp.eq.f32.partialorder %v2630, inf
    %v2641 = vsel %vm2640, %v2630, %v2639
    %vm2642 = vcmp.eq.f32.partialorder %v2630, 0.0
    %v2643 = vand.u32 %v2630, 2147483648
    %v2644 = vsel %vm2642, %v2643, %v2641
    %v2645 = vadd.f32 %v2637, 1e-07
    %v2646 = vadd.f32 %v2644, 1e-07
    %v2647 = vrcp.pop %v2645
    %v2648 = vmul.f32 1.0, %v2647
    %v2649 = vrcp.pop %v2646
    %v2650 = vmul.f32 1.0, %v2649
    %v2651 = vmul.f32 %v2619, %v2648
    %v2652 = vmul.f32 %v2620, %v2650
    %v2653 = vlaneseq
    %v2654 = vshrl.u32 %v2653, 7
    %v2655 = vsub.s32 1, %v2654
    %v2656 = vrot.slane %v31, %v2655
    %v2657 = vmul.f32 %v2656, %v2651
    %v2658 = vmul.f32 %v2656, %v2652
    %v2659 = vlaneseq
    %v2660 = vshrl.u32 %v2659, 7
    %v2661 = vsub.s32 2, %v2660
    %v2662 = vrot.slane %v31, %v2661
    %v2663 = vadd.f32 %v2657, %v2662
    %v2664 = vadd.f32 %v2658, %v2662
    %v2665 = vadd.f32 %v27, %v2663
    %v2666 = vadd.f32 %v28, %v2664
    %v2667 = vld [vmem:[%s5] sm:$0xff]
    %v2668 = vld [vmem:[%s5 + $0x8] sm:$0xff]
    %v2669 = vld [vmem:[%s5 + $0x10] sm:$0xff]
    %v2670 = vld [vmem:[%s5 + $0x18] sm:$0xff]
    %v2671 = vld [vmem:[%s5 + $0x20] sm:$0xff]
    %v2672 = vld [vmem:[%s5 + $0x28] sm:$0xff]
    %v2673 = vld [vmem:[%s5 + $0x30] sm:$0xff]
    %v2674 = vld [vmem:[%s5 + $0x38] sm:$0xff]
    %v2675 = vlaneseq
    %v2676 = vshrl.u32 %v2675, 7
    %v2677 = vsub.s32 3, %v2676
    %v2678 = vrot.slane %v31, %v2677
    %v2680 = vsel %vm104, %v2665, 0
    %2682 = vmatprep.subr.mxu0 0.0
    %2683 = vmatpush1.msra.mxu0 %v2667
    %2684 = vmatprep.subr.mxu0 0.0
    %2685 = vmatpush1.msra.mxu0 %v2668
    %2686 = vmatprep.subr.mxu0 0.0
    %2687 = vmatpush1.msra.mxu0 %v2669
    %2688 = vmatprep.subr.mxu0 0.0
    %2689 = vmatpush1.msra.mxu0 %v2670
    %2690 = vmatprep.subr.mxu0 0.0
    %2691 = vmatpush1.msra.mxu0 0.0
    %2692 = vmatprep.subr.mxu0 0.0
    %2693 = vmatpush1.msra.mxu0 0.0
    %2694 = vmatprep.subr.mxu0 0.0
    %2695 = vmatpush1.msra.mxu0 0.0
    %2696 = vmatprep.subr.mxu0 0.0
    %2697 = vmatpush1.msra.mxu0 0.0
    %2698 = vmatprep.subr.mxu0 0.0
    %2699 = vmatpush1.msra.mxu0 0.0
    %2700 = vmatprep.subr.mxu0 0.0
    %2701 = vmatpush1.msra.mxu0 0.0
    %2702 = vmatprep.subr.mxu0 0.0
    %2703 = vmatpush1.msra.mxu0 0.0
    %2704 = vmatprep.subr.mxu0 0.0
    %2705 = vmatpush1.msra.mxu0 0.0
    %2706 = vmatprep.subr.mxu0 0.0
    %2707 = vmatpush1.msra.mxu0 0.0
    %2708 = vmatprep.subr.mxu0 0.0
    %2709 = vmatpush1.msra.mxu0 0.0
    %2710 = vmatprep.subr.mxu0 0.0
    %2711 = vmatpush1.msra.mxu0 0.0
    %2712 = vmatprep.subr.mxu0 0.0
    %2713 = vmatpush1.msra.mxu0 0.0
    %2714 = vmatprep.subr.mxu0 0.0
    %2715 = vmatpush1.msra.mxu0 0.0
    %2716 = vmatprep.subr.mxu0 0.0
    %2717 = vmatpush1.msra.mxu0 0.0
    %2718 = vmatprep.subr.mxu0 0.0
    %2719 = vmatpush1.msra.mxu0 0.0
    %2720 = vmatprep.subr.mxu0 0.0
    %2721 = vmatpush1.msra.mxu0 0.0
    %2722 = vmatprep.subr.mxu0 0.0
    %2723 = vmatpush1.msra.mxu0 0.0
    %2724 = vmatprep.subr.mxu0 0.0
    %2725 = vmatpush1.msra.mxu0 0.0
    %2726 = vmatprep.subr.mxu0 0.0
    %2727 = vmatpush1.msra.mxu0 0.0
    %2728 = vmatprep.subr.mxu0 0.0
    %2729 = vmatpush1.msra.mxu0 0.0
    %2730 = vmatprep.subr.mxu0 0.0
    %2731 = vmatpush1.msra.mxu0 0.0
    %2732 = vmatprep.subr.mxu0 0.0
    %2733 = vmatpush1.msra.mxu0 0.0
    %2734 = vmatprep.subr.mxu0 0.0
    %2735 = vmatpush1.msra.mxu0 0.0
    %2736 = vmatprep.subr.mxu0 0.0
    %2737 = vmatpush1.msra.mxu0 0.0
    %2738 = vmatprep.subr.mxu0 0.0
    %2739 = vmatpush1.msra.mxu0 0.0
    %2740 = vmatprep.subr.mxu0 0.0
    %2741 = vmatpush1.msra.mxu0 0.0
    %2742 = vmatprep.subr.mxu0 0.0
    %2743 = vmatpush1.msra.mxu0 0.0
    %2744 = vmatprep.subr.mxu0 0.0
    %2745 = vmatpush1.msra.mxu0 0.0
    %2746 = vmatprep.mubr.f32.mxu0 0.0
    %2747 = vmatmul.mubr.f32.gmra.mrb[0].mxu0 %v2680
    %v2748 = vpop.f32.mrb[0].mxu0
    %v2749 = vadd.f32 %v2678, %v2748
    %v2750 = vpop.f32.mrb[0].mxu0
    %2751 = vdwg.mxu0
    %v2753 = vsel %vm104, %v2666, 0
    %2755 = vmatprep.subr.mxu0 0.0
    %2756 = vmatpush1.msra.mxu0 %v2667
    %2757 = vmatprep.subr.mxu0 0.0
    %2758 = vmatpush1.msra.mxu0 %v2668
    %2759 = vmatprep.subr.mxu0 0.0
    %2760 = vmatpush1.msra.mxu0 %v2669
    %2761 = vmatprep.subr.mxu0 0.0
    %2762 = vmatpush1.msra.mxu0 %v2670
    %2763 = vmatprep.subr.mxu0 0.0
    %2764 = vmatpush1.msra.mxu0 0.0
    %2765 = vmatprep.subr.mxu0 0.0
    %2766 = vmatpush1.msra.mxu0 0.0
    %2767 = vmatprep.subr.mxu0 0.0
    %2768 = vmatpush1.msra.mxu0 0.0
    %2769 = vmatprep.subr.mxu0 0.0
    %2770 = vmatpush1.msra.mxu0 0.0
    %2771 = vmatprep.subr.mxu0 0.0
    %2772 = vmatpush1.msra.mxu0 0.0
    %2773 = vmatprep.subr.mxu0 0.0
    %2774 = vmatpush1.msra.mxu0 0.0
    %2775 = vmatprep.subr.mxu0 0.0
    %2776 = vmatpush1.msra.mxu0 0.0
    %2777 = vmatprep.subr.mxu0 0.0
    %2778 = vmatpush1.msra.mxu0 0.0
    %2779 = vmatprep.subr.mxu0 0.0
    %2780 = vmatpush1.msra.mxu0 0.0
    %2781 = vmatprep.subr.mxu0 0.0
    %2782 = vmatpush1.msra.mxu0 0.0
    %2783 = vmatprep.subr.mxu0 0.0
    %2784 = vmatpush1.msra.mxu0 0.0
    %2785 = vmatprep.subr.mxu0 0.0
    %2786 = vmatpush1.msra.mxu0 0.0
    %2787 = vmatprep.subr.mxu0 0.0
    %2788 = vmatpush1.msra.mxu0 0.0
    %2789 = vmatprep.subr.mxu0 0.0
    %2790 = vmatpush1.msra.mxu0 0.0
    %2791 = vmatprep.subr.mxu0 0.0
    %2792 = vmatpush1.msra.mxu0 0.0
    %2793 = vmatprep.subr.mxu0 0.0
    %2794 = vmatpush1.msra.mxu0 0.0
    %2795 = vmatprep.subr.mxu0 0.0
    %2796 = vmatpush1.msra.mxu0 0.0
    %2797 = vmatprep.subr.mxu0 0.0
    %2798 = vmatpush1.msra.mxu0 0.0
    %2799 = vmatprep.subr.mxu0 0.0
    %2800 = vmatpush1.msra.mxu0 0.0
    %2801 = vmatprep.subr.mxu0 0.0
    %2802 = vmatpush1.msra.mxu0 0.0
    %2803 = vmatprep.subr.mxu0 0.0
    %2804 = vmatpush1.msra.mxu0 0.0
    %2805 = vmatprep.subr.mxu0 0.0
    %2806 = vmatpush1.msra.mxu0 0.0
    %2807 = vmatprep.subr.mxu0 0.0
    %2808 = vmatpush1.msra.mxu0 0.0
    %2809 = vmatprep.subr.mxu0 0.0
    %2810 = vmatpush1.msra.mxu0 0.0
    %2811 = vmatprep.subr.mxu0 0.0
    %2812 = vmatpush1.msra.mxu0 0.0
    %2813 = vmatprep.subr.mxu0 0.0
    %2814 = vmatpush1.msra.mxu0 0.0
    %2815 = vmatprep.subr.mxu0 0.0
    %2816 = vmatpush1.msra.mxu0 0.0
    %2817 = vmatprep.subr.mxu0 0.0
    %2818 = vmatpush1.msra.mxu0 0.0
    %2819 = vmatprep.mubr.f32.mxu0 0.0
    %2820 = vmatmul.mubr.f32.gmra.mrb[0].mxu0 %v2753
    %v2821 = vpop.f32.mrb[0].mxu0
    %v2822 = vadd.f32 %v2678, %v2821
    %v2823 = vpop.f32.mrb[0].mxu0
    %2824 = vdwg.mxu0
    %v2825 = vmax.f32 %v2749, 0.0
    %v2826 = vmax.f32 %v2822, 0.0
    %v2827 = vlaneseq
    %v2828 = vshrl.u32 %v2827, 7
    %v2829 = vsub.s32 4, %v2828
    %v2830 = vrot.slane %v31, %v2829
    %vm2831 = vcmask 523264
    %v2833 = vsel %vm2831, %v2825, 0
    %v2836 = vsel %vm2831, %v2671, 0
    %v2839 = vsel %vm2831, %v2672, 0
    %v2842 = vsel %vm2831, %v2673, 0
    %v2845 = vsel %vm2831, %v2674, 0
    %2847 = vmatprep.subr.mxu0 0.0
    %2848 = vmatpush1.xpose.msra.mxu0 %v2836
    %2849 = vmatprep.subr.mxu0 0.0
    %2850 = vmatpush1.xpose.msra.mxu0 %v2839
    %2851 = vmatprep.subr.mxu0 0.0
    %2852 = vmatpush1.xpose.msra.mxu0 %v2842
    %2853 = vmatprep.subr.mxu0 0.0
    %2854 = vmatpush1.xpose.msra.mxu0 %v2845
    %2855 = vmatprep.subr.mxu0 0.0
    %2856 = vmatpush1.xpose.msra.mxu0 0.0
    %2857 = vmatprep.subr.mxu0 0.0
    %2858 = vmatpush1.xpose.msra.mxu0 0.0
    %2859 = vmatprep.subr.mxu0 0.0
    %2860 = vmatpush1.xpose.msra.mxu0 0.0
    %2861 = vmatprep.subr.mxu0 0.0
    %2862 = vmatpush1.xpose.msra.mxu0 0.0
    %2863 = vmatprep.subr.mxu0 0.0
    %2864 = vmatpush1.xpose.msra.mxu0 0.0
    %2865 = vmatprep.subr.mxu0 0.0
    %2866 = vmatpush1.xpose.msra.mxu0 0.0
    %2867 = vmatprep.subr.mxu0 0.0
    %2868 = vmatpush1.xpose.msra.mxu0 0.0
    %2869 = vmatprep.subr.mxu0 0.0
    %2870 = vmatpush1.xpose.msra.mxu0 0.0
    %2871 = vmatprep.subr.mxu0 0.0
    %2872 = vmatpush1.xpose.msra.mxu0 0.0
    %2873 = vmatprep.subr.mxu0 0.0
    %2874 = vmatpush1.xpose.msra.mxu0 0.0
    %2875 = vmatprep.subr.mxu0 0.0
    %2876 = vmatpush1.xpose.msra.mxu0 0.0
    %2877 = vmatprep.subr.mxu0 0.0
    %2878 = vmatpush1.xpose.msra.mxu0 0.0
    %2879 = vmatprep.subr.mxu0 0.0
    %2880 = vmatpush1.xpose.msra.mxu0 0.0
    %2881 = vmatprep.subr.mxu0 0.0
    %2882 = vmatpush1.xpose.msra.mxu0 0.0
    %2883 = vmatprep.subr.mxu0 0.0
    %2884 = vmatpush1.xpose.msra.mxu0 0.0
    %2885 = vmatprep.subr.mxu0 0.0
    %2886 = vmatpush1.xpose.msra.mxu0 0.0
    %2887 = vmatprep.subr.mxu0 0.0
    %2888 = vmatpush1.xpose.msra.mxu0 0.0
    %2889 = vmatprep.subr.mxu0 0.0
    %2890 = vmatpush1.xpose.msra.mxu0 0.0
    %2891 = vmatprep.subr.mxu0 0.0
    %2892 = vmatpush1.xpose.msra.mxu0 0.0
    %2893 = vmatprep.subr.mxu0 0.0
    %2894 = vmatpush1.xpose.msra.mxu0 0.0
    %2895 = vmatprep.subr.mxu0 0.0
    %2896 = vmatpush1.xpose.msra.mxu0 0.0
    %2897 = vmatprep.subr.mxu0 0.0
    %2898 = vmatpush1.xpose.msra.mxu0 0.0
    %2899 = vmatprep.subr.mxu0 0.0
    %2900 = vmatpush1.xpose.msra.mxu0 0.0
    %2901 = vmatprep.subr.mxu0 0.0
    %2902 = vmatpush1.xpose.msra.mxu0 0.0
    %2903 = vmatprep.subr.mxu0 0.0
    %2904 = vmatpush1.xpose.msra.mxu0 0.0
    %2905 = vmatprep.subr.mxu0 0.0
    %2906 = vmatpush1.xpose.msra.mxu0 0.0
    %2907 = vmatprep.subr.mxu0 0.0
    %2908 = vmatpush1.xpose.msra.mxu0 0.0
    %2909 = vmatprep.subr.mxu0 0.0
    %2910 = vmatpush1.xpose.msra.mxu0 0.0
    %2911 = vmatprep.mubr.f32.mxu0 0.0
    %2912 = vmatmul.mubr.f32.gmra.mrb[0].mxu0 %v2833
    %v2913 = vpop.f32.mrb[0].mxu0
    %v2914 = vadd.f32 %v2830, %v2913
    %v2915 = vpop.f32.mrb[0].mxu0
    %2916 = vdwg.mxu0
    %v2918 = vsel %vm2831, %v2826, 0
    %2920 = vmatprep.subr.mxu0 0.0
    %2921 = vmatpush1.xpose.msra.mxu0 %v2836
    %2922 = vmatprep.subr.mxu0 0.0
    %2923 = vmatpush1.xpose.msra.mxu0 %v2839
    %2924 = vmatprep.subr.mxu0 0.0
    %2925 = vmatpush1.xpose.msra.mxu0 %v2842
    %2926 = vmatprep.subr.mxu0 0.0
    %2927 = vmatpush1.xpose.msra.mxu0 %v2845
    %2928 = vmatprep.subr.mxu0 0.0
    %2929 = vmatpush1.xpose.msra.mxu0 0.0
    %2930 = vmatprep.subr.mxu0 0.0
    %2931 = vmatpush1.xpose.msra.mxu0 0.0
    %2932 = vmatprep.subr.mxu0 0.0
    %2933 = vmatpush1.xpose.msra.mxu0 0.0
    %2934 = vmatprep.subr.mxu0 0.0
    %2935 = vmatpush1.xpose.msra.mxu0 0.0
    %2936 = vmatprep.subr.mxu0 0.0
    %2937 = vmatpush1.xpose.msra.mxu0 0.0
    %2938 = vmatprep.subr.mxu0 0.0
    %2939 = vmatpush1.xpose.msra.mxu0 0.0
    %2940 = vmatprep.subr.mxu0 0.0
    %2941 = vmatpush1.xpose.msra.mxu0 0.0
    %2942 = vmatprep.subr.mxu0 0.0
    %2943 = vmatpush1.xpose.msra.mxu0 0.0
    %2944 = vmatprep.subr.mxu0 0.0
    %2945 = vmatpush1.xpose.msra.mxu0 0.0
    %2946 = vmatprep.subr.mxu0 0.0
    %2947 = vmatpush1.xpose.msra.mxu0 0.0
    %2948 = vmatprep.subr.mxu0 0.0
    %2949 = vmatpush1.xpose.msra.mxu0 0.0
    %2950 = vmatprep.subr.mxu0 0.0
    %2951 = vmatpush1.xpose.msra.mxu0 0.0
    %2952 = vmatprep.subr.mxu0 0.0
    %2953 = vmatpush1.xpose.msra.mxu0 0.0
    %2954 = vmatprep.subr.mxu0 0.0
    %2955 = vmatpush1.xpose.msra.mxu0 0.0
    %2956 = vmatprep.subr.mxu0 0.0
    %2957 = vmatpush1.xpose.msra.mxu0 0.0
    %2958 = vmatprep.subr.mxu0 0.0
    %2959 = vmatpush1.xpose.msra.mxu0 0.0
    %2960 = vmatprep.subr.mxu0 0.0
    %2961 = vmatpush1.xpose.msra.mxu0 0.0
    %2962 = vmatprep.subr.mxu0 0.0
    %2963 = vmatpush1.xpose.msra.mxu0 0.0
    %2964 = vmatprep.subr.mxu0 0.0
    %2965 = vmatpush1.xpose.msra.mxu0 0.0
    %2966 = vmatprep.subr.mxu0 0.0
    %2967 = vmatpush1.xpose.msra.mxu0 0.0
    %2968 = vmatprep.subr.mxu0 0.0
    %2969 = vmatpush1.xpose.msra.mxu0 0.0
    %2970 = vmatprep.subr.mxu0 0.0
    %2971 = vmatpush1.xpose.msra.mxu0 0.0
    %2972 = vmatprep.subr.mxu0 0.0
    %2973 = vmatpush1.xpose.msra.mxu0 0.0
    %2974 = vmatprep.subr.mxu0 0.0
    %2975 = vmatpush1.xpose.msra.mxu0 0.0
    %2976 = vmatprep.subr.mxu0 0.0
    %2977 = vmatpush1.xpose.msra.mxu0 0.0
    %2978 = vmatprep.subr.mxu0 0.0
    %2979 = vmatpush1.xpose.msra.mxu0 0.0
    %2980 = vmatprep.subr.mxu0 0.0
    %2981 = vmatpush1.xpose.msra.mxu0 0.0
    %2982 = vmatprep.subr.mxu0 0.0
    %2983 = vmatpush1.xpose.msra.mxu0 0.0
    %2984 = vmatprep.mubr.f32.mxu0 0.0
    %2985 = vmatmul.mubr.f32.gmra.mrb[0].mxu0 %v2918
    %v2986 = vpop.f32.mrb[0].mxu0
    %v2987 = vadd.f32 %v2830, %v2986
    %v2988 = vpop.f32.mrb[0].mxu0
    %2989 = vdwg.mxu0
    %v2990 = vsel %vm104, %v2914, 0.0
    %2991 = vadd.xlane.f32.xlu0 %v2990
    %v2992 = vpop.xlane.xlu0 %2991
    %v2993 = vsel %vm104, %v2987, 0.0
    %2994 = vadd.xlane.f32.xlu0 %v2993
    %v2995 = vpop.xlane.xlu0 %2994
    %v2996 = vmul.f32 %v2992, %v2616
    %v2997 = vmul.f32 %v2995, %v2616
    %v2998 = vsub.f32 %v2914, %v2996
    %v2999 = vsub.f32 %v2987, %v2997
    %v3000 = vmul.f32 %v2998, %v2998
    %v3001 = vmul.f32 %v2999, %v2999
    %v3002 = vsel %vm104, %v3000, 0.0
    %3003 = vadd.xlane.f32.xlu0 %v3002
    %v3004 = vpop.xlane.xlu0 %3003
    %v3005 = vsel %vm104, %v3001, 0.0
    %3006 = vadd.xlane.f32.xlu0 %v3005
    %v3007 = vpop.xlane.xlu0 %3006
    %v3008 = vmul.f32 %v3004, 0.032258064
    %v3009 = vmul.f32 %v3007, 0.032258064
    %v3010 = vrsqrt.pop %v3008
    %v3011 = vmul.f32 %v3008, %v3010
    %vm3012 = vcmp.eq.f32.partialorder %v3008, inf
    %v3013 = vsel %vm3012, %v3008, %v3011
    %vm3014 = vcmp.eq.f32.partialorder %v3008, 0.0
    %v3015 = vand.u32 %v3008, 2147483648
    %v3016 = vsel %vm3014, %v3015, %v3013
    %v3017 = vrsqrt.pop %v3009
    %v3018 = vmul.f32 %v3009, %v3017
    %vm3019 = vcmp.eq.f32.partialorder %v3009, inf
    %v3020 = vsel %vm3019, %v3009, %v3018
    %vm3021 = vcmp.eq.f32.partialorder %v3009, 0.0
    %v3022 = vand.u32 %v3009, 2147483648
    %v3023 = vsel %vm3021, %v3022, %v3020
    %v3024 = vadd.f32 %v3016, 1e-07
    %v3025 = vadd.f32 %v3023, 1e-07
    %v3026 = vrcp.pop %v3024
    %v3027 = vmul.f32 1.0, %v3026
    %v3028 = vrcp.pop %v3025
    %v3029 = vmul.f32 1.0, %v3028
    %v3030 = vmul.f32 %v2998, %v3027
    %v3031 = vmul.f32 %v2999, %v3029
    %v3032 = vlaneseq
    %v3033 = vshrl.u32 %v3032, 7
    %v3034 = vsub.s32 5, %v3033
    %v3035 = vrot.slane %v31, %v3034
    %v3036 = vmul.f32 %v3035, %v3030
    %v3037 = vmul.f32 %v3035, %v3031
    %v3038 = vlaneseq
    %v3039 = vshrl.u32 %v3038, 7
    %v3040 = vsub.s32 6, %v3039
    %v3041 = vrot.slane %v31, %v3040
    %v3042 = vadd.f32 %v3036, %v3041
    %v3043 = vadd.f32 %v3037, %v3041
    %v3044 = vadd.f32 %v2665, %v3042
    %v3045 = vadd.f32 %v2666, %v3043
    %3046 = vst.msk [vmem:[#allocation2] sm:$0xff] %vm104, %v3044
    %3047 = vst.msk [vmem:[#allocation2 + $0x8] sm:$0xff] %vm104, %v3045
    // Predicated region
    $region30: #{tpu_custom_call.1} parent=1 // pred_check
      _
    $region31: #{tpu_custom_call.1} parent=1 // pred_check_branch
      %3049 = sbr.rel (0) target = $region33
    $region32: #{tpu_custom_call.1} parent=1 // pred_region
      %s3051 = ssub.s32 256, 256
      %3052 = vsyncadd [#allocation3], %s3051
      %s3053 = sshll.u32 [#allocation2], 4
      %s3054 = int_to_ptr.vmem [resolvable:$true] %s3053
      %3059 = dma.vmem_to_hbm [thread:$0]  %s3054, 256, %s7, [#allocation3], 128, 128, 8
    $region33: #{tpu_custom_call.1} parent=1 // pred_fallthru
      _
    // Predicated region
    $region34: #{tpu_custom_call.1} parent=1 // pred_check
      _
    $region35: #{tpu_custom_call.1} parent=1 // pred_check_branch
      %3061 = sbr.rel (0) target = $region37
    $region36: #{tpu_custom_call.1} parent=1 // pred_region
      %3062 = dma.done [#allocation3], 256
    $region37: #{tpu_custom_call.1} parent=1 // pred_fallthru
      _
    %3063 = vsyncpa [#allocation3], 1

</llo_original>
